<compile_context>
chip_gen: v6e
topology: v6e:2x2x1
jax: 0.10.0
libtpu: 0.0.40
codegen_flags: <defaults>
</compile_context>

<pallas_src>
import functools
import math

import jax
import jax.numpy as jnp
from jax.experimental import pallas as pl
from jax.experimental.pallas import tpu as pltpu

_EPS = 1e-5


def _round_up(n, m):
    return ((n + m - 1) // m) * m


# ----------------------------------------------------------------------------
# in-kernel helpers (operate on loaded jnp values, f32)
# ----------------------------------------------------------------------------
def _layer_norm(x, gamma, beta):
    mu = jnp.mean(x, axis=-1, keepdims=True)
    var = jnp.mean((x - mu) ** 2, axis=-1, keepdims=True)
    return (x - mu) * jax.lax.rsqrt(var + _EPS) * gamma + beta


# ----------------------------------------------------------------------------
# fused encoder (+ projection) kernel: grid = (layer,)
# ----------------------------------------------------------------------------
def _encoder_kernel(h0_ref, mask_ref, negb_ref, tidx_ref,
                    wqkv_ref, bqkv_ref, wo_ref, bo_ref, g1_ref, be1_ref,
                    w1_ref, bc1_ref, w2_ref, bc2_ref, g2_ref, be2_ref,
                    wp_ref, bp_ref,
                    stats_ref,
                    h_vmem,
                    *, batch, seq_len, n_heads, head_pad, kernel_size):
    l = pl.program_id(0)
    n_l = pl.num_programs(0)

    # load the (masked, f0-embedded) input once; resident across all layers
    @pl.when(l == 0)
    def _():
        h_vmem[...] = h0_ref[...]

    x = h_vmem[...]                       # (B*T, C) f32
    mask = mask_ref[...]                  # (B*T, 1) f32
    t_idx = tidx_ref[...]                 # (B*T, 1) int32, time index per row
    BT, C = x.shape
    B, T, H, dhp, K = batch, seq_len, n_heads, head_pad, kernel_size

    # ---------------- multi-head self-attention ----------------
    # QKV fused; 1/sqrt(d_head) folded into Wq at param-prep time.
    x_bf = x.astype(jnp.bfloat16)
    qkv = (jnp.dot(x_bf, wqkv_ref[0], preferred_element_type=jnp.float32)
           + bqkv_ref[0]).astype(jnp.bfloat16)            # (B*T, 3*H*dhp)

    o_rows = []
    for b in range(B):                    # static unroll; B is small
        bias = negb_ref[b]                # (1, T) additive key mask (-1e4 on pad)
        r0 = b * T
        o_heads = []
        for h in range(H):                # static unroll; H is small
            q_h = qkv[r0:r0 + T, h * dhp:(h + 1) * dhp]
            k_h = qkv[r0:r0 + T, (H + h) * dhp:(H + h + 1) * dhp]
            v_h = qkv[r0:r0 + T, (2 * H + h) * dhp:(2 * H + h + 1) * dhp]
            s = jax.lax.dot_general(q_h, k_h,
                                    (((1,), (1,)), ((), ())),
                                    preferred_element_type=jnp.float32)  # (T, T)
            s = s + bias
            s = s - jnp.max(s, axis=-1, keepdims=True)
            p = jnp.exp(s)
            p = p * pl.reciprocal(jnp.sum(p, axis=-1, keepdims=True), approx=True)
            o_heads.append(jnp.dot(p.astype(jnp.bfloat16), v_h,
                                   preferred_element_type=jnp.float32))  # (T, dhp)
        o_rows.append(jnp.concatenate(o_heads, axis=-1))   # (T, H*dhp), 128-aligned
    o = jnp.concatenate(o_rows, axis=0).astype(jnp.bfloat16)   # (B*T, H*dhp)
    y = jnp.dot(o, wo_ref[0], preferred_element_type=jnp.float32) + bo_ref[0]

    h = _layer_norm(x + y, g1_ref[0], be1_ref[0])

    # ---------------- FFN: K conv taps fused into one matmul ----------------
    pad_l = (K - 1) // 2                  # VITS FFN "same" padding

    def conv1d(inp, w_ref, b_ref):
        inp = inp * mask                  # FFN masks its input (f32)
        taps = []
        for dk in range(K):
            off = dk - pad_l
            if off == 0:
                shifted = inp
            else:
                shifted = pltpu.roll(inp, shift=(-off) % BT, axis=0)
            # validity per sequence (also kills cross-batch wrap of the roll)
            valid = jnp.logical_and(t_idx + off >= 0, t_idx + off < T)
            taps.append(jnp.where(valid, shifted, 0.0))
        # TODO(synk): on v6e/v7x the bf16 cast could be hoisted above the rolls.
        slab = jnp.concatenate(taps, axis=-1).astype(jnp.bfloat16)  # (B*T, K*Cin)
        return jnp.dot(slab, w_ref[0], preferred_element_type=jnp.float32) + b_ref[0]

    f = jnp.maximum(conv1d(h, w1_ref, bc1_ref), 0.0)        # relu (VITS default)
    y2 = conv1d(f, w2_ref, bc2_ref) * mask
    h = _layer_norm(h + y2, g2_ref[0], be2_ref[0])

    h_vmem[...] = h

    # ---------------- final projection (fused into the last layer) ----------------
    @pl.when(l == n_l - 1)
    def _():
        hb = (h * mask).astype(jnp.bfloat16)
        stats = (jnp.dot(hb, wp_ref[...], preferred_element_type=jnp.float32)
                 + bp_ref[...])
        stats_ref[...] = stats * mask     # lane-dense (B*T, P) slab, P % 128 == 0


# ----------------------------------------------------------------------------
# pallas_call wrapper
# ----------------------------------------------------------------------------
def _compiler_params():
    # Generation-aware VMEM limit: never request the whole physical VMEM (v7x
    # has only 64 MiB per TC); allow > default on v5e/v6e (128 MiB parts).
    limit = None
    try:
        info = pltpu.get_tpu_info()
        cap = getattr(info, "vmem_capacity_bytes", None)
        if cap:
            limit = min(int(cap) * 3 // 4, 112 * 1024 * 1024)
    except Exception:
        limit = None
    return pltpu.CompilerParams(dimension_semantics=("arbitrary",),
                                vmem_limit_bytes=limit)


def _run_encoder(h0, mask_flat, neg_bias, t_idx, p, *, batch, seq_len,
                 n_heads, kernel_size):
    BT, C = h0.shape
    L = p["wqkv"].shape[0]
    P = p["proj_w"].shape[-1]
    dhp = p["wqkv"].shape[-1] // (3 * n_heads)

    kern = functools.partial(_encoder_kernel, batch=batch, seq_len=seq_len,
                             n_heads=n_heads, head_pad=dhp,
                             kernel_size=kernel_size)

    def cspec(shape):                     # constant over the layer grid (one DMA)
        nd = len(shape)
        return pl.BlockSpec(tuple(shape), lambda l: (0,) * nd)

    def lspec(shape):                     # per-layer weights, streamed ONCE each
        nd = len(shape)
        return pl.BlockSpec((1,) + tuple(shape[1:]),
                            lambda l: (l,) + (0,) * (nd - 1))

    in_specs = [
        cspec(h0.shape), cspec(mask_flat.shape), cspec(neg_bias.shape),
        cspec(t_idx.shape),
        lspec(p["wqkv"].shape), lspec(p["bqkv"].shape),
        lspec(p["wo"].shape), lspec(p["bo"].shape),
        lspec(p["ln1_g"].shape), lspec(p["ln1_b"].shape),
        lspec(p["w1"].shape), lspec(p["b1"].shape),
        lspec(p["w2"].shape), lspec(p["b2"].shape),
        lspec(p["ln2_g"].shape), lspec(p["ln2_b"].shape),
        cspec(p["proj_w"].shape), cspec(p["proj_b"].shape),
    ]

    return pl.pallas_call(
        kern,
        out_shape=jax.ShapeDtypeStruct((BT, P), jnp.float32),
        grid=(L,),
        in_specs=in_specs,
        out_specs=pl.BlockSpec((BT, P), lambda l: (0, 0)),
        scratch_shapes=[pltpu.VMEM((BT, C), jnp.float32)],
        compiler_params=_compiler_params(),
    )(h0, mask_flat, neg_bias, t_idx,
      p["wqkv"], p["bqkv"], p["wo"], p["bo"], p["ln1_g"], p["ln1_b"],
      p["w1"], p["b1"], p["w2"], p["b2"], p["ln2_g"], p["ln2_b"],
      p["proj_w"], p["proj_b"])


# ----------------------------------------------------------------------------
# parameters + full forward pass
# ----------------------------------------------------------------------------
def init_params(key, hidden, filt, out_ch, n_heads, n_layers, kernel_size, n_f0=256):
    keys = jax.random.split(key, 8)

    def rnd(k, shape, scale=0.02):
        return jax.random.normal(k, shape, jnp.float32) * scale

    dh = hidden // n_heads
    dhp = _round_up(dh, 128)              # lane-aligned per-head width
    qk_scale = 1.0 / math.sqrt(dh)

    def pad_head_cols(w):                 # (L, C, C) per-head padded -> (L, C, H*dhp)
        w = w.reshape(n_layers, hidden, n_heads, dh)
        w = jnp.pad(w, ((0, 0), (0, 0), (0, 0), (0, dhp - dh)))
        return w.reshape(n_layers, hidden, n_heads * dhp)

    # QKV fused; attention scale folded into Wq (fold into bq too if nonzero).
    wq = rnd(keys[0], (n_layers, hidden, hidden)) * qk_scale
    wk = rnd(keys[1], (n_layers, hidden, hidden))
    wv = rnd(keys[2], (n_layers, hidden, hidden))
    wqkv = jnp.concatenate([pad_head_cols(wq), pad_head_cols(wk),
                            pad_head_cols(wv)], axis=-1)

    # output projection: pad rows to match padded head layout (zero rows).
    wo = rnd(keys[4], (n_layers, hidden, hidden)).reshape(
        n_layers, n_heads, dh, hidden)
    wo = jnp.pad(wo, ((0, 0), (0, 0), (0, dhp - dh), (0, 0))).reshape(
        n_layers, n_heads * dhp, hidden)

    # fused conv taps: (L, K, Cin, Cout) -> (L, K*Cin, Cout).
    # NOTE: real PyTorch Conv1d weights are (out, in, k); permute to (k, in, out)
    # before this reshape when loading checkpoints.
    w1 = rnd(keys[5], (n_layers, kernel_size, hidden, filt)).reshape(
        n_layers, kernel_size * hidden, filt)
    w2 = rnd(keys[6], (n_layers, kernel_size, filt, hidden)).reshape(
        n_layers, kernel_size * filt, hidden)

    p_out = _round_up(2 * out_ch, 128)    # lane-dense stats slab
    proj_w = jnp.pad(rnd(keys[7], (hidden, 2 * out_ch)),
                     ((0, 0), (0, p_out - 2 * out_ch)))

    return {
        "f0_emb": rnd(keys[3], (n_f0, hidden), 1.0),      # nn.Embedding(256, hidden)
        "wqkv": wqkv.astype(jnp.bfloat16),
        "bqkv": jnp.zeros((n_layers, 1, 3 * n_heads * dhp), jnp.float32),
        "wo": wo.astype(jnp.bfloat16),
        "bo": jnp.zeros((n_layers, 1, hidden), jnp.float32),
        "ln1_g": jnp.ones((n_layers, 1, hidden), jnp.float32),
        "ln1_b": jnp.zeros((n_layers, 1, hidden), jnp.float32),
        "w1": w1.astype(jnp.bfloat16),
        "b1": jnp.zeros((n_layers, 1, filt), jnp.float32),
        "w2": w2.astype(jnp.bfloat16),
        "b2": jnp.zeros((n_layers, 1, hidden), jnp.float32),
        "ln2_g": jnp.ones((n_layers, 1, hidden), jnp.float32),
        "ln2_b": jnp.zeros((n_layers, 1, hidden), jnp.float32),
        "proj_w": proj_w.astype(jnp.bfloat16),            # Conv1d(hidden, 2*out, 1)
        "proj_b": jnp.zeros((1, p_out), jnp.float32),
    }


def text_encoder_forward(params, x, x_mask, f0, noise, *, out_channels,
                         n_heads, kernel_size, noise_scale=1.0):
    """x: (B, hidden, T), x_mask: (B, 1, T), f0: (B, T) int, noise: (B, T, out)."""
    B, C, T = x.shape
    h = jnp.transpose(x, (0, 2, 1))                       # NCL -> NLC  (B, T, C)
    mask = jnp.transpose(x_mask, (0, 2, 1))               # (B, T, 1)

    # x = x + f0_emb(f0).transpose(1, 2); Encoder masks its input.
    emb = jnp.take(params["f0_emb"], f0, axis=0)          # (B, T, C)  (gather = glue)
    h = (h + emb) * mask

    h_flat = h.reshape(B * T, C)
    mask_flat = mask.reshape(B * T, 1)
    neg_bias = (x_mask.astype(jnp.float32) - 1.0) * 1e4   # (B, 1, T) additive key mask
    t_idx = jnp.tile(jnp.arange(T, dtype=jnp.int32), B).reshape(B * T, 1)

    stats = _run_encoder(h_flat, mask_flat, neg_bias, t_idx, params,
                         batch=B, seq_len=T, n_heads=n_heads,
                         kernel_size=kernel_size)          # (B*T, P)
    stats = stats.reshape(B, T, -1)[..., :2 * out_channels]

    # split + reparameterization: cheap element-wise glue in XLA.
    m = stats[..., :out_channels]
    logs = stats[..., out_channels:]
    z = (m + noise * jnp.exp(logs) * noise_scale) * mask

    # back to PyTorch NCL layout
    z = jnp.transpose(z, (0, 2, 1))
    m = jnp.transpose(m, (0, 2, 1))
    logs = jnp.transpose(logs, (0, 2, 1))
    return z, m, logs, x_mask


# ----------------------------------------------------------------------------
# demo
# ----------------------------------------------------------------------------
if __name__ == "__main__":
    B, T = 2, 16
    hidden, filt, out_ch = 32, 64, 8
    n_heads, n_layers, ksize = 2, 2, 3

    key = jax.random.PRNGKey(0)
    k_p, k_x, k_f0, k_n = jax.random.split(key, 4)

    params = init_params(k_p, hidden, filt, out_ch, n_heads, n_layers, ksize)

    x = jax.random.normal(k_x, (B, hidden, T), jnp.float32)           # (B, C, T)
    lengths = jnp.array([T, 12])
    x_mask = (jnp.arange(T)[None, :] < lengths[:, None]).astype(jnp.float32)[:, None, :]
    f0 = jax.random.randint(k_f0, (B, T), 0, 256)                     # (B, T) int
    noise = jax.random.normal(k_n, (B, T, out_ch), jnp.float32)       # torch.randn_like(m)

    z, m, logs, mask_out = text_encoder_forward(
        params, x, x_mask, f0, noise,
        out_channels=out_ch, n_heads=n_heads, kernel_size=ksize, noise_scale=1.0)
    jax.block_until_ready((z, m, logs, mask_out))

    assert z.shape == (B, out_ch, T)
    assert m.shape == (B, out_ch, T)
    assert logs.shape == (B, out_ch, T)
    assert mask_out.shape == (B, 1, T)
    assert bool(jnp.all(jnp.isfinite(z)))
    assert bool(jnp.all(jnp.isfinite(m)))
    assert bool(jnp.all(jnp.isfinite(logs)))
    print("KERNEL_OK")
</pallas_src>

<mosaic_0001>
module attributes {stable_mosaic.version = 11 : i64} {
  func.func @_encoder_kernel(%arg0: i32, %arg1: memref<32x32xf32, #tpu.memory_space<vmem>>, %arg2: memref<32x1xf32, #tpu.memory_space<vmem>>, %arg3: memref<2x1x16xf32, #tpu.memory_space<vmem>>, %arg4: memref<32x1xi32, #tpu.memory_space<vmem>>, %arg5: memref<1x32x768xbf16, #tpu.memory_space<vmem>>, %arg6: memref<1x1x768xf32, #tpu.memory_space<vmem>>, %arg7: memref<1x256x32xbf16, #tpu.memory_space<vmem>>, %arg8: memref<1x1x32xf32, #tpu.memory_space<vmem>>, %arg9: memref<1x1x32xf32, #tpu.memory_space<vmem>>, %arg10: memref<1x1x32xf32, #tpu.memory_space<vmem>>, %arg11: memref<1x96x64xbf16, #tpu.memory_space<vmem>>, %arg12: memref<1x1x64xf32, #tpu.memory_space<vmem>>, %arg13: memref<1x192x32xbf16, #tpu.memory_space<vmem>>, %arg14: memref<1x1x32xf32, #tpu.memory_space<vmem>>, %arg15: memref<1x1x32xf32, #tpu.memory_space<vmem>>, %arg16: memref<1x1x32xf32, #tpu.memory_space<vmem>>, %arg17: memref<32x128xbf16, #tpu.memory_space<vmem>>, %arg18: memref<1x128xf32, #tpu.memory_space<vmem>>, %arg19: memref<32x128xf32, #tpu.memory_space<vmem>>, %arg20: memref<32x32xf32, #tpu.memory_space<vmem>>) attributes {dimension_semantics = [#tpu.dimension_semantics<arbitrary>], iteration_bounds = array<i64: 2>, scalar_prefetch = 0 : i64, scratch_operands = 1 : i64, tpu.core_type = #tpu.core_type<tc>, window_params = [{pipeline_mode = #tpu.pipeline_mode<synchronous>, transform_indices = @transform_0, window_bounds = array<i64: 32, 32>}, {pipeline_mode = #tpu.pipeline_mode<synchronous>, transform_indices = @transform_1, window_bounds = array<i64: 32, 1>}, {pipeline_mode = #tpu.pipeline_mode<synchronous>, transform_indices = @transform_2, window_bounds = array<i64: 2, 1, 16>}, {pipeline_mode = #tpu.pipeline_mode<synchronous>, transform_indices = @transform_3, window_bounds = array<i64: 32, 1>}, {transform_indices = @transform_4, window_bounds = array<i64: 1, 32, 768>}, {transform_indices = @transform_5, window_bounds = array<i64: 1, 1, 768>}, {transform_indices = @transform_6, window_bounds = array<i64: 1, 256, 32>}, {transform_indices = @transform_7, window_bounds = array<i64: 1, 1, 32>}, {transform_indices = @transform_8, window_bounds = array<i64: 1, 1, 32>}, {transform_indices = @transform_9, window_bounds = array<i64: 1, 1, 32>}, {transform_indices = @transform_10, window_bounds = array<i64: 1, 96, 64>}, {transform_indices = @transform_11, window_bounds = array<i64: 1, 1, 64>}, {transform_indices = @transform_12, window_bounds = array<i64: 1, 192, 32>}, {transform_indices = @transform_13, window_bounds = array<i64: 1, 1, 32>}, {transform_indices = @transform_14, window_bounds = array<i64: 1, 1, 32>}, {transform_indices = @transform_15, window_bounds = array<i64: 1, 1, 32>}, {pipeline_mode = #tpu.pipeline_mode<synchronous>, transform_indices = @transform_16, window_bounds = array<i64: 32, 128>}, {pipeline_mode = #tpu.pipeline_mode<synchronous>, transform_indices = @transform_17, window_bounds = array<i64: 1, 128>}, {pipeline_mode = #tpu.pipeline_mode<synchronous>, transform_indices = @transform_18, window_bounds = array<i64: 32, 128>}]} {
    %c0_i32 = arith.constant 0 : i32
    %0 = arith.cmpi eq, %arg0, %c0_i32 : i32
    %1 = arith.extui %0 : i1 to i32
    %c0_i32_0 = arith.constant 0 : i32
    %2 = arith.cmpi ne, %1, %c0_i32_0 : i32
    scf.if %2 {
      %c0_111 = arith.constant 0 : index
      %c0_112 = arith.constant 0 : index
      %268 = vector.load %arg1[%c0_111, %c0_112] : memref<32x32xf32, #tpu.memory_space<vmem>>, vector<32x32xf32>
      %c0_113 = arith.constant 0 : index
      %c0_114 = arith.constant 0 : index
      %269 = vector.load %arg20[%c0_113, %c0_114] : memref<32x32xf32, #tpu.memory_space<vmem>>, vector<32x32xf32>
      tpu.vector_store %arg20[%c0_113, %c0_114], %268 {strides = array<i32>} : memref<32x32xf32, #tpu.memory_space<vmem>>, vector<32x32xf32>,
    } else {
    }
    %c0 = arith.constant 0 : index
    %c0_1 = arith.constant 0 : index
    %3 = vector.load %arg20[%c0, %c0_1] : memref<32x32xf32, #tpu.memory_space<vmem>>, vector<32x32xf32>
    %c0_2 = arith.constant 0 : index
    %c0_3 = arith.constant 0 : index
    %4 = vector.load %arg2[%c0_2, %c0_3] : memref<32x1xf32, #tpu.memory_space<vmem>>, vector<32x1xf32>
    %c0_4 = arith.constant 0 : index
    %c0_5 = arith.constant 0 : index
    %5 = vector.load %arg4[%c0_4, %c0_5] : memref<32x1xi32, #tpu.memory_space<vmem>>, vector<32x1xi32>
    %6 = arith.truncf %3 : vector<32x32xf32> to vector<32x32xbf16>
    %c0_6 = arith.constant 0 : index
    %c0_7 = arith.constant 0 : index
    %c0_8 = arith.constant 0 : index
    %7 = vector.load %arg5[%c0_6, %c0_7, %c0_8] : memref<1x32x768xbf16, #tpu.memory_space<vmem>>, vector<1x32x768xbf16>
    %8 = vector.shape_cast %7 : vector<1x32x768xbf16> to vector<32x768xbf16>
    %cst = arith.constant dense<0.000000e+00> : vector<32x768xf32>
    %9 = tpu.matmul %6, %8, %cst {dimension_numbers = #tpu.dot_dimension_numbers<[1], [0], [0], [1], [0, 0, 1, 1], [], []>} : vector<32x32xbf16>, vector<32x768xbf16>, vector<32x768xf32> -> vector<32x768xf32>
    %c0_9 = arith.constant 0 : index
    %c0_10 = arith.constant 0 : index
    %c0_11 = arith.constant 0 : index
    %10 = vector.load %arg6[%c0_9, %c0_10, %c0_11] : memref<1x1x768xf32, #tpu.memory_space<vmem>>, vector<1x1x768xf32>
    %11 = vector.shape_cast %10 : vector<1x1x768xf32> to vector<1x768xf32>
    %12 = vector.broadcast %11 : vector<1x768xf32> to vector<32x768xf32>
    %13 = arith.addf %9, %12 : vector<32x768xf32>
    %14 = arith.truncf %13 : vector<32x768xf32> to vector<32x768xbf16>
    %c0_12 = arith.constant 0 : index
    %c0_13 = arith.constant 0 : index
    %c0_14 = arith.constant 0 : index
    %15 = vector.load %arg3[%c0_12, %c0_13, %c0_14] : memref<2x1x16xf32, #tpu.memory_space<vmem>>, vector<1x1x16xf32>
    %16 = vector.shape_cast %15 : vector<1x1x16xf32> to vector<1x16xf32>
    %17 = vector.extract_strided_slice %14 {offsets = [0, 0], sizes = [16, 128], strides = [1, 1]} : vector<32x768xbf16> to vector<16x128xbf16>
    %18 = vector.extract_strided_slice %14 {offsets = [0, 256], sizes = [16, 128], strides = [1, 1]} : vector<32x768xbf16> to vector<16x128xbf16>
    %19 = vector.extract_strided_slice %14 {offsets = [0, 512], sizes = [16, 128], strides = [1, 1]} : vector<32x768xbf16> to vector<16x128xbf16>
    %cst_15 = arith.constant dense<0.000000e+00> : vector<16x16xf32>
    %20 = tpu.matmul %17, %18, %cst_15 {dimension_numbers = #tpu.dot_dimension_numbers<[1], [1], [0], [0], [0, 0, 1, 0], [], []>} : vector<16x128xbf16>, vector<16x128xbf16>, vector<16x16xf32> -> vector<16x16xf32>
    %21 = vector.broadcast %16 : vector<1x16xf32> to vector<16x16xf32>
    %22 = arith.addf %20, %21 : vector<16x16xf32>
    %cst_16 = arith.constant dense<0xFF800000> : vector<16xf32>
    %23 = vector.multi_reduction <maximumf>, %22, %cst_16 [1] : vector<16x16xf32> to vector<16xf32>
    %24 = vector.shape_cast %23 : vector<16xf32> to vector<16x1xf32>
    %25 = vector.broadcast %24 : vector<16x1xf32> to vector<16x16xf32>
    %26 = arith.subf %22, %25 : vector<16x16xf32>
    %27 = math.exp %26 : vector<16x16xf32>
    %cst_17 = arith.constant dense<0.000000e+00> : vector<16xf32>
    %28 = vector.multi_reduction <add>, %27, %cst_17 [1] : vector<16x16xf32> to vector<16xf32>
    %29 = vector.shape_cast %28 : vector<16xf32> to vector<16x1xf32>
    %30 = tpu.reciprocal %29 {approx = true} : vector<16x1xf32> -> vector<16x1xf32>
    %31 = vector.broadcast %30 : vector<16x1xf32> to vector<16x16xf32>
    %32 = arith.mulf %27, %31 : vector<16x16xf32>
    %33 = arith.truncf %32 : vector<16x16xf32> to vector<16x16xbf16>
    %cst_18 = arith.constant dense<0.000000e+00> : vector<16x128xf32>
    %34 = tpu.matmul %33, %19, %cst_18 {dimension_numbers = #tpu.dot_dimension_numbers<[1], [0], [0], [1], [0, 0, 1, 1], [], []>} : vector<16x16xbf16>, vector<16x128xbf16>, vector<16x128xf32> -> vector<16x128xf32>
    %35 = vector.extract_strided_slice %14 {offsets = [0, 128], sizes = [16, 128], strides = [1, 1]} : vector<32x768xbf16> to vector<16x128xbf16>
    %36 = vector.extract_strided_slice %14 {offsets = [0, 384], sizes = [16, 128], strides = [1, 1]} : vector<32x768xbf16> to vector<16x128xbf16>
    %37 = vector.extract_strided_slice %14 {offsets = [0, 640], sizes = [16, 128], strides = [1, 1]} : vector<32x768xbf16> to vector<16x128xbf16>
    %cst_19 = arith.constant dense<0.000000e+00> : vector<16x16xf32>
    %38 = tpu.matmul %35, %36, %cst_19 {dimension_numbers = #tpu.dot_dimension_numbers<[1], [1], [0], [0], [0, 0, 1, 0], [], []>} : vector<16x128xbf16>, vector<16x128xbf16>, vector<16x16xf32> -> vector<16x16xf32>
    %39 = vector.broadcast %16 : vector<1x16xf32> to vector<16x16xf32>
    %40 = arith.addf %38, %39 : vector<16x16xf32>
    %cst_20 = arith.constant dense<0xFF800000> : vector<16xf32>
    %41 = vector.multi_reduction <maximumf>, %40, %cst_20 [1] : vector<16x16xf32> to vector<16xf32>
    %42 = vector.shape_cast %41 : vector<16xf32> to vector<16x1xf32>
    %43 = vector.broadcast %42 : vector<16x1xf32> to vector<16x16xf32>
    %44 = arith.subf %40, %43 : vector<16x16xf32>
    %45 = math.exp %44 : vector<16x16xf32>
    %cst_21 = arith.constant dense<0.000000e+00> : vector<16xf32>
    %46 = vector.multi_reduction <add>, %45, %cst_21 [1] : vector<16x16xf32> to vector<16xf32>
    %47 = vector.shape_cast %46 : vector<16xf32> to vector<16x1xf32>
    %48 = tpu.reciprocal %47 {approx = true} : vector<16x1xf32> -> vector<16x1xf32>
    %49 = vector.broadcast %48 : vector<16x1xf32> to vector<16x16xf32>
    %50 = arith.mulf %45, %49 : vector<16x16xf32>
    %51 = arith.truncf %50 : vector<16x16xf32> to vector<16x16xbf16>
    %cst_22 = arith.constant dense<0.000000e+00> : vector<16x128xf32>
    %52 = tpu.matmul %51, %37, %cst_22 {dimension_numbers = #tpu.dot_dimension_numbers<[1], [0], [0], [1], [0, 0, 1, 1], [], []>} : vector<16x16xbf16>, vector<16x128xbf16>, vector<16x128xf32> -> vector<16x128xf32>
    %53 = tpu.concatenate %34, %52 in 1 : vector<16x128xf32>, vector<16x128xf32> -> vector<16x256xf32>
    %c1 = arith.constant 1 : index
    %c0_23 = arith.constant 0 : index
    %c0_24 = arith.constant 0 : index
    %54 = vector.load %arg3[%c1, %c0_23, %c0_24] : memref<2x1x16xf32, #tpu.memory_space<vmem>>, vector<1x1x16xf32>
    %55 = vector.shape_cast %54 : vector<1x1x16xf32> to vector<1x16xf32>
    %56 = vector.extract_strided_slice %14 {offsets = [16, 0], sizes = [16, 128], strides = [1, 1]} : vector<32x768xbf16> to vector<16x128xbf16>
    %57 = vector.extract_strided_slice %14 {offsets = [16, 256], sizes = [16, 128], strides = [1, 1]} : vector<32x768xbf16> to vector<16x128xbf16>
    %58 = vector.extract_strided_slice %14 {offsets = [16, 512], sizes = [16, 128], strides = [1, 1]} : vector<32x768xbf16> to vector<16x128xbf16>
    %cst_25 = arith.constant dense<0.000000e+00> : vector<16x16xf32>
    %59 = tpu.matmul %56, %57, %cst_25 {dimension_numbers = #tpu.dot_dimension_numbers<[1], [1], [0], [0], [0, 0, 1, 0], [], []>} : vector<16x128xbf16>, vector<16x128xbf16>, vector<16x16xf32> -> vector<16x16xf32>
    %60 = vector.broadcast %55 : vector<1x16xf32> to vector<16x16xf32>
    %61 = arith.addf %59, %60 : vector<16x16xf32>
    %cst_26 = arith.constant dense<0xFF800000> : vector<16xf32>
    %62 = vector.multi_reduction <maximumf>, %61, %cst_26 [1] : vector<16x16xf32> to vector<16xf32>
    %63 = vector.shape_cast %62 : vector<16xf32> to vector<16x1xf32>
    %64 = vector.broadcast %63 : vector<16x1xf32> to vector<16x16xf32>
    %65 = arith.subf %61, %64 : vector<16x16xf32>
    %66 = math.exp %65 : vector<16x16xf32>
    %cst_27 = arith.constant dense<0.000000e+00> : vector<16xf32>
    %67 = vector.multi_reduction <add>, %66, %cst_27 [1] : vector<16x16xf32> to vector<16xf32>
    %68 = vector.shape_cast %67 : vector<16xf32> to vector<16x1xf32>
    %69 = tpu.reciprocal %68 {approx = true} : vector<16x1xf32> -> vector<16x1xf32>
    %70 = vector.broadcast %69 : vector<16x1xf32> to vector<16x16xf32>
    %71 = arith.mulf %66, %70 : vector<16x16xf32>
    %72 = arith.truncf %71 : vector<16x16xf32> to vector<16x16xbf16>
    %cst_28 = arith.constant dense<0.000000e+00> : vector<16x128xf32>
    %73 = tpu.matmul %72, %58, %cst_28 {dimension_numbers = #tpu.dot_dimension_numbers<[1], [0], [0], [1], [0, 0, 1, 1], [], []>} : vector<16x16xbf16>, vector<16x128xbf16>, vector<16x128xf32> -> vector<16x128xf32>
    %74 = vector.extract_strided_slice %14 {offsets = [16, 128], sizes = [16, 128], strides = [1, 1]} : vector<32x768xbf16> to vector<16x128xbf16>
    %75 = vector.extract_strided_slice %14 {offsets = [16, 384], sizes = [16, 128], strides = [1, 1]} : vector<32x768xbf16> to vector<16x128xbf16>
    %76 = vector.extract_strided_slice %14 {offsets = [16, 640], sizes = [16, 128], strides = [1, 1]} : vector<32x768xbf16> to vector<16x128xbf16>
    %cst_29 = arith.constant dense<0.000000e+00> : vector<16x16xf32>
    %77 = tpu.matmul %74, %75, %cst_29 {dimension_numbers = #tpu.dot_dimension_numbers<[1], [1], [0], [0], [0, 0, 1, 0], [], []>} : vector<16x128xbf16>, vector<16x128xbf16>, vector<16x16xf32> -> vector<16x16xf32>
    %78 = vector.broadcast %55 : vector<1x16xf32> to vector<16x16xf32>
    %79 = arith.addf %77, %78 : vector<16x16xf32>
    %cst_30 = arith.constant dense<0xFF800000> : vector<16xf32>
    %80 = vector.multi_reduction <maximumf>, %79, %cst_30 [1] : vector<16x16xf32> to vector<16xf32>
    %81 = vector.shape_cast %80 : vector<16xf32> to vector<16x1xf32>
    %82 = vector.broadcast %81 : vector<16x1xf32> to vector<16x16xf32>
    %83 = arith.subf %79, %82 : vector<16x16xf32>
    %84 = math.exp %83 : vector<16x16xf32>
    %cst_31 = arith.constant dense<0.000000e+00> : vector<16xf32>
    %85 = vector.multi_reduction <add>, %84, %cst_31 [1] : vector<16x16xf32> to vector<16xf32>
    %86 = vector.shape_cast %85 : vector<16xf32> to vector<16x1xf32>
    %87 = tpu.reciprocal %86 {approx = true} : vector<16x1xf32> -> vector<16x1xf32>
    %88 = vector.broadcast %87 : vector<16x1xf32> to vector<16x16xf32>
    %89 = arith.mulf %84, %88 : vector<16x16xf32>
    %90 = arith.truncf %89 : vector<16x16xf32> to vector<16x16xbf16>
    %cst_32 = arith.constant dense<0.000000e+00> : vector<16x128xf32>
    %91 = tpu.matmul %90, %76, %cst_32 {dimension_numbers = #tpu.dot_dimension_numbers<[1], [0], [0], [1], [0, 0, 1, 1], [], []>} : vector<16x16xbf16>, vector<16x128xbf16>, vector<16x128xf32> -> vector<16x128xf32>
    %92 = tpu.concatenate %73, %91 in 1 : vector<16x128xf32>, vector<16x128xf32> -> vector<16x256xf32>
    %93 = tpu.concatenate %53, %92 in 0 : vector<16x256xf32>, vector<16x256xf32> -> vector<32x256xf32>
    %94 = arith.truncf %93 : vector<32x256xf32> to vector<32x256xbf16>
    %c0_33 = arith.constant 0 : index
    %c0_34 = arith.constant 0 : index
    %c0_35 = arith.constant 0 : index
    %95 = vector.load %arg7[%c0_33, %c0_34, %c0_35] : memref<1x256x32xbf16, #tpu.memory_space<vmem>>, vector<1x256x32xbf16>
    %96 = vector.shape_cast %95 : vector<1x256x32xbf16> to vector<256x32xbf16>
    %cst_36 = arith.constant dense<0.000000e+00> : vector<32x32xf32>
    %97 = tpu.matmul %94, %96, %cst_36 {dimension_numbers = #tpu.dot_dimension_numbers<[1], [0], [0], [1], [0, 0, 1, 1], [], []>} : vector<32x256xbf16>, vector<256x32xbf16>, vector<32x32xf32> -> vector<32x32xf32>
    %c0_37 = arith.constant 0 : index
    %c0_38 = arith.constant 0 : index
    %c0_39 = arith.constant 0 : index
    %98 = vector.load %arg8[%c0_37, %c0_38, %c0_39] : memref<1x1x32xf32, #tpu.memory_space<vmem>>, vector<1x1x32xf32>
    %99 = vector.shape_cast %98 : vector<1x1x32xf32> to vector<1x32xf32>
    %100 = vector.broadcast %99 : vector<1x32xf32> to vector<32x32xf32>
    %101 = arith.addf %97, %100 : vector<32x32xf32>
    %102 = arith.addf %3, %101 : vector<32x32xf32>
    %c0_40 = arith.constant 0 : index
    %c0_41 = arith.constant 0 : index
    %c0_42 = arith.constant 0 : index
    %103 = vector.load %arg9[%c0_40, %c0_41, %c0_42] : memref<1x1x32xf32, #tpu.memory_space<vmem>>, vector<1x1x32xf32>
    %104 = vector.shape_cast %103 : vector<1x1x32xf32> to vector<1x32xf32>
    %c0_43 = arith.constant 0 : index
    %c0_44 = arith.constant 0 : index
    %c0_45 = arith.constant 0 : index
    %105 = vector.load %arg10[%c0_43, %c0_44, %c0_45] : memref<1x1x32xf32, #tpu.memory_space<vmem>>, vector<1x1x32xf32>
    %106 = vector.shape_cast %105 : vector<1x1x32xf32> to vector<1x32xf32>
    %cst_46 = arith.constant dense<0.000000e+00> : vector<32xf32>
    %107 = vector.multi_reduction <add>, %102, %cst_46 [1] : vector<32x32xf32> to vector<32xf32>
    %108 = vector.shape_cast %107 : vector<32xf32> to vector<32x1xf32>
    %cst_47 = arith.constant 3.200000e+01 : f32
    %109 = vector.broadcast %cst_47 : f32 to vector<32x1xf32>
    %110 = arith.divf %108, %109 : vector<32x1xf32>
    %111 = vector.broadcast %110 : vector<32x1xf32> to vector<32x32xf32>
    %112 = arith.subf %102, %111 : vector<32x32xf32>
    %113 = arith.mulf %112, %112 : vector<32x32xf32>
    %cst_48 = arith.constant dense<0.000000e+00> : vector<32xf32>
    %114 = vector.multi_reduction <add>, %113, %cst_48 [1] : vector<32x32xf32> to vector<32xf32>
    %115 = vector.shape_cast %114 : vector<32xf32> to vector<32x1xf32>
    %cst_49 = arith.constant 3.200000e+01 : f32
    %116 = vector.broadcast %cst_49 : f32 to vector<32x1xf32>
    %117 = arith.divf %115, %116 : vector<32x1xf32>
    %118 = vector.broadcast %110 : vector<32x1xf32> to vector<32x32xf32>
    %119 = arith.subf %102, %118 : vector<32x32xf32>
    %cst_50 = arith.constant 9.99999974E-6 : f32
    %120 = vector.broadcast %cst_50 : f32 to vector<32x1xf32>
    %121 = arith.addf %117, %120 : vector<32x1xf32>
    %122 = math.rsqrt %121 : vector<32x1xf32>
    %123 = vector.broadcast %122 : vector<32x1xf32> to vector<32x32xf32>
    %124 = arith.mulf %119, %123 : vector<32x32xf32>
    %125 = vector.broadcast %104 : vector<1x32xf32> to vector<32x32xf32>
    %126 = arith.mulf %124, %125 : vector<32x32xf32>
    %127 = vector.broadcast %106 : vector<1x32xf32> to vector<32x32xf32>
    %128 = arith.addf %126, %127 : vector<32x32xf32>
    %129 = vector.broadcast %4 : vector<32x1xf32> to vector<32x32xf32>
    %130 = arith.mulf %128, %129 : vector<32x32xf32>
    %c1_i32 = arith.constant 1 : i32
    %131 = tpu.dynamic_rotate %130 by %c1_i32 dim 0 : vector<32x32xf32>, i32 -> vector<32x32xf32>
    %c-1_i32 = arith.constant -1 : i32
    %132 = vector.broadcast %c-1_i32 : i32 to vector<32x1xi32>
    %133 = arith.addi %5, %132 : vector<32x1xi32>
    %c0_i32_51 = arith.constant 0 : i32
    %134 = vector.broadcast %c0_i32_51 : i32 to vector<32x1xi32>
    %135 = arith.cmpi sge, %133, %134 : vector<32x1xi32>
    %c-1_i32_52 = arith.constant -1 : i32
    %136 = vector.broadcast %c-1_i32_52 : i32 to vector<32x1xi32>
    %137 = arith.addi %5, %136 : vector<32x1xi32>
    %c16_i32 = arith.constant 16 : i32
    %138 = vector.broadcast %c16_i32 : i32 to vector<32x1xi32>
    %139 = arith.cmpi slt, %137, %138 : vector<32x1xi32>
    %140 = arith.andi %135, %139 : vector<32x1xi1>
    %cst_53 = arith.constant 0.000000e+00 : f32
    %141 = vector.shape_cast %140 : vector<32x1xi1> to vector<32x1xi1>
    %142 = vector.broadcast %141 : vector<32x1xi1> to vector<32x32xi1>
    %143 = vector.broadcast %cst_53 : f32 to vector<32x32xf32>
    %144 = arith.select %142, %131, %143 : vector<32x32xi1>, vector<32x32xf32>
    %c0_i32_54 = arith.constant 0 : i32
    %145 = vector.broadcast %c0_i32_54 : i32 to vector<32x1xi32>
    %146 = arith.addi %5, %145 : vector<32x1xi32>
    %c0_i32_55 = arith.constant 0 : i32
    %147 = vector.broadcast %c0_i32_55 : i32 to vector<32x1xi32>
    %148 = arith.cmpi sge, %146, %147 : vector<32x1xi32>
    %c0_i32_56 = arith.constant 0 : i32
    %149 = vector.broadcast %c0_i32_56 : i32 to vector<32x1xi32>
    %150 = arith.addi %5, %149 : vector<32x1xi32>
    %c16_i32_57 = arith.constant 16 : i32
    %151 = vector.broadcast %c16_i32_57 : i32 to vector<32x1xi32>
    %152 = arith.cmpi slt, %150, %151 : vector<32x1xi32>
    %153 = arith.andi %148, %152 : vector<32x1xi1>
    %cst_58 = arith.constant 0.000000e+00 : f32
    %154 = vector.shape_cast %153 : vector<32x1xi1> to vector<32x1xi1>
    %155 = vector.broadcast %154 : vector<32x1xi1> to vector<32x32xi1>
    %156 = vector.broadcast %cst_58 : f32 to vector<32x32xf32>
    %157 = arith.select %155, %130, %156 : vector<32x32xi1>, vector<32x32xf32>
    %c31_i32 = arith.constant 31 : i32
    %158 = tpu.dynamic_rotate %130 by %c31_i32 dim 0 : vector<32x32xf32>, i32 -> vector<32x32xf32>
    %c1_i32_59 = arith.constant 1 : i32
    %159 = vector.broadcast %c1_i32_59 : i32 to vector<32x1xi32>
    %160 = arith.addi %5, %159 : vector<32x1xi32>
    %c0_i32_60 = arith.constant 0 : i32
    %161 = vector.broadcast %c0_i32_60 : i32 to vector<32x1xi32>
    %162 = arith.cmpi sge, %160, %161 : vector<32x1xi32>
    %c1_i32_61 = arith.constant 1 : i32
    %163 = vector.broadcast %c1_i32_61 : i32 to vector<32x1xi32>
    %164 = arith.addi %5, %163 : vector<32x1xi32>
    %c16_i32_62 = arith.constant 16 : i32
    %165 = vector.broadcast %c16_i32_62 : i32 to vector<32x1xi32>
    %166 = arith.cmpi slt, %164, %165 : vector<32x1xi32>
    %167 = arith.andi %162, %166 : vector<32x1xi1>
    %cst_63 = arith.constant 0.000000e+00 : f32
    %168 = vector.shape_cast %167 : vector<32x1xi1> to vector<32x1xi1>
    %169 = vector.broadcast %168 : vector<32x1xi1> to vector<32x32xi1>
    %170 = vector.broadcast %cst_63 : f32 to vector<32x32xf32>
    %171 = arith.select %169, %158, %170 : vector<32x32xi1>, vector<32x32xf32>
    %172 = tpu.concatenate %144, %157, %171 in 1 : vector<32x32xf32>, vector<32x32xf32>, vector<32x32xf32> -> vector<32x96xf32>
    %173 = arith.truncf %172 : vector<32x96xf32> to vector<32x96xbf16>
    %c0_64 = arith.constant 0 : index
    %c0_65 = arith.constant 0 : index
    %c0_66 = arith.constant 0 : index
    %174 = vector.load %arg11[%c0_64, %c0_65, %c0_66] : memref<1x96x64xbf16, #tpu.memory_space<vmem>>, vector<1x96x64xbf16>
    %175 = vector.shape_cast %174 : vector<1x96x64xbf16> to vector<96x64xbf16>
    %cst_67 = arith.constant dense<0.000000e+00> : vector<32x64xf32>
    %176 = tpu.matmul %173, %175, %cst_67 {dimension_numbers = #tpu.dot_dimension_numbers<[1], [0], [0], [1], [0, 0, 1, 1], [], []>} : vector<32x96xbf16>, vector<96x64xbf16>, vector<32x64xf32> -> vector<32x64xf32>
    %c0_68 = arith.constant 0 : index
    %c0_69 = arith.constant 0 : index
    %c0_70 = arith.constant 0 : index
    %177 = vector.load %arg12[%c0_68, %c0_69, %c0_70] : memref<1x1x64xf32, #tpu.memory_space<vmem>>, vector<1x1x64xf32>
    %178 = vector.shape_cast %177 : vector<1x1x64xf32> to vector<1x64xf32>
    %179 = vector.broadcast %178 : vector<1x64xf32> to vector<32x64xf32>
    %180 = arith.addf %176, %179 : vector<32x64xf32>
    %cst_71 = arith.constant 0.000000e+00 : f32
    %181 = vector.broadcast %cst_71 : f32 to vector<32x64xf32>
    %182 = arith.maximumf %180, %181 : vector<32x64xf32>
    %183 = vector.broadcast %4 : vector<32x1xf32> to vector<32x64xf32>
    %184 = arith.mulf %182, %183 : vector<32x64xf32>
    %c1_i32_72 = arith.constant 1 : i32
    %185 = tpu.dynamic_rotate %184 by %c1_i32_72 dim 0 : vector<32x64xf32>, i32 -> vector<32x64xf32>
    %c-1_i32_73 = arith.constant -1 : i32
    %186 = vector.broadcast %c-1_i32_73 : i32 to vector<32x1xi32>
    %187 = arith.addi %5, %186 : vector<32x1xi32>
    %c0_i32_74 = arith.constant 0 : i32
    %188 = vector.broadcast %c0_i32_74 : i32 to vector<32x1xi32>
    %189 = arith.cmpi sge, %187, %188 : vector<32x1xi32>
    %c-1_i32_75 = arith.constant -1 : i32
    %190 = vector.broadcast %c-1_i32_75 : i32 to vector<32x1xi32>
    %191 = arith.addi %5, %190 : vector<32x1xi32>
    %c16_i32_76 = arith.constant 16 : i32
    %192 = vector.broadcast %c16_i32_76 : i32 to vector<32x1xi32>
    %193 = arith.cmpi slt, %191, %192 : vector<32x1xi32>
    %194 = arith.andi %189, %193 : vector<32x1xi1>
    %cst_77 = arith.constant 0.000000e+00 : f32
    %195 = vector.shape_cast %194 : vector<32x1xi1> to vector<32x1xi1>
    %196 = vector.broadcast %195 : vector<32x1xi1> to vector<32x64xi1>
    %197 = vector.broadcast %cst_77 : f32 to vector<32x64xf32>
    %198 = arith.select %196, %185, %197 : vector<32x64xi1>, vector<32x64xf32>
    %c0_i32_78 = arith.constant 0 : i32
    %199 = vector.broadcast %c0_i32_78 : i32 to vector<32x1xi32>
    %200 = arith.addi %5, %199 : vector<32x1xi32>
    %c0_i32_79 = arith.constant 0 : i32
    %201 = vector.broadcast %c0_i32_79 : i32 to vector<32x1xi32>
    %202 = arith.cmpi sge, %200, %201 : vector<32x1xi32>
    %c0_i32_80 = arith.constant 0 : i32
    %203 = vector.broadcast %c0_i32_80 : i32 to vector<32x1xi32>
    %204 = arith.addi %5, %203 : vector<32x1xi32>
    %c16_i32_81 = arith.constant 16 : i32
    %205 = vector.broadcast %c16_i32_81 : i32 to vector<32x1xi32>
    %206 = arith.cmpi slt, %204, %205 : vector<32x1xi32>
    %207 = arith.andi %202, %206 : vector<32x1xi1>
    %cst_82 = arith.constant 0.000000e+00 : f32
    %208 = vector.shape_cast %207 : vector<32x1xi1> to vector<32x1xi1>
    %209 = vector.broadcast %208 : vector<32x1xi1> to vector<32x64xi1>
    %210 = vector.broadcast %cst_82 : f32 to vector<32x64xf32>
    %211 = arith.select %209, %184, %210 : vector<32x64xi1>, vector<32x64xf32>
    %c31_i32_83 = arith.constant 31 : i32
    %212 = tpu.dynamic_rotate %184 by %c31_i32_83 dim 0 : vector<32x64xf32>, i32 -> vector<32x64xf32>
    %c1_i32_84 = arith.constant 1 : i32
    %213 = vector.broadcast %c1_i32_84 : i32 to vector<32x1xi32>
    %214 = arith.addi %5, %213 : vector<32x1xi32>
    %c0_i32_85 = arith.constant 0 : i32
    %215 = vector.broadcast %c0_i32_85 : i32 to vector<32x1xi32>
    %216 = arith.cmpi sge, %214, %215 : vector<32x1xi32>
    %c1_i32_86 = arith.constant 1 : i32
    %217 = vector.broadcast %c1_i32_86 : i32 to vector<32x1xi32>
    %218 = arith.addi %5, %217 : vector<32x1xi32>
    %c16_i32_87 = arith.constant 16 : i32
    %219 = vector.broadcast %c16_i32_87 : i32 to vector<32x1xi32>
    %220 = arith.cmpi slt, %218, %219 : vector<32x1xi32>
    %221 = arith.andi %216, %220 : vector<32x1xi1>
    %cst_88 = arith.constant 0.000000e+00 : f32
    %222 = vector.shape_cast %221 : vector<32x1xi1> to vector<32x1xi1>
    %223 = vector.broadcast %222 : vector<32x1xi1> to vector<32x64xi1>
    %224 = vector.broadcast %cst_88 : f32 to vector<32x64xf32>
    %225 = arith.select %223, %212, %224 : vector<32x64xi1>, vector<32x64xf32>
    %226 = tpu.concatenate %198, %211, %225 in 1 : vector<32x64xf32>, vector<32x64xf32>, vector<32x64xf32> -> vector<32x192xf32>
    %227 = arith.truncf %226 : vector<32x192xf32> to vector<32x192xbf16>
    %c0_89 = arith.constant 0 : index
    %c0_90 = arith.constant 0 : index
    %c0_91 = arith.constant 0 : index
    %228 = vector.load %arg13[%c0_89, %c0_90, %c0_91] : memref<1x192x32xbf16, #tpu.memory_space<vmem>>, vector<1x192x32xbf16>
    %229 = vector.shape_cast %228 : vector<1x192x32xbf16> to vector<192x32xbf16>
    %cst_92 = arith.constant dense<0.000000e+00> : vector<32x32xf32>
    %230 = tpu.matmul %227, %229, %cst_92 {dimension_numbers = #tpu.dot_dimension_numbers<[1], [0], [0], [1], [0, 0, 1, 1], [], []>} : vector<32x192xbf16>, vector<192x32xbf16>, vector<32x32xf32> -> vector<32x32xf32>
    %c0_93 = arith.constant 0 : index
    %c0_94 = arith.constant 0 : index
    %c0_95 = arith.constant 0 : index
    %231 = vector.load %arg14[%c0_93, %c0_94, %c0_95] : memref<1x1x32xf32, #tpu.memory_space<vmem>>, vector<1x1x32xf32>
    %232 = vector.shape_cast %231 : vector<1x1x32xf32> to vector<1x32xf32>
    %233 = vector.broadcast %232 : vector<1x32xf32> to vector<32x32xf32>
    %234 = arith.addf %230, %233 : vector<32x32xf32>
    %235 = vector.broadcast %4 : vector<32x1xf32> to vector<32x32xf32>
    %236 = arith.mulf %234, %235 : vector<32x32xf32>
    %237 = arith.addf %128, %236 : vector<32x32xf32>
    %c0_96 = arith.constant 0 : index
    %c0_97 = arith.constant 0 : index
    %c0_98 = arith.constant 0 : index
    %238 = vector.load %arg15[%c0_96, %c0_97, %c0_98] : memref<1x1x32xf32, #tpu.memory_space<vmem>>, vector<1x1x32xf32>
    %239 = vector.shape_cast %238 : vector<1x1x32xf32> to vector<1x32xf32>
    %c0_99 = arith.constant 0 : index
    %c0_100 = arith.constant 0 : index
    %c0_101 = arith.constant 0 : index
    %240 = vector.load %arg16[%c0_99, %c0_100, %c0_101] : memref<1x1x32xf32, #tpu.memory_space<vmem>>, vector<1x1x32xf32>
    %241 = vector.shape_cast %240 : vector<1x1x32xf32> to vector<1x32xf32>
    %cst_102 = arith.constant dense<0.000000e+00> : vector<32xf32>
    %242 = vector.multi_reduction <add>, %237, %cst_102 [1] : vector<32x32xf32> to vector<32xf32>
    %243 = vector.shape_cast %242 : vector<32xf32> to vector<32x1xf32>
    %cst_103 = arith.constant 3.200000e+01 : f32
    %244 = vector.broadcast %cst_103 : f32 to vector<32x1xf32>
    %245 = arith.divf %243, %244 : vector<32x1xf32>
    %246 = vector.broadcast %245 : vector<32x1xf32> to vector<32x32xf32>
    %247 = arith.subf %237, %246 : vector<32x32xf32>
    %248 = arith.mulf %247, %247 : vector<32x32xf32>
    %cst_104 = arith.constant dense<0.000000e+00> : vector<32xf32>
    %249 = vector.multi_reduction <add>, %248, %cst_104 [1] : vector<32x32xf32> to vector<32xf32>
    %250 = vector.shape_cast %249 : vector<32xf32> to vector<32x1xf32>
    %cst_105 = arith.constant 3.200000e+01 : f32
    %251 = vector.broadcast %cst_105 : f32 to vector<32x1xf32>
    %252 = arith.divf %250, %251 : vector<32x1xf32>
    %253 = vector.broadcast %245 : vector<32x1xf32> to vector<32x32xf32>
    %254 = arith.subf %237, %253 : vector<32x32xf32>
    %cst_106 = arith.constant 9.99999974E-6 : f32
    %255 = vector.broadcast %cst_106 : f32 to vector<32x1xf32>
    %256 = arith.addf %252, %255 : vector<32x1xf32>
    %257 = math.rsqrt %256 : vector<32x1xf32>
    %258 = vector.broadcast %257 : vector<32x1xf32> to vector<32x32xf32>
    %259 = arith.mulf %254, %258 : vector<32x32xf32>
    %260 = vector.broadcast %239 : vector<1x32xf32> to vector<32x32xf32>
    %261 = arith.mulf %259, %260 : vector<32x32xf32>
    %262 = vector.broadcast %241 : vector<1x32xf32> to vector<32x32xf32>
    %263 = arith.addf %261, %262 : vector<32x32xf32>
    %c0_107 = arith.constant 0 : index
    %c0_108 = arith.constant 0 : index
    %264 = vector.load %arg20[%c0_107, %c0_108] : memref<32x32xf32, #tpu.memory_space<vmem>>, vector<32x32xf32>
    tpu.vector_store %arg20[%c0_107, %c0_108], %263 {strides = array<i32>} : memref<32x32xf32, #tpu.memory_space<vmem>>, vector<32x32xf32>,
    %c1_i32_109 = arith.constant 1 : i32
    %265 = arith.cmpi eq, %arg0, %c1_i32_109 : i32
    %266 = arith.extui %265 : i1 to i32
    %c0_i32_110 = arith.constant 0 : i32
    %267 = arith.cmpi ne, %266, %c0_i32_110 : i32
    scf.if %267 {
      %268 = vector.broadcast %4 : vector<32x1xf32> to vector<32x32xf32>
      %269 = arith.mulf %263, %268 : vector<32x32xf32>
      %270 = arith.truncf %269 : vector<32x32xf32> to vector<32x32xbf16>
      %c0_111 = arith.constant 0 : index
      %c0_112 = arith.constant 0 : index
      %271 = vector.load %arg17[%c0_111, %c0_112] : memref<32x128xbf16, #tpu.memory_space<vmem>>, vector<32x128xbf16>
      %cst_113 = arith.constant dense<0.000000e+00> : vector<32x128xf32>
      %272 = tpu.matmul %270, %271, %cst_113 {dimension_numbers = #tpu.dot_dimension_numbers<[1], [0], [0], [1], [0, 0, 1, 1], [], []>} : vector<32x32xbf16>, vector<32x128xbf16>, vector<32x128xf32> -> vector<32x128xf32>
      %c0_114 = arith.constant 0 : index
      %c0_115 = arith.constant 0 : index
      %273 = vector.load %arg18[%c0_114, %c0_115] : memref<1x128xf32, #tpu.memory_space<vmem>>, vector<1x128xf32>
      %274 = vector.broadcast %273 : vector<1x128xf32> to vector<32x128xf32>
      %275 = arith.addf %272, %274 : vector<32x128xf32>
      %276 = vector.broadcast %4 : vector<32x1xf32> to vector<32x128xf32>
      %277 = arith.mulf %275, %276 : vector<32x128xf32>
      %c0_116 = arith.constant 0 : index
      %c0_117 = arith.constant 0 : index
      %278 = vector.load %arg19[%c0_116, %c0_117] : memref<32x128xf32, #tpu.memory_space<vmem>>, vector<32x128xf32>
      tpu.vector_store %arg19[%c0_116, %c0_117], %277 {strides = array<i32>} : memref<32x128xf32, #tpu.memory_space<vmem>>, vector<32x128xf32>,
    } else {
    }
    return
  }
  func.func @transform_0(%arg0: i32) -> (i32, i32) {
    %c0_i32 = arith.constant 0 : i32
    %c0_i32_0 = arith.constant 0 : i32
    %c0_i32_1 = arith.constant 0 : i32
    return %c0_i32, %c0_i32_0 : i32, i32
  }
  func.func @transform_1(%arg0: i32) -> (i32, i32) {
    %c0_i32 = arith.constant 0 : i32
    %c0_i32_0 = arith.constant 0 : i32
    %c0_i32_1 = arith.constant 0 : i32
    return %c0_i32, %c0_i32_0 : i32, i32
  }
  func.func @transform_2(%arg0: i32) -> (i32, i32, i32) {
    %c0_i32 = arith.constant 0 : i32
    %c0_i32_0 = arith.constant 0 : i32
    %c0_i32_1 = arith.constant 0 : i32
    %c0_i32_2 = arith.constant 0 : i32
    return %c0_i32, %c0_i32_0, %c0_i32_1 : i32, i32, i32
  }
  func.func @transform_3(%arg0: i32) -> (i32, i32) {
    %c0_i32 = arith.constant 0 : i32
    %c0_i32_0 = arith.constant 0 : i32
    %c0_i32_1 = arith.constant 0 : i32
    return %c0_i32, %c0_i32_0 : i32, i32
  }
  func.func @transform_4(%arg0: i32) -> (i32, i32, i32) {
    %c0_i32 = arith.constant 0 : i32
    %c0_i32_0 = arith.constant 0 : i32
    %c0_i32_1 = arith.constant 0 : i32
    return %arg0, %c0_i32, %c0_i32_0 : i32, i32, i32
  }
  func.func @transform_5(%arg0: i32) -> (i32, i32, i32) {
    %c0_i32 = arith.constant 0 : i32
    %c0_i32_0 = arith.constant 0 : i32
    %c0_i32_1 = arith.constant 0 : i32
    return %arg0, %c0_i32, %c0_i32_0 : i32, i32, i32
  }
  func.func @transform_6(%arg0: i32) -> (i32, i32, i32) {
    %c0_i32 = arith.constant 0 : i32
    %c0_i32_0 = arith.constant 0 : i32
    %c0_i32_1 = arith.constant 0 : i32
    return %arg0, %c0_i32, %c0_i32_0 : i32, i32, i32
  }
  func.func @transform_7(%arg0: i32) -> (i32, i32, i32) {
    %c0_i32 = arith.constant 0 : i32
    %c0_i32_0 = arith.constant 0 : i32
    %c0_i32_1 = arith.constant 0 : i32
    return %arg0, %c0_i32, %c0_i32_0 : i32, i32, i32
  }
  func.func @transform_8(%arg0: i32) -> (i32, i32, i32) {
    %c0_i32 = arith.constant 0 : i32
    %c0_i32_0 = arith.constant 0 : i32
    %c0_i32_1 = arith.constant 0 : i32
    return %arg0, %c0_i32, %c0_i32_0 : i32, i32, i32
  }
  func.func @transform_9(%arg0: i32) -> (i32, i32, i32) {
    %c0_i32 = arith.constant 0 : i32
    %c0_i32_0 = arith.constant 0 : i32
    %c0_i32_1 = arith.constant 0 : i32
    return %arg0, %c0_i32, %c0_i32_0 : i32, i32, i32
  }
  func.func @transform_10(%arg0: i32) -> (i32, i32, i32) {
    %c0_i32 = arith.constant 0 : i32
    %c0_i32_0 = arith.constant 0 : i32
    %c0_i32_1 = arith.constant 0 : i32
    return %arg0, %c0_i32, %c0_i32_0 : i32, i32, i32
  }
  func.func @transform_11(%arg0: i32) -> (i32, i32, i32) {
    %c0_i32 = arith.constant 0 : i32
    %c0_i32_0 = arith.constant 0 : i32
    %c0_i32_1 = arith.constant 0 : i32
    return %arg0, %c0_i32, %c0_i32_0 : i32, i32, i32
  }
  func.func @transform_12(%arg0: i32) -> (i32, i32, i32) {
    %c0_i32 = arith.constant 0 : i32
    %c0_i32_0 = arith.constant 0 : i32
    %c0_i32_1 = arith.constant 0 : i32
    return %arg0, %c0_i32, %c0_i32_0 : i32, i32, i32
  }
  func.func @transform_13(%arg0: i32) -> (i32, i32, i32) {
    %c0_i32 = arith.constant 0 : i32
    %c0_i32_0 = arith.constant 0 : i32
    %c0_i32_1 = arith.constant 0 : i32
    return %arg0, %c0_i32, %c0_i32_0 : i32, i32, i32
  }
  func.func @transform_14(%arg0: i32) -> (i32, i32, i32) {
    %c0_i32 = arith.constant 0 : i32
    %c0_i32_0 = arith.constant 0 : i32
    %c0_i32_1 = arith.constant 0 : i32
    return %arg0, %c0_i32, %c0_i32_0 : i32, i32, i32
  }
  func.func @transform_15(%arg0: i32) -> (i32, i32, i32) {
    %c0_i32 = arith.constant 0 : i32
    %c0_i32_0 = arith.constant 0 : i32
    %c0_i32_1 = arith.constant 0 : i32
    return %arg0, %c0_i32, %c0_i32_0 : i32, i32, i32
  }
  func.func @transform_16(%arg0: i32) -> (i32, i32) {
    %c0_i32 = arith.constant 0 : i32
    %c0_i32_0 = arith.constant 0 : i32
    %c0_i32_1 = arith.constant 0 : i32
    return %c0_i32, %c0_i32_0 : i32, i32
  }
  func.func @transform_17(%arg0: i32) -> (i32, i32) {
    %c0_i32 = arith.constant 0 : i32
    %c0_i32_0 = arith.constant 0 : i32
    %c0_i32_1 = arith.constant 0 : i32
    return %c0_i32, %c0_i32_0 : i32, i32
  }
  func.func @transform_18(%arg0: i32) -> (i32, i32) {
    %c0_i32 = arith.constant 0 : i32
    %c0_i32_0 = arith.constant 0 : i32
    %c0_i32_1 = arith.constant 0 : i32
    return %c0_i32, %c0_i32_0 : i32, i32
  }
}

</mosaic_0001>

<llo_original>
// kernel: tpu_custom_call.1
$region0: #{tpu_custom_call.1}
  #allocation0 [shape = 'u32[]', space=smem, size = 0x4, offset = 0x4, fixed_abs, tag = 'smem constant byte address 0x4 - core index']
  #allocation1 [shape = 'u32[144,128]{1,0:T(1,128)}', space=vmem, size = 0x12000, scoped, tag = 'internal scratch']
  #allocation2 [shape = 'f32[32,32]{1,0:T(8,128)}', space=vmem, size = 0x4000, scoped, tag = 'scratch operand']
  %s0 = inlined_call_operand.vmem [shape: f32[32,32], index: 0, kind: input, shape index: {}]
  %s1 = inlined_call_operand.vmem [shape: f32[32,1], index: 1, kind: input, shape index: {}]
  %s2 = inlined_call_operand.vmem [shape: f32[2,1,16], index: 2, kind: input, shape index: {}]
  %s3 = inlined_call_operand.vmem [shape: s32[32,1], index: 3, kind: input, shape index: {}]
  %s4 = inlined_call_operand.vmem [shape: bf16[2,32,768], index: 4, kind: input, shape index: {}]
  %s5 = inlined_call_operand.vmem [shape: f32[2,1,768], index: 5, kind: input, shape index: {}]
  %s6 = inlined_call_operand.vmem [shape: bf16[2,256,32], index: 6, kind: input, shape index: {}]
  %s7 = inlined_call_operand.vmem [shape: f32[2,1,32], index: 7, kind: input, shape index: {}]
  %s8 = inlined_call_operand.vmem [shape: f32[2,1,32], index: 8, kind: input, shape index: {}]
  %s9 = inlined_call_operand.vmem [shape: f32[2,1,32], index: 9, kind: input, shape index: {}]
  %s10 = inlined_call_operand.vmem [shape: bf16[2,96,64], index: 10, kind: input, shape index: {}]
  %s11 = inlined_call_operand.vmem [shape: f32[2,1,64], index: 11, kind: input, shape index: {}]
  %s12 = inlined_call_operand.vmem [shape: bf16[2,192,32], index: 12, kind: input, shape index: {}]
  %s13 = inlined_call_operand.vmem [shape: f32[2,1,32], index: 13, kind: input, shape index: {}]
  %s14 = inlined_call_operand.vmem [shape: f32[2,1,32], index: 14, kind: input, shape index: {}]
  %s15 = inlined_call_operand.vmem [shape: f32[2,1,32], index: 15, kind: input, shape index: {}]
  %s16 = inlined_call_operand.vmem [shape: bf16[32,128], index: 16, kind: input, shape index: {}]
  %s17 = inlined_call_operand.vmem [shape: f32[1,128], index: 17, kind: input, shape index: {}]
  %s18 = inlined_call_operand.hbm [shape: f32[32,128], index: 18, kind: output, shape index: {}]
  %s19 = sld [smem:[#allocation0]]
  $region113: #{tpu_custom_call.1} parent=0
    _
  %s21 = ssub.s32 1, %s19
  %s22 = scalar_select 0, %s21, %s19
  $region1: #{tpu_custom_call.1} parent=0
    #allocation3 [shape = 'u8[16384]{0}', space=vmem, size = 0x4000, scoped, tag = 'output window, operand 0, single buffered']
    #allocation4 [shape = 's32[2]{0}', space=sflag, size = 0x8, scoped, tag = 'scoped memory for tpu_custom_call.1']
    %23 = vsyncpa [#allocation4], 0
    loop: start=0, step=1, limit=4
    $region2: #{tpu_custom_call.1} parent=1 // loop_pre_header
      _
    $region3: #{tpu_custom_call.1} parent=1 // loop_header
      %s25 = sphi 0, %s29
      %p26 = scmp.ge.s32.totalorder %s25, 4
      %s33 = sphi 0, %s33
      %s35 = sphi 0, %s33
      %s36 = sphi 0, %s35
      %s50 = sphi 0, %s36
      %s54 = sphi 0, %s54
      %s56 = sphi 0, %s54
      %s57 = sphi 0, %s56
      %s71 = sphi 0, %s57
      %s75 = sphi 0, %s75
      %s77 = sphi 0, %s75
      %s78 = sphi 0, %s77
      %s92 = sphi 0, %s78
      %s96 = sphi 0, %s96
      %s98 = sphi 0, %s96
      %s99 = sphi 0, %s98
      %s113 = sphi 0, %s99
      %s119 = sphi 0, %s121
      %s122 = sphi 0, %s119
      %s123 = sphi 0, %s122
      %s139 = sphi 0, %s123
      %s145 = sphi 0, %s147
      %s148 = sphi 0, %s145
      %s149 = sphi 0, %s148
      %s165 = sphi 0, %s149
      %s171 = sphi 0, %s173
      %s174 = sphi 0, %s171
      %s175 = sphi 0, %s174
      %s191 = sphi 0, %s175
      %s197 = sphi 0, %s199
      %s200 = sphi 0, %s197
      %s201 = sphi 0, %s200
      %s217 = sphi 0, %s201
      %s223 = sphi 0, %s225
      %s226 = sphi 0, %s223
      %s227 = sphi 0, %s226
      %s243 = sphi 0, %s227
      %s249 = sphi 0, %s251
      %s252 = sphi 0, %s249
      %s253 = sphi 0, %s252
      %s269 = sphi 0, %s253
      %s275 = sphi 0, %s277
      %s278 = sphi 0, %s275
      %s279 = sphi 0, %s278
      %s295 = sphi 0, %s279
      %s301 = sphi 0, %s303
      %s304 = sphi 0, %s301
      %s305 = sphi 0, %s304
      %s321 = sphi 0, %s305
      %s327 = sphi 0, %s329
      %s330 = sphi 0, %s327
      %s331 = sphi 0, %s330
      %s347 = sphi 0, %s331
      %s353 = sphi 0, %s355
      %s356 = sphi 0, %s353
      %s357 = sphi 0, %s356
      %s373 = sphi 0, %s357
      %s379 = sphi 0, %s381
      %s382 = sphi 0, %s379
      %s383 = sphi 0, %s382
      %s399 = sphi 0, %s383
      %s405 = sphi 0, %s407
      %s408 = sphi 0, %s405
      %s409 = sphi 0, %s408
      %s425 = sphi 0, %s409
      %s429 = sphi 0, %s429
      %s431 = sphi 0, %s429
      %s432 = sphi 0, %s431
      %s446 = sphi 0, %s432
      %s450 = sphi 0, %s450
      %s452 = sphi 0, %s450
      %s453 = sphi 0, %s452
      %s467 = sphi 0, %s453
      %s471 = sphi 0, %s471
      %s473 = sphi 0, %s471
      %s474 = sphi 0, %s473
      %s488 = sphi 0, %s474
    $region4: #{tpu_custom_call.1} parent=1 // loop_header_branch
      %28 = sbr.rel (%p26) target = $region8
    $region5: #{tpu_custom_call.1} parent=1 // loop_body
      %s30 = ssub.s32 %s25, 1
      %s31 = ssub.s32 %s25, 2
      %s32 = sadd.s32 %s25, 1
      %s34 = sadd.s32 %s33, 1
      %p37 = scmp.eq.s32.totalorder %s25, 1
      %p38 = scmp.ne.s32.totalorder %s33, %s35
      %p39 = scmp.eq.s32.totalorder %s25, 0
      %p40 = por %p38, %p39
      %p41 = scmp.ne.s32.totalorder %s33, %s35
      %p42 = scmp.eq.s32.totalorder %s30, 1
      %p43 = por %p41, %p42
      %p44 = scmp.ne.s32.totalorder %s35, %s36
      %p45 = scmp.eq.s32.totalorder %s30, 0
      %p46 = por %p44, %p45
      %p47 = scmp.ne.s32.totalorder %s35, %s36
      %p48 = scmp.eq.s32.totalorder %s31, 1
      %p49 = por %p47, %p48
      %p51 = scmp.ne.s32.totalorder %s36, %s50
      %p52 = scmp.eq.s32.totalorder %s31, 0
      %p53 = por %p51, %p52
      %s55 = sadd.s32 %s54, 1
      %p58 = scmp.eq.s32.totalorder %s25, 1
      %p59 = scmp.ne.s32.totalorder %s54, %s56
      %p60 = scmp.eq.s32.totalorder %s25, 0
      %p61 = por %p59, %p60
      %p62 = scmp.ne.s32.totalorder %s54, %s56
      %p63 = scmp.eq.s32.totalorder %s30, 1
      %p64 = por %p62, %p63
      %p65 = scmp.ne.s32.totalorder %s56, %s57
      %p66 = scmp.eq.s32.totalorder %s30, 0
      %p67 = por %p65, %p66
      %p68 = scmp.ne.s32.totalorder %s56, %s57
      %p69 = scmp.eq.s32.totalorder %s31, 1
      %p70 = por %p68, %p69
      %p72 = scmp.ne.s32.totalorder %s57, %s71
      %p73 = scmp.eq.s32.totalorder %s31, 0
      %p74 = por %p72, %p73
      %s76 = sadd.s32 %s75, 1
      %p79 = scmp.eq.s32.totalorder %s25, 1
      %p80 = scmp.ne.s32.totalorder %s75, %s77
      %p81 = scmp.eq.s32.totalorder %s25, 0
      %p82 = por %p80, %p81
      %p83 = scmp.ne.s32.totalorder %s75, %s77
      %p84 = scmp.eq.s32.totalorder %s30, 1
      %p85 = por %p83, %p84
      %p86 = scmp.ne.s32.totalorder %s77, %s78
      %p87 = scmp.eq.s32.totalorder %s30, 0
      %p88 = por %p86, %p87
      %p89 = scmp.ne.s32.totalorder %s77, %s78
      %p90 = scmp.eq.s32.totalorder %s31, 1
      %p91 = por %p89, %p90
      %p93 = scmp.ne.s32.totalorder %s78, %s92
      %p94 = scmp.eq.s32.totalorder %s31, 0
      %p95 = por %p93, %p94
      %s97 = sadd.s32 %s96, 1
      %p100 = scmp.eq.s32.totalorder %s25, 1
      %p101 = scmp.ne.s32.totalorder %s96, %s98
      %p102 = scmp.eq.s32.totalorder %s25, 0
      %p103 = por %p101, %p102
      %p104 = scmp.ne.s32.totalorder %s96, %s98
      %p105 = scmp.eq.s32.totalorder %s30, 1
      %p106 = por %p104, %p105
      %p107 = scmp.ne.s32.totalorder %s98, %s99
      %p108 = scmp.eq.s32.totalorder %s30, 0
      %p109 = por %p107, %p108
      %p110 = scmp.ne.s32.totalorder %s98, %s99
      %p111 = scmp.eq.s32.totalorder %s31, 1
      %p112 = por %p110, %p111
      %p114 = scmp.ne.s32.totalorder %s99, %s113
      %p115 = scmp.eq.s32.totalorder %s31, 0
      %p116 = por %p114, %p115
      %s117 = ssub.s32 %s25, %s32
      %p118 = scmp.eq.s32.totalorder %s117, 0
      %s120 = sadd.s32 %s119, 1
      %s121 = scalar_select %p118, %s119, %s120
      %p124 = pneg %p118
      %p125 = scmp.eq.s32.totalorder %s25, 1
      %p126 = por %p124, %p125
      %p127 = scmp.ne.s32.totalorder %s119, %s122
      %p128 = scmp.eq.s32.totalorder %s25, 0
      %p129 = por %p127, %p128
      %p130 = scmp.ne.s32.totalorder %s119, %s122
      %p131 = scmp.eq.s32.totalorder %s30, 1
      %p132 = por %p130, %p131
      %p133 = scmp.ne.s32.totalorder %s122, %s123
      %p134 = scmp.eq.s32.totalorder %s30, 0
      %p135 = por %p133, %p134
      %p136 = scmp.ne.s32.totalorder %s122, %s123
      %p137 = scmp.eq.s32.totalorder %s31, 1
      %p138 = por %p136, %p137
      %p140 = scmp.ne.s32.totalorder %s123, %s139
      %p141 = scmp.eq.s32.totalorder %s31, 0
      %p142 = por %p140, %p141
      %s143 = ssub.s32 %s25, %s32
      %p144 = scmp.eq.s32.totalorder %s143, 0
      %s146 = sadd.s32 %s145, 1
      %s147 = scalar_select %p144, %s145, %s146
      %p150 = pneg %p144
      %p151 = scmp.eq.s32.totalorder %s25, 1
      %p152 = por %p150, %p151
      %p153 = scmp.ne.s32.totalorder %s145, %s148
      %p154 = scmp.eq.s32.totalorder %s25, 0
      %p155 = por %p153, %p154
      %p156 = scmp.ne.s32.totalorder %s145, %s148
      %p157 = scmp.eq.s32.totalorder %s30, 1
      %p158 = por %p156, %p157
      %p159 = scmp.ne.s32.totalorder %s148, %s149
      %p160 = scmp.eq.s32.totalorder %s30, 0
      %p161 = por %p159, %p160
      %p162 = scmp.ne.s32.totalorder %s148, %s149
      %p163 = scmp.eq.s32.totalorder %s31, 1
      %p164 = por %p162, %p163
      %p166 = scmp.ne.s32.totalorder %s149, %s165
      %p167 = scmp.eq.s32.totalorder %s31, 0
      %p168 = por %p166, %p167
      %s169 = ssub.s32 %s25, %s32
      %p170 = scmp.eq.s32.totalorder %s169, 0
      %s172 = sadd.s32 %s171, 1
      %s173 = scalar_select %p170, %s171, %s172
      %p176 = pneg %p170
      %p177 = scmp.eq.s32.totalorder %s25, 1
      %p178 = por %p176, %p177
      %p179 = scmp.ne.s32.totalorder %s171, %s174
      %p180 = scmp.eq.s32.totalorder %s25, 0
      %p181 = por %p179, %p180
      %p182 = scmp.ne.s32.totalorder %s171, %s174
      %p183 = scmp.eq.s32.totalorder %s30, 1
      %p184 = por %p182, %p183
      %p185 = scmp.ne.s32.totalorder %s174, %s175
      %p186 = scmp.eq.s32.totalorder %s30, 0
      %p187 = por %p185, %p186
      %p188 = scmp.ne.s32.totalorder %s174, %s175
      %p189 = scmp.eq.s32.totalorder %s31, 1
      %p190 = por %p188, %p189
      %p192 = scmp.ne.s32.totalorder %s175, %s191
      %p193 = scmp.eq.s32.totalorder %s31, 0
      %p194 = por %p192, %p193
      %s195 = ssub.s32 %s25, %s32
      %p196 = scmp.eq.s32.totalorder %s195, 0
      %s198 = sadd.s32 %s197, 1
      %s199 = scalar_select %p196, %s197, %s198
      %p202 = pneg %p196
      %p203 = scmp.eq.s32.totalorder %s25, 1
      %p204 = por %p202, %p203
      %p205 = scmp.ne.s32.totalorder %s197, %s200
      %p206 = scmp.eq.s32.totalorder %s25, 0
      %p207 = por %p205, %p206
      %p208 = scmp.ne.s32.totalorder %s197, %s200
      %p209 = scmp.eq.s32.totalorder %s30, 1
      %p210 = por %p208, %p209
      %p211 = scmp.ne.s32.totalorder %s200, %s201
      %p212 = scmp.eq.s32.totalorder %s30, 0
      %p213 = por %p211, %p212
      %p214 = scmp.ne.s32.totalorder %s200, %s201
      %p215 = scmp.eq.s32.totalorder %s31, 1
      %p216 = por %p214, %p215
      %p218 = scmp.ne.s32.totalorder %s201, %s217
      %p219 = scmp.eq.s32.totalorder %s31, 0
      %p220 = por %p218, %p219
      %s221 = ssub.s32 %s25, %s32
      %p222 = scmp.eq.s32.totalorder %s221, 0
      %s224 = sadd.s32 %s223, 1
      %s225 = scalar_select %p222, %s223, %s224
      %p228 = pneg %p222
      %p229 = scmp.eq.s32.totalorder %s25, 1
      %p230 = por %p228, %p229
      %p231 = scmp.ne.s32.totalorder %s223, %s226
      %p232 = scmp.eq.s32.totalorder %s25, 0
      %p233 = por %p231, %p232
      %p234 = scmp.ne.s32.totalorder %s223, %s226
      %p235 = scmp.eq.s32.totalorder %s30, 1
      %p236 = por %p234, %p235
      %p237 = scmp.ne.s32.totalorder %s226, %s227
      %p238 = scmp.eq.s32.totalorder %s30, 0
      %p239 = por %p237, %p238
      %p240 = scmp.ne.s32.totalorder %s226, %s227
      %p241 = scmp.eq.s32.totalorder %s31, 1
      %p242 = por %p240, %p241
      %p244 = scmp.ne.s32.totalorder %s227, %s243
      %p245 = scmp.eq.s32.totalorder %s31, 0
      %p246 = por %p244, %p245
      %s247 = ssub.s32 %s25, %s32
      %p248 = scmp.eq.s32.totalorder %s247, 0
      %s250 = sadd.s32 %s249, 1
      %s251 = scalar_select %p248, %s249, %s250
      %p254 = pneg %p248
      %p255 = scmp.eq.s32.totalorder %s25, 1
      %p256 = por %p254, %p255
      %p257 = scmp.ne.s32.totalorder %s249, %s252
      %p258 = scmp.eq.s32.totalorder %s25, 0
      %p259 = por %p257, %p258
      %p260 = scmp.ne.s32.totalorder %s249, %s252
      %p261 = scmp.eq.s32.totalorder %s30, 1
      %p262 = por %p260, %p261
      %p263 = scmp.ne.s32.totalorder %s252, %s253
      %p264 = scmp.eq.s32.totalorder %s30, 0
      %p265 = por %p263, %p264
      %p266 = scmp.ne.s32.totalorder %s252, %s253
      %p267 = scmp.eq.s32.totalorder %s31, 1
      %p268 = por %p266, %p267
      %p270 = scmp.ne.s32.totalorder %s253, %s269
      %p271 = scmp.eq.s32.totalorder %s31, 0
      %p272 = por %p270, %p271
      %s273 = ssub.s32 %s25, %s32
      %p274 = scmp.eq.s32.totalorder %s273, 0
      %s276 = sadd.s32 %s275, 1
      %s277 = scalar_select %p274, %s275, %s276
      %p280 = pneg %p274
      %p281 = scmp.eq.s32.totalorder %s25, 1
      %p282 = por %p280, %p281
      %p283 = scmp.ne.s32.totalorder %s275, %s278
      %p284 = scmp.eq.s32.totalorder %s25, 0
      %p285 = por %p283, %p284
      %p286 = scmp.ne.s32.totalorder %s275, %s278
      %p287 = scmp.eq.s32.totalorder %s30, 1
      %p288 = por %p286, %p287
      %p289 = scmp.ne.s32.totalorder %s278, %s279
      %p290 = scmp.eq.s32.totalorder %s30, 0
      %p291 = por %p289, %p290
      %p292 = scmp.ne.s32.totalorder %s278, %s279
      %p293 = scmp.eq.s32.totalorder %s31, 1
      %p294 = por %p292, %p293
      %p296 = scmp.ne.s32.totalorder %s279, %s295
      %p297 = scmp.eq.s32.totalorder %s31, 0
      %p298 = por %p296, %p297
      %s299 = ssub.s32 %s25, %s32
      %p300 = scmp.eq.s32.totalorder %s299, 0
      %s302 = sadd.s32 %s301, 1
      %s303 = scalar_select %p300, %s301, %s302
      %p306 = pneg %p300
      %p307 = scmp.eq.s32.totalorder %s25, 1
      %p308 = por %p306, %p307
      %p309 = scmp.ne.s32.totalorder %s301, %s304
      %p310 = scmp.eq.s32.totalorder %s25, 0
      %p311 = por %p309, %p310
      %p312 = scmp.ne.s32.totalorder %s301, %s304
      %p313 = scmp.eq.s32.totalorder %s30, 1
      %p314 = por %p312, %p313
      %p315 = scmp.ne.s32.totalorder %s304, %s305
      %p316 = scmp.eq.s32.totalorder %s30, 0
      %p317 = por %p315, %p316
      %p318 = scmp.ne.s32.totalorder %s304, %s305
      %p319 = scmp.eq.s32.totalorder %s31, 1
      %p320 = por %p318, %p319
      %p322 = scmp.ne.s32.totalorder %s305, %s321
      %p323 = scmp.eq.s32.totalorder %s31, 0
      %p324 = por %p322, %p323
      %s325 = ssub.s32 %s25, %s32
      %p326 = scmp.eq.s32.totalorder %s325, 0
      %s328 = sadd.s32 %s327, 1
      %s329 = scalar_select %p326, %s327, %s328
      %p332 = pneg %p326
      %p333 = scmp.eq.s32.totalorder %s25, 1
      %p334 = por %p332, %p333
      %p335 = scmp.ne.s32.totalorder %s327, %s330
      %p336 = scmp.eq.s32.totalorder %s25, 0
      %p337 = por %p335, %p336
      %p338 = scmp.ne.s32.totalorder %s327, %s330
      %p339 = scmp.eq.s32.totalorder %s30, 1
      %p340 = por %p338, %p339
      %p341 = scmp.ne.s32.totalorder %s330, %s331
      %p342 = scmp.eq.s32.totalorder %s30, 0
      %p343 = por %p341, %p342
      %p344 = scmp.ne.s32.totalorder %s330, %s331
      %p345 = scmp.eq.s32.totalorder %s31, 1
      %p346 = por %p344, %p345
      %p348 = scmp.ne.s32.totalorder %s331, %s347
      %p349 = scmp.eq.s32.totalorder %s31, 0
      %p350 = por %p348, %p349
      %s351 = ssub.s32 %s25, %s32
      %p352 = scmp.eq.s32.totalorder %s351, 0
      %s354 = sadd.s32 %s353, 1
      %s355 = scalar_select %p352, %s353, %s354
      %p358 = pneg %p352
      %p359 = scmp.eq.s32.totalorder %s25, 1
      %p360 = por %p358, %p359
      %p361 = scmp.ne.s32.totalorder %s353, %s356
      %p362 = scmp.eq.s32.totalorder %s25, 0
      %p363 = por %p361, %p362
      %p364 = scmp.ne.s32.totalorder %s353, %s356
      %p365 = scmp.eq.s32.totalorder %s30, 1
      %p366 = por %p364, %p365
      %p367 = scmp.ne.s32.totalorder %s356, %s357
      %p368 = scmp.eq.s32.totalorder %s30, 0
      %p369 = por %p367, %p368
      %p370 = scmp.ne.s32.totalorder %s356, %s357
      %p371 = scmp.eq.s32.totalorder %s31, 1
      %p372 = por %p370, %p371
      %p374 = scmp.ne.s32.totalorder %s357, %s373
      %p375 = scmp.eq.s32.totalorder %s31, 0
      %p376 = por %p374, %p375
      %s377 = ssub.s32 %s25, %s32
      %p378 = scmp.eq.s32.totalorder %s377, 0
      %s380 = sadd.s32 %s379, 1
      %s381 = scalar_select %p378, %s379, %s380
      %p384 = pneg %p378
      %p385 = scmp.eq.s32.totalorder %s25, 1
      %p386 = por %p384, %p385
      %p387 = scmp.ne.s32.totalorder %s379, %s382
      %p388 = scmp.eq.s32.totalorder %s25, 0
      %p389 = por %p387, %p388
      %p390 = scmp.ne.s32.totalorder %s379, %s382
      %p391 = scmp.eq.s32.totalorder %s30, 1
      %p392 = por %p390, %p391
      %p393 = scmp.ne.s32.totalorder %s382, %s383
      %p394 = scmp.eq.s32.totalorder %s30, 0
      %p395 = por %p393, %p394
      %p396 = scmp.ne.s32.totalorder %s382, %s383
      %p397 = scmp.eq.s32.totalorder %s31, 1
      %p398 = por %p396, %p397
      %p400 = scmp.ne.s32.totalorder %s383, %s399
      %p401 = scmp.eq.s32.totalorder %s31, 0
      %p402 = por %p400, %p401
      %s403 = ssub.s32 %s25, %s32
      %p404 = scmp.eq.s32.totalorder %s403, 0
      %s406 = sadd.s32 %s405, 1
      %s407 = scalar_select %p404, %s405, %s406
      %p410 = pneg %p404
      %p411 = scmp.eq.s32.totalorder %s25, 1
      %p412 = por %p410, %p411
      %p413 = scmp.ne.s32.totalorder %s405, %s408
      %p414 = scmp.eq.s32.totalorder %s25, 0
      %p415 = por %p413, %p414
      %p416 = scmp.ne.s32.totalorder %s405, %s408
      %p417 = scmp.eq.s32.totalorder %s30, 1
      %p418 = por %p416, %p417
      %p419 = scmp.ne.s32.totalorder %s408, %s409
      %p420 = scmp.eq.s32.totalorder %s30, 0
      %p421 = por %p419, %p420
      %p422 = scmp.ne.s32.totalorder %s408, %s409
      %p423 = scmp.eq.s32.totalorder %s31, 1
      %p424 = por %p422, %p423
      %p426 = scmp.ne.s32.totalorder %s409, %s425
      %p427 = scmp.eq.s32.totalorder %s31, 0
      %p428 = por %p426, %p427
      %s430 = sadd.s32 %s429, 1
      %p433 = scmp.eq.s32.totalorder %s25, 1
      %p434 = scmp.ne.s32.totalorder %s429, %s431
      %p435 = scmp.eq.s32.totalorder %s25, 0
      %p436 = por %p434, %p435
      %p437 = scmp.ne.s32.totalorder %s429, %s431
      %p438 = scmp.eq.s32.totalorder %s30, 1
      %p439 = por %p437, %p438
      %p440 = scmp.ne.s32.totalorder %s431, %s432
      %p441 = scmp.eq.s32.totalorder %s30, 0
      %p442 = por %p440, %p441
      %p443 = scmp.ne.s32.totalorder %s431, %s432
      %p444 = scmp.eq.s32.totalorder %s31, 1
      %p445 = por %p443, %p444
      %p447 = scmp.ne.s32.totalorder %s432, %s446
      %p448 = scmp.eq.s32.totalorder %s31, 0
      %p449 = por %p447, %p448
      %s451 = sadd.s32 %s450, 1
      %p454 = scmp.eq.s32.totalorder %s25, 1
      %p455 = scmp.ne.s32.totalorder %s450, %s452
      %p456 = scmp.eq.s32.totalorder %s25, 0
      %p457 = por %p455, %p456
      %p458 = scmp.ne.s32.totalorder %s450, %s452
      %p459 = scmp.eq.s32.totalorder %s30, 1
      %p460 = por %p458, %p459
      %p461 = scmp.ne.s32.totalorder %s452, %s453
      %p462 = scmp.eq.s32.totalorder %s30, 0
      %p463 = por %p461, %p462
      %p464 = scmp.ne.s32.totalorder %s452, %s453
      %p465 = scmp.eq.s32.totalorder %s31, 1
      %p466 = por %p464, %p465
      %p468 = scmp.ne.s32.totalorder %s453, %s467
      %p469 = scmp.eq.s32.totalorder %s31, 0
      %p470 = por %p468, %p469
      %s472 = sadd.s32 %s471, 1
      %p475 = scmp.eq.s32.totalorder %s25, 1
      %p476 = scmp.ne.s32.totalorder %s471, %s473
      %p477 = scmp.eq.s32.totalorder %s25, 0
      %p478 = por %p476, %p477
      %p479 = scmp.ne.s32.totalorder %s471, %s473
      %p480 = scmp.eq.s32.totalorder %s30, 1
      %p481 = por %p479, %p480
      %p482 = scmp.ne.s32.totalorder %s473, %s474
      %p483 = scmp.eq.s32.totalorder %s30, 0
      %p484 = por %p482, %p483
      %p485 = scmp.ne.s32.totalorder %s473, %s474
      %p486 = scmp.eq.s32.totalorder %s31, 1
      %p487 = por %p485, %p486
      %p489 = scmp.ne.s32.totalorder %s474, %s488
      %p490 = scmp.eq.s32.totalorder %s31, 0
      %p491 = por %p489, %p490
      %p492 = scmp.le.s32.totalorder 1, %s25
      %p493 = scmp.lt.s32.totalorder %s25, 3
      %p494 = pnand %p492, %p493
      %p495 = pneg %p494
      // Predicated region
      $region9: #{tpu_custom_call.1} parent=5 // pred_check
        _
      $region10: #{tpu_custom_call.1} parent=5 // pred_check_branch
        %497 = sbr.rel (%p494) target = $region12
      $region11: #{tpu_custom_call.1} parent=5 // pred_region
        %s498 = ssub.s32 %s25, 1
        // Predicated region
        $region13: #{tpu_custom_call.1} parent=11 // pred_check
          %p499 = pneg %p46
        $region14: #{tpu_custom_call.1} parent=11 // pred_check_branch
          %501 = sbr.rel (%p499) target = $region16
        $region15: #{tpu_custom_call.1} parent=11 // pred_region
          _
        $region16: #{tpu_custom_call.1} parent=11 // pred_fallthru
          _
        // Predicated region
        $region17: #{tpu_custom_call.1} parent=11 // pred_check
          %p502 = pneg %p67
        $region18: #{tpu_custom_call.1} parent=11 // pred_check_branch
          %504 = sbr.rel (%p502) target = $region20
        $region19: #{tpu_custom_call.1} parent=11 // pred_region
          _
        $region20: #{tpu_custom_call.1} parent=11 // pred_fallthru
          _
        // Predicated region
        $region21: #{tpu_custom_call.1} parent=11 // pred_check
          %p505 = pneg %p88
        $region22: #{tpu_custom_call.1} parent=11 // pred_check_branch
          %507 = sbr.rel (%p505) target = $region24
        $region23: #{tpu_custom_call.1} parent=11 // pred_region
          _
        $region24: #{tpu_custom_call.1} parent=11 // pred_fallthru
          _
        // Predicated region
        $region25: #{tpu_custom_call.1} parent=11 // pred_check
          %p508 = pneg %p109
        $region26: #{tpu_custom_call.1} parent=11 // pred_check_branch
          %510 = sbr.rel (%p508) target = $region28
        $region27: #{tpu_custom_call.1} parent=11 // pred_region
          _
        $region28: #{tpu_custom_call.1} parent=11 // pred_fallthru
          _
        // Predicated region
        $region29: #{tpu_custom_call.1} parent=11 // pred_check
          %p511 = pneg %p442
        $region30: #{tpu_custom_call.1} parent=11 // pred_check_branch
          %513 = sbr.rel (%p511) target = $region32
        $region31: #{tpu_custom_call.1} parent=11 // pred_region
          _
        $region32: #{tpu_custom_call.1} parent=11 // pred_fallthru
          _
        // Predicated region
        $region33: #{tpu_custom_call.1} parent=11 // pred_check
          %p514 = pneg %p463
        $region34: #{tpu_custom_call.1} parent=11 // pred_check_branch
          %516 = sbr.rel (%p514) target = $region36
        $region35: #{tpu_custom_call.1} parent=11 // pred_region
          _
        $region36: #{tpu_custom_call.1} parent=11 // pred_fallthru
          _
      $region12: #{tpu_custom_call.1} parent=5 // pred_fallthru
        _
      %p517 = scmp.lt.s32.totalorder %s25, 2
      // Predicated region
      $region37: #{tpu_custom_call.1} parent=5 // pred_check
        %p518 = pneg %p517
      $region38: #{tpu_custom_call.1} parent=5 // pred_check_branch
        %520 = sbr.rel (%p518) target = $region40
      $region39: #{tpu_custom_call.1} parent=5 // pred_region
        // Predicated region
        $region41: #{tpu_custom_call.1} parent=39 // pred_check
          %p521 = pneg %p129
        $region42: #{tpu_custom_call.1} parent=39 // pred_check_branch
          %523 = sbr.rel (%p521) target = $region44
        $region43: #{tpu_custom_call.1} parent=39 // pred_region
          %p524 = scmp.lt.s32.totalorder %s25, 1
          %s525 = scalar_select %p524, %s25, 1
          %s526 = smul.addr %s525, 24
          %s527 = smul.addr %s526, 4
          %s528 = scalar_lea.vmem %s4, %s527
        $region44: #{tpu_custom_call.1} parent=39 // pred_fallthru
          _
        // Predicated region
        $region45: #{tpu_custom_call.1} parent=39 // pred_check
          %p529 = pneg %p155
        $region46: #{tpu_custom_call.1} parent=39 // pred_check_branch
          %531 = sbr.rel (%p529) target = $region48
        $region47: #{tpu_custom_call.1} parent=39 // pred_region
          %p532 = scmp.lt.s32.totalorder %s25, 1
          %s533 = scalar_select %p532, %s25, 1
          %s534 = smul.addr %s533, 6
          %s535 = scalar_lea.vmem %s5, %s534
        $region48: #{tpu_custom_call.1} parent=39 // pred_fallthru
          _
        // Predicated region
        $region49: #{tpu_custom_call.1} parent=39 // pred_check
          %p536 = pneg %p181
        $region50: #{tpu_custom_call.1} parent=39 // pred_check_branch
          %538 = sbr.rel (%p536) target = $region52
        $region51: #{tpu_custom_call.1} parent=39 // pred_region
          %p539 = scmp.lt.s32.totalorder %s25, 1
          %s540 = scalar_select %p539, %s25, 1
          %s541 = smul.addr %s540, 32
          %s542 = smul.addr %s541, 4
          %s543 = scalar_lea.vmem %s6, %s542
        $region52: #{tpu_custom_call.1} parent=39 // pred_fallthru
          _
        // Predicated region
        $region53: #{tpu_custom_call.1} parent=39 // pred_check
          %p544 = pneg %p207
        $region54: #{tpu_custom_call.1} parent=39 // pred_check_branch
          %546 = sbr.rel (%p544) target = $region56
        $region55: #{tpu_custom_call.1} parent=39 // pred_region
          %p547 = scmp.lt.s32.totalorder %s25, 1
          %s548 = scalar_select %p547, %s25, 1
          %s549 = scalar_lea.vmem %s7, %s548
        $region56: #{tpu_custom_call.1} parent=39 // pred_fallthru
          _
        // Predicated region
        $region57: #{tpu_custom_call.1} parent=39 // pred_check
          %p550 = pneg %p233
        $region58: #{tpu_custom_call.1} parent=39 // pred_check_branch
          %552 = sbr.rel (%p550) target = $region60
        $region59: #{tpu_custom_call.1} parent=39 // pred_region
          %p553 = scmp.lt.s32.totalorder %s25, 1
          %s554 = scalar_select %p553, %s25, 1
          %s555 = scalar_lea.vmem %s8, %s554
        $region60: #{tpu_custom_call.1} parent=39 // pred_fallthru
          _
        // Predicated region
        $region61: #{tpu_custom_call.1} parent=39 // pred_check
          %p556 = pneg %p259
        $region62: #{tpu_custom_call.1} parent=39 // pred_check_branch
          %558 = sbr.rel (%p556) target = $region64
        $region63: #{tpu_custom_call.1} parent=39 // pred_region
          %p559 = scmp.lt.s32.totalorder %s25, 1
          %s560 = scalar_select %p559, %s25, 1
          %s561 = scalar_lea.vmem %s9, %s560
        $region64: #{tpu_custom_call.1} parent=39 // pred_fallthru
          _
        // Predicated region
        $region65: #{tpu_custom_call.1} parent=39 // pred_check
          %p562 = pneg %p285
        $region66: #{tpu_custom_call.1} parent=39 // pred_check_branch
          %564 = sbr.rel (%p562) target = $region68
        $region67: #{tpu_custom_call.1} parent=39 // pred_region
          %p565 = scmp.lt.s32.totalorder %s25, 1
          %s566 = scalar_select %p565, %s25, 1
          %s567 = smul.addr %s566, 12
          %s568 = smul.addr %s567, 4
          %s569 = scalar_lea.vmem %s10, %s568
        $region68: #{tpu_custom_call.1} parent=39 // pred_fallthru
          _
        // Predicated region
        $region69: #{tpu_custom_call.1} parent=39 // pred_check
          %p570 = pneg %p311
        $region70: #{tpu_custom_call.1} parent=39 // pred_check_branch
          %572 = sbr.rel (%p570) target = $region72
        $region71: #{tpu_custom_call.1} parent=39 // pred_region
          %p573 = scmp.lt.s32.totalorder %s25, 1
          %s574 = scalar_select %p573, %s25, 1
          %s575 = scalar_lea.vmem %s11, %s574
        $region72: #{tpu_custom_call.1} parent=39 // pred_fallthru
          _
        // Predicated region
        $region73: #{tpu_custom_call.1} parent=39 // pred_check
          %p576 = pneg %p337
        $region74: #{tpu_custom_call.1} parent=39 // pred_check_branch
          %578 = sbr.rel (%p576) target = $region76
        $region75: #{tpu_custom_call.1} parent=39 // pred_region
          %p579 = scmp.lt.s32.totalorder %s25, 1
          %s580 = scalar_select %p579, %s25, 1
          %s581 = smul.addr %s580, 24
          %s582 = smul.addr %s581, 4
          %s583 = scalar_lea.vmem %s12, %s582
        $region76: #{tpu_custom_call.1} parent=39 // pred_fallthru
          _
        // Predicated region
        $region77: #{tpu_custom_call.1} parent=39 // pred_check
          %p584 = pneg %p363
        $region78: #{tpu_custom_call.1} parent=39 // pred_check_branch
          %586 = sbr.rel (%p584) target = $region80
        $region79: #{tpu_custom_call.1} parent=39 // pred_region
          %p587 = scmp.lt.s32.totalorder %s25, 1
          %s588 = scalar_select %p587, %s25, 1
          %s589 = scalar_lea.vmem %s13, %s588
        $region80: #{tpu_custom_call.1} parent=39 // pred_fallthru
          _
        // Predicated region
        $region81: #{tpu_custom_call.1} parent=39 // pred_check
          %p590 = pneg %p389
        $region82: #{tpu_custom_call.1} parent=39 // pred_check_branch
          %592 = sbr.rel (%p590) target = $region84
        $region83: #{tpu_custom_call.1} parent=39 // pred_region
          %p593 = scmp.lt.s32.totalorder %s25, 1
          %s594 = scalar_select %p593, %s25, 1
          %s595 = scalar_lea.vmem %s14, %s594
        $region84: #{tpu_custom_call.1} parent=39 // pred_fallthru
          _
        // Predicated region
        $region85: #{tpu_custom_call.1} parent=39 // pred_check
          %p596 = pneg %p415
        $region86: #{tpu_custom_call.1} parent=39 // pred_check_branch
          %598 = sbr.rel (%p596) target = $region88
        $region87: #{tpu_custom_call.1} parent=39 // pred_region
          %p599 = scmp.lt.s32.totalorder %s25, 1
          %s600 = scalar_select %p599, %s25, 1
          %s601 = scalar_lea.vmem %s15, %s600
        $region88: #{tpu_custom_call.1} parent=39 // pred_fallthru
          _
      $region40: #{tpu_custom_call.1} parent=5 // pred_fallthru
        _
      %p602 = scmp.le.s32.totalorder 1, %s25
      %p603 = scmp.lt.s32.totalorder %s25, 3
      %p604 = pnand %p602, %p603
      %p605 = pneg %p604
      // Predicated region
      $region89: #{tpu_custom_call.1} parent=5 // pred_check
        _
      $region90: #{tpu_custom_call.1} parent=5 // pred_check_branch
        %607 = sbr.rel (%p604) target = $region92
      $region91: #{tpu_custom_call.1} parent=5 // pred_region
        %s608 = ssub.s32 %s25, 1
        %p609 = pneg %p46
        %p610 = pneg %p43
        %p611 = pneg %p67
        %p612 = pneg %p64
        %p613 = pneg %p88
        %p614 = pneg %p85
        %p615 = pneg %p109
        %p616 = pneg %p106
        %p617 = scmp.lt.s32.totalorder %s30, 1
        %s618 = scalar_select %p617, %s30, 1
        %s619 = smul.addr %s618, 24
        %s620 = smul.addr %s619, 4
        %s621 = scalar_lea.vmem %s4, %s620
        %p622 = pneg %p135
        %p623 = pneg %p132
        %p624 = scmp.lt.s32.totalorder %s30, 1
        %s625 = scalar_select %p624, %s30, 1
        %s626 = smul.addr %s625, 6
        %s627 = scalar_lea.vmem %s5, %s626
        %p628 = pneg %p161
        %p629 = pneg %p158
        %p630 = scmp.lt.s32.totalorder %s30, 1
        %s631 = scalar_select %p630, %s30, 1
        %s632 = smul.addr %s631, 32
        %s633 = smul.addr %s632, 4
        %s634 = scalar_lea.vmem %s6, %s633
        %p635 = pneg %p187
        %p636 = pneg %p184
        %p637 = scmp.lt.s32.totalorder %s30, 1
        %s638 = scalar_select %p637, %s30, 1
        %s639 = scalar_lea.vmem %s7, %s638
        %p640 = pneg %p213
        %p641 = pneg %p210
        %p642 = scmp.lt.s32.totalorder %s30, 1
        %s643 = scalar_select %p642, %s30, 1
        %s644 = scalar_lea.vmem %s8, %s643
        %p645 = pneg %p239
        %p646 = pneg %p236
        %p647 = scmp.lt.s32.totalorder %s30, 1
        %s648 = scalar_select %p647, %s30, 1
        %s649 = scalar_lea.vmem %s9, %s648
        %p650 = pneg %p265
        %p651 = pneg %p262
        %p652 = scmp.lt.s32.totalorder %s30, 1
        %s653 = scalar_select %p652, %s30, 1
        %s654 = smul.addr %s653, 12
        %s655 = smul.addr %s654, 4
        %s656 = scalar_lea.vmem %s10, %s655
        %p657 = pneg %p291
        %p658 = pneg %p288
        %p659 = scmp.lt.s32.totalorder %s30, 1
        %s660 = scalar_select %p659, %s30, 1
        %s661 = scalar_lea.vmem %s11, %s660
        %p662 = pneg %p317
        %p663 = pneg %p314
        %p664 = scmp.lt.s32.totalorder %s30, 1
        %s665 = scalar_select %p664, %s30, 1
        %s666 = smul.addr %s665, 24
        %s667 = smul.addr %s666, 4
        %s668 = scalar_lea.vmem %s12, %s667
        %p669 = pneg %p343
        %p670 = pneg %p340
        %p671 = scmp.lt.s32.totalorder %s30, 1
        %s672 = scalar_select %p671, %s30, 1
        %s673 = scalar_lea.vmem %s13, %s672
        %p674 = pneg %p369
        %p675 = pneg %p366
        %p676 = scmp.lt.s32.totalorder %s30, 1
        %s677 = scalar_select %p676, %s30, 1
        %s678 = scalar_lea.vmem %s14, %s677
        %p679 = pneg %p395
        %p680 = pneg %p392
        %p681 = scmp.lt.s32.totalorder %s30, 1
        %s682 = scalar_select %p681, %s30, 1
        %s683 = scalar_lea.vmem %s15, %s682
        %p684 = pneg %p421
        %p685 = pneg %p418
        %p686 = pneg %p442
        %p687 = pneg %p439
        %p688 = pneg %p463
        %p689 = pneg %p460
        %p690 = pneg %p484
        %p691 = pneg %p481
        %p692 = scmp.lt.s32.totalorder %s30, 1
        %s693 = scalar_select %p692, %s30, 1
        %s694 = smul.addr %s693, 24
        %s695 = smul.addr %s694, 4
        %s696 = scalar_lea.vmem %s4, %s695
        %p697 = scmp.lt.s32.totalorder %s30, 1
        %s698 = scalar_select %p697, %s30, 1
        %s699 = smul.addr %s698, 6
        %s700 = scalar_lea.vmem %s5, %s699
        %p701 = scmp.lt.s32.totalorder %s30, 1
        %s702 = scalar_select %p701, %s30, 1
        %s703 = smul.addr %s702, 32
        %s704 = smul.addr %s703, 4
        %s705 = scalar_lea.vmem %s6, %s704
        %p706 = scmp.lt.s32.totalorder %s30, 1
        %s707 = scalar_select %p706, %s30, 1
        %s708 = scalar_lea.vmem %s7, %s707
        %p709 = scmp.lt.s32.totalorder %s30, 1
        %s710 = scalar_select %p709, %s30, 1
        %s711 = scalar_lea.vmem %s8, %s710
        %p712 = scmp.lt.s32.totalorder %s30, 1
        %s713 = scalar_select %p712, %s30, 1
        %s714 = scalar_lea.vmem %s9, %s713
        %p715 = scmp.lt.s32.totalorder %s30, 1
        %s716 = scalar_select %p715, %s30, 1
        %s717 = smul.addr %s716, 12
        %s718 = smul.addr %s717, 4
        %s719 = scalar_lea.vmem %s10, %s718
        %p720 = scmp.lt.s32.totalorder %s30, 1
        %s721 = scalar_select %p720, %s30, 1
        %s722 = scalar_lea.vmem %s11, %s721
        %p723 = scmp.lt.s32.totalorder %s30, 1
        %s724 = scalar_select %p723, %s30, 1
        %s725 = smul.addr %s724, 24
        %s726 = smul.addr %s725, 4
        %s727 = scalar_lea.vmem %s12, %s726
        %p728 = scmp.lt.s32.totalorder %s30, 1
        %s729 = scalar_select %p728, %s30, 1
        %s730 = scalar_lea.vmem %s13, %s729
        %p731 = scmp.lt.s32.totalorder %s30, 1
        %s732 = scalar_select %p731, %s30, 1
        %s733 = scalar_lea.vmem %s14, %s732
        %p734 = scmp.lt.s32.totalorder %s30, 1
        %s735 = scalar_select %p734, %s30, 1
        %s736 = scalar_lea.vmem %s15, %s735
        %p738 = scmp.eq.s32.totalorder %s30, 0
        // Predicated region
        $region93: #{tpu_custom_call.1} parent=91 // pred_check
          %p739 = pneg %p738
        $region94: #{tpu_custom_call.1} parent=91 // pred_check_branch
          %741 = sbr.rel (%p739) target = $region96
        $region95: #{tpu_custom_call.1} parent=91 // pred_region
          %v742 = vld [vmem:[%s0] sm:$0xff]
          %v743 = vld [vmem:[%s0 + $0x8] sm:$0xff]
          %v744 = vld [vmem:[%s0 + $0x10] sm:$0xff]
          %v745 = vld [vmem:[%s0 + $0x18] sm:$0xff]
          %vm746 = vcmask 261120
          %747 = vst.msk [vmem:[#allocation2] sm:$0xff] %vm746, %v742
          %748 = vst.msk [vmem:[#allocation2 + $0x8] sm:$0xff] %vm746, %v743
          %749 = vst.msk [vmem:[#allocation2 + $0x10] sm:$0xff] %vm746, %v744
          %750 = vst.msk [vmem:[#allocation2 + $0x18] sm:$0xff] %vm746, %v745
        $region96: #{tpu_custom_call.1} parent=91 // pred_fallthru
          _
        %v751 = vld [vmem:[#allocation2] sm:$0xff]
        %v752 = vld [vmem:[#allocation2 + $0x8] sm:$0xff]
        %v753 = vld [vmem:[#allocation2 + $0x10] sm:$0xff]
        %v754 = vld [vmem:[#allocation2 + $0x18] sm:$0xff]
        %v755 = vld [vmem:[%s1] sm:$0xff]
        %v756 = vld [vmem:[%s1 + $0x8] sm:$0xff]
        %v757 = vld [vmem:[%s1 + $0x10] sm:$0xff]
        %v758 = vld [vmem:[%s1 + $0x18] sm:$0xff]
        %v759 = vld [vmem:[%s3] sm:$0xff]
        %v760 = vld [vmem:[%s3 + $0x8] sm:$0xff]
        %v761 = vld [vmem:[%s3 + $0x10] sm:$0xff]
        %v762 = vld [vmem:[%s3 + $0x18] sm:$0xff]
        %v763 = vpack.c.bf16 %v752, %v751
        %v764 = vpack.c.bf16 %v754, %v753
        %v765 = vld [vmem:[%s696] sm:$0xff]
        %v766 = vld [vmem:[%s696 + $0x8] sm:$0xff]
        %v767 = vld [vmem:[%s696 + $0x10] sm:$0xff]
        %v768 = vld [vmem:[%s696 + $0x18] sm:$0xff]
        %v769 = vld [vmem:[%s696 + $0x20] sm:$0xff]
        %v770 = vld [vmem:[%s696 + $0x28] sm:$0xff]
        %v771 = vld [vmem:[%s696 + $0x30] sm:$0xff]
        %v772 = vld [vmem:[%s696 + $0x38] sm:$0xff]
        %v773 = vld [vmem:[%s696 + $0x40] sm:$0xff]
        %v774 = vld [vmem:[%s696 + $0x48] sm:$0xff]
        %v775 = vld [vmem:[%s696 + $0x50] sm:$0xff]
        %v776 = vld [vmem:[%s696 + $0x58] sm:$0xff]
        %v777 = vld [vmem:[%s700] sm:$0x3f]
        %v779 = vlaneseq
        %v780 = vshrl.u32 %v779, 7
        %v781 = vsub.s32 0, %v780
        %v782 = vrot.slane %v777, %v781
        %v783 = vlaneseq
        %v784 = vshrl.u32 %v783, 7
        %v785 = vsub.s32 1, %v784
        %v786 = vrot.slane %v777, %v785
        %v787 = vlaneseq
        %v788 = vshrl.u32 %v787, 7
        %v789 = vsub.s32 2, %v788
        %v790 = vrot.slane %v777, %v789
        %v791 = vlaneseq
        %v792 = vshrl.u32 %v791, 7
        %v793 = vsub.s32 3, %v792
        %v794 = vrot.slane %v777, %v793
        %v795 = vlaneseq
        %v796 = vshrl.u32 %v795, 7
        %v797 = vsub.s32 4, %v796
        %v798 = vrot.slane %v777, %v797
        %v799 = vlaneseq
        %v800 = vshrl.u32 %v799, 7
        %v801 = vsub.s32 5, %v800
        %v802 = vrot.slane %v777, %v801
        %v821 = vunpack.c.l.b16 %v765
        %v822 = vunpack.c.h.b16 %v765
        %v823 = vunpack.c.l.b16 %v766
        %v824 = vunpack.c.h.b16 %v766
        %v825 = vunpack.c.l.b16 %v767
        %v826 = vunpack.c.h.b16 %v767
        %v827 = vunpack.c.l.b16 %v768
        %v828 = vunpack.c.h.b16 %v768
        %v829 = vunpack.c.l.b16 %v769
        %v830 = vunpack.c.h.b16 %v769
        %v831 = vunpack.c.l.b16 %v770
        %v832 = vunpack.c.h.b16 %v770
        %v833 = vunpack.c.l.b16 %v771
        %v834 = vunpack.c.h.b16 %v771
        %v835 = vunpack.c.l.b16 %v772
        %v836 = vunpack.c.h.b16 %v772
        %v837 = vunpack.c.l.b16 %v773
        %v838 = vunpack.c.h.b16 %v773
        %v839 = vunpack.c.l.b16 %v774
        %v840 = vunpack.c.h.b16 %v774
        %v841 = vunpack.c.l.b16 %v775
        %v842 = vunpack.c.h.b16 %v775
        %v843 = vunpack.c.l.b16 %v776
        %v844 = vunpack.c.h.b16 %v776
        %v845 = vpack.c.b16 %v827, %v821
        %v846 = vpack.c.b16 %v828, %v822
        %v847 = vpack.c.b16 %v829, %v823
        %v848 = vpack.c.b16 %v830, %v824
        %v849 = vpack.c.b16 %v831, %v825
        %v850 = vpack.c.b16 %v832, %v826
        %v851 = vpack.c.b16 %v839, %v833
        %v852 = vpack.c.b16 %v840, %v834
        %v853 = vpack.c.b16 %v841, %v835
        %v854 = vpack.c.b16 %v842, %v836
        %v855 = vpack.c.b16 %v843, %v837
        %v856 = vpack.c.b16 %v844, %v838
        %vm869 = vcmask 261120
        %v871 = vsel %vm869, %v763, 0
        %v874 = vsel %vm869, %v764, 0
        %876 = vmatprep.subr.bf16.mxu0 0
        %877 = vmatpush1.bf16.msra.mxu0 0
        %878 = vmatprep.subr.bf16.mxu0 0
        %879 = vmatpush1.bf16.msra.mxu0 0
        %880 = vmatprep.subr.bf16.mxu0 0
        %881 = vmatpush1.bf16.msra.mxu0 0
        %882 = vmatprep.subr.bf16.mxu0 0
        %883 = vmatpush1.bf16.msra.mxu0 0
        %884 = vmatprep.subr.bf16.mxu0 0
        %885 = vmatpush1.bf16.msra.mxu0 0
        %886 = vmatprep.subr.bf16.mxu0 0
        %887 = vmatpush1.bf16.msra.mxu0 0
        %888 = vmatprep.subr.bf16.mxu0 %v852
        %889 = vmatpush1.bf16.msra.mxu0 %v851
        %890 = vmatprep.subr.bf16.mxu0 %v846
        %891 = vmatpush1.bf16.msra.mxu0 %v845
        %892 = vmatprep.subr.bf16.mxu0 0
        %893 = vmatpush2.bf16.msra.mxu0 0
        %894 = vmatprep.subr.bf16.mxu0 0
        %895 = vmatpush2.bf16.msra.mxu0 0
        %896 = vmatprep.subr.bf16.mxu0 0
        %897 = vmatpush2.bf16.msra.mxu0 0
        %898 = vmatprep.subr.bf16.mxu0 0
        %899 = vmatpush2.bf16.msra.mxu0 0
        %900 = vmatprep.subr.bf16.mxu0 0
        %901 = vmatpush2.bf16.msra.mxu0 0
        %902 = vmatprep.subr.bf16.mxu0 0
        %903 = vmatpush2.bf16.msra.mxu0 0
        %904 = vmatprep.subr.bf16.mxu0 0
        %905 = vmatpush2.bf16.msra.mxu0 0
        %906 = vmatprep.subr.bf16.mxu0 0
        %907 = vmatpush2.bf16.msra.mxu0 0
        %908 = vmatprep.mubr.bf16.mxu0 0
        %909 = vmatmul.mubr.bf16.gmra.mxu0 %v871
        %v910 = vpop.f32.mrf.mxu0
        %v911 = vadd.f32 %v782, %v910
        %v912 = vpop.f32.mrf.mxu0
        %v913 = vadd.f32 %v786, %v912
        %v914 = vpop.f32.mrf.mxu0
        %v915 = vadd.f32 %v782, %v914
        %v916 = vpop.f32.mrf.mxu0
        %v917 = vadd.f32 %v786, %v916
        %918 = vmatprep.mubr.bf16.mxu0 0
        %919 = vmatmul.mubr.bf16.gmra.mxu0 %v874
        %v920 = vpop.f32.mrf.mxu0
        %v921 = vadd.f32 %v782, %v920
        %v922 = vpop.f32.mrf.mxu0
        %v923 = vadd.f32 %v786, %v922
        %v924 = vpop.f32.mrf.mxu0
        %v925 = vadd.f32 %v782, %v924
        %v926 = vpop.f32.mrf.mxu0
        %v927 = vadd.f32 %v786, %v926
        %928 = vdwg.mxu0
        %929 = vmatprep.subr.bf16.mxu0 0
        %930 = vmatpush1.bf16.msra.mxu0 0
        %931 = vmatprep.subr.bf16.mxu0 0
        %932 = vmatpush1.bf16.msra.mxu0 0
        %933 = vmatprep.subr.bf16.mxu0 0
        %934 = vmatpush1.bf16.msra.mxu0 0
        %935 = vmatprep.subr.bf16.mxu0 0
        %936 = vmatpush1.bf16.msra.mxu0 0
        %937 = vmatprep.subr.bf16.mxu0 0
        %938 = vmatpush1.bf16.msra.mxu0 0
        %939 = vmatprep.subr.bf16.mxu0 0
        %940 = vmatpush1.bf16.msra.mxu0 0
        %941 = vmatprep.subr.bf16.mxu0 %v854
        %942 = vmatpush1.bf16.msra.mxu0 %v853
        %943 = vmatprep.subr.bf16.mxu0 %v848
        %944 = vmatpush1.bf16.msra.mxu0 %v847
        %945 = vmatprep.subr.bf16.mxu0 0
        %946 = vmatpush2.bf16.msra.mxu0 0
        %947 = vmatprep.subr.bf16.mxu0 0
        %948 = vmatpush2.bf16.msra.mxu0 0
        %949 = vmatprep.subr.bf16.mxu0 0
        %950 = vmatpush2.bf16.msra.mxu0 0
        %951 = vmatprep.subr.bf16.mxu0 0
        %952 = vmatpush2.bf16.msra.mxu0 0
        %953 = vmatprep.subr.bf16.mxu0 0
        %954 = vmatpush2.bf16.msra.mxu0 0
        %955 = vmatprep.subr.bf16.mxu0 0
        %956 = vmatpush2.bf16.msra.mxu0 0
        %957 = vmatprep.subr.bf16.mxu0 0
        %958 = vmatpush2.bf16.msra.mxu0 0
        %959 = vmatprep.subr.bf16.mxu0 0
        %960 = vmatpush2.bf16.msra.mxu0 0
        %961 = vmatprep.mubr.bf16.mxu0 0
        %962 = vmatmul.mubr.bf16.gmra.mxu0 %v871
        %v963 = vpop.f32.mrf.mxu0
        %v964 = vadd.f32 %v790, %v963
        %v965 = vpop.f32.mrf.mxu0
        %v966 = vadd.f32 %v794, %v965
        %v967 = vpop.f32.mrf.mxu0
        %v968 = vadd.f32 %v790, %v967
        %v969 = vpop.f32.mrf.mxu0
        %v970 = vadd.f32 %v794, %v969
        %971 = vmatprep.mubr.bf16.mxu0 0
        %972 = vmatmul.mubr.bf16.gmra.mxu0 %v874
        %v973 = vpop.f32.mrf.mxu0
        %v974 = vadd.f32 %v790, %v973
        %v975 = vpop.f32.mrf.mxu0
        %v976 = vadd.f32 %v794, %v975
        %v977 = vpop.f32.mrf.mxu0
        %v978 = vadd.f32 %v790, %v977
        %v979 = vpop.f32.mrf.mxu0
        %v980 = vadd.f32 %v794, %v979
        %981 = vdwg.mxu0
        %982 = vmatprep.subr.bf16.mxu0 0
        %983 = vmatpush1.bf16.msra.mxu0 0
        %984 = vmatprep.subr.bf16.mxu0 0
        %985 = vmatpush1.bf16.msra.mxu0 0
        %986 = vmatprep.subr.bf16.mxu0 0
        %987 = vmatpush1.bf16.msra.mxu0 0
        %988 = vmatprep.subr.bf16.mxu0 0
        %989 = vmatpush1.bf16.msra.mxu0 0
        %990 = vmatprep.subr.bf16.mxu0 0
        %991 = vmatpush1.bf16.msra.mxu0 0
        %992 = vmatprep.subr.bf16.mxu0 0
        %993 = vmatpush1.bf16.msra.mxu0 0
        %994 = vmatprep.subr.bf16.mxu0 %v856
        %995 = vmatpush1.bf16.msra.mxu0 %v855
        %996 = vmatprep.subr.bf16.mxu0 %v850
        %997 = vmatpush1.bf16.msra.mxu0 %v849
        %998 = vmatprep.subr.bf16.mxu0 0
        %999 = vmatpush2.bf16.msra.mxu0 0
        %1000 = vmatprep.subr.bf16.mxu0 0
        %1001 = vmatpush2.bf16.msra.mxu0 0
        %1002 = vmatprep.subr.bf16.mxu0 0
        %1003 = vmatpush2.bf16.msra.mxu0 0
        %1004 = vmatprep.subr.bf16.mxu0 0
        %1005 = vmatpush2.bf16.msra.mxu0 0
        %1006 = vmatprep.subr.bf16.mxu0 0
        %1007 = vmatpush2.bf16.msra.mxu0 0
        %1008 = vmatprep.subr.bf16.mxu0 0
        %1009 = vmatpush2.bf16.msra.mxu0 0
        %1010 = vmatprep.subr.bf16.mxu0 0
        %1011 = vmatpush2.bf16.msra.mxu0 0
        %1012 = vmatprep.subr.bf16.mxu0 0
        %1013 = vmatpush2.bf16.msra.mxu0 0
        %1014 = vmatprep.mubr.bf16.mxu0 0
        %1015 = vmatmul.mubr.bf16.gmra.mxu0 %v871
        %v1016 = vpop.f32.mrf.mxu0
        %v1017 = vadd.f32 %v798, %v1016
        %v1018 = vpop.f32.mrf.mxu0
        %v1019 = vadd.f32 %v802, %v1018
        %v1020 = vpop.f32.mrf.mxu0
        %v1021 = vadd.f32 %v798, %v1020
        %v1022 = vpop.f32.mrf.mxu0
        %v1023 = vadd.f32 %v802, %v1022
        %1024 = vmatprep.mubr.bf16.mxu0 0
        %1025 = vmatmul.mubr.bf16.gmra.mxu0 %v874
        %v1026 = vpop.f32.mrf.mxu0
        %v1027 = vadd.f32 %v798, %v1026
        %v1028 = vpop.f32.mrf.mxu0
        %v1029 = vadd.f32 %v802, %v1028
        %v1030 = vpop.f32.mrf.mxu0
        %v1031 = vadd.f32 %v798, %v1030
        %v1032 = vpop.f32.mrf.mxu0
        %v1033 = vadd.f32 %v802, %v1032
        %1034 = vdwg.mxu0
        %v1035 = vpack.c.bf16 %v915, %v911
        %v1036 = vpack.c.bf16 %v917, %v913
        %v1037 = vpack.c.bf16 %v968, %v964
        %v1038 = vpack.c.bf16 %v970, %v966
        %v1039 = vpack.c.bf16 %v1021, %v1017
        %v1040 = vpack.c.bf16 %v1023, %v1019
        %v1041 = vpack.c.bf16 %v925, %v921
        %v1042 = vpack.c.bf16 %v927, %v923
        %v1043 = vpack.c.bf16 %v978, %v974
        %v1044 = vpack.c.bf16 %v980, %v976
        %v1045 = vpack.c.bf16 %v1031, %v1027
        %v1046 = vpack.c.bf16 %v1033, %v1029
        %v1047 = vld [vmem:[%s2] sm:$0x1]
        %v1049 = vlaneseq
        %v1050 = vshrl.u32 %v1049, 7
        %v1051 = vsub.s32 0, %v1050
        %v1052 = vrot.slane %v1047, %v1051
        %1054 = vmatprep.subr.bf16.mxu0 0
        %1055 = vmatpush1.bf16.xpose.msra.mxu0 0
        %1056 = vmatprep.subr.bf16.mxu0 0
        %1057 = vmatpush1.bf16.xpose.msra.mxu0 0
        %1058 = vmatprep.subr.bf16.mxu0 0
        %1059 = vmatpush1.bf16.xpose.msra.mxu0 0
        %1060 = vmatprep.subr.bf16.mxu0 0
        %1061 = vmatpush1.bf16.xpose.msra.mxu0 0
        %1062 = vmatprep.subr.bf16.mxu0 0
        %1063 = vmatpush1.bf16.xpose.msra.mxu0 0
        %1064 = vmatprep.subr.bf16.mxu0 0
        %1065 = vmatpush1.bf16.xpose.msra.mxu0 0
        %1066 = vmatprep.subr.bf16.mxu0 0
        %1067 = vmatpush1.bf16.xpose.msra.mxu0 0
        %1068 = vmatprep.subr.bf16.mxu0 0
        %1069 = vmatpush1.bf16.xpose.msra.mxu0 %v1037
        %1070 = vmatprep.subr.bf16.mxu0 0
        %1071 = vmatpush2.bf16.xpose.msra.mxu0 0
        %1072 = vmatprep.subr.bf16.mxu0 0
        %1073 = vmatpush2.bf16.xpose.msra.mxu0 0
        %1074 = vmatprep.subr.bf16.mxu0 0
        %1075 = vmatpush2.bf16.xpose.msra.mxu0 0
        %1076 = vmatprep.subr.bf16.mxu0 0
        %1077 = vmatpush2.bf16.xpose.msra.mxu0 0
        %1078 = vmatprep.subr.bf16.mxu0 0
        %1079 = vmatpush2.bf16.xpose.msra.mxu0 0
        %1080 = vmatprep.subr.bf16.mxu0 0
        %1081 = vmatpush2.bf16.xpose.msra.mxu0 0
        %1082 = vmatprep.subr.bf16.mxu0 0
        %1083 = vmatpush2.bf16.xpose.msra.mxu0 0
        %1084 = vmatprep.subr.bf16.mxu0 0
        %1085 = vmatpush2.bf16.xpose.msra.mxu0 0
        %1086 = vmatprep.mubr.bf16.mxu0 0
        %1087 = vmatmul.mubr.bf16.gmra.mxu0 %v1035
        %v1088 = vpop.f32.mrf.mxu0
        %v1089 = vadd.f32 %v1052, %v1088
        %v1090 = vpop.f32.mrf.mxu0
        %v1091 = vpop.f32.mrf.mxu0
        %v1092 = vadd.f32 %v1052, %v1091
        %v1093 = vpop.f32.mrf.mxu0
        %1094 = vdwg.mxu0
        %vm1095 = vcmask 130048
        %v1096 = vsel %vm1095, %v1089, -inf
        %1097 = vmax.xlane.f32.xlu0 %v1096
        %v1098 = vpop.xlane.xlu0 %1097
        %v1099 = vsel %vm1095, %v1092, -inf
        %1100 = vmax.xlane.f32.xlu0 %v1099
        %v1101 = vpop.xlane.xlu0 %1100
        %v1102 = vsub.f32 %v1089, %v1098
        %v1103 = vsub.f32 %v1092, %v1101
        %v1104 = vmul.f32 %v1102, 1.442695
        %v1105 = vpow.pop %v1104
        %v1106 = vmul.f32 %v1103, 1.442695
        %v1107 = vpow.pop %v1106
        %v1108 = vsel %vm1095, %v1105, 0.0
        %1109 = vadd.xlane.f32.xlu0 %v1108
        %v1110 = vpop.xlane.xlu0 %1109
        %v1111 = vsel %vm1095, %v1107, 0.0
        %1112 = vadd.xlane.f32.xlu0 %v1111
        %v1113 = vpop.xlane.xlu0 %1112
        %v1114 = vrcp.pop %v1110
        %v1115 = vrcp.pop %v1113
        %v1116 = vmul.f32 %v1105, %v1114
        %v1117 = vmul.f32 %v1107, %v1115
        %v1118 = vpack.c.bf16 %v1117, %v1116
        %v1120 = vsel %vm1095, %v1118, 0
        %1122 = vmatprep.subr.bf16.mxu0 0
        %1123 = vmatpush1.bf16.msra.mxu0 0
        %1124 = vmatprep.subr.bf16.mxu0 0
        %1125 = vmatpush1.bf16.msra.mxu0 0
        %1126 = vmatprep.subr.bf16.mxu0 0
        %1127 = vmatpush1.bf16.msra.mxu0 0
        %1128 = vmatprep.subr.bf16.mxu0 0
        %1129 = vmatpush1.bf16.msra.mxu0 0
        %1130 = vmatprep.subr.bf16.mxu0 0
        %1131 = vmatpush1.bf16.msra.mxu0 0
        %1132 = vmatprep.subr.bf16.mxu0 0
        %1133 = vmatpush1.bf16.msra.mxu0 0
        %1134 = vmatprep.subr.bf16.mxu0 0
        %1135 = vmatpush1.bf16.msra.mxu0 0
        %1136 = vmatprep.subr.bf16.mxu0 0
        %1137 = vmatpush1.bf16.msra.mxu0 %v1039
        %1138 = vmatprep.subr.bf16.mxu0 0
        %1139 = vmatpush2.bf16.msra.mxu0 0
        %1140 = vmatprep.subr.bf16.mxu0 0
        %1141 = vmatpush2.bf16.msra.mxu0 0
        %1142 = vmatprep.subr.bf16.mxu0 0
        %1143 = vmatpush2.bf16.msra.mxu0 0
        %1144 = vmatprep.subr.bf16.mxu0 0
        %1145 = vmatpush2.bf16.msra.mxu0 0
        %1146 = vmatprep.subr.bf16.mxu0 0
        %1147 = vmatpush2.bf16.msra.mxu0 0
        %1148 = vmatprep.subr.bf16.mxu0 0
        %1149 = vmatpush2.bf16.msra.mxu0 0
        %1150 = vmatprep.subr.bf16.mxu0 0
        %1151 = vmatpush2.bf16.msra.mxu0 0
        %1152 = vmatprep.subr.bf16.mxu0 0
        %1153 = vmatpush2.bf16.msra.mxu0 0
        %1154 = vmatprep.mubr.bf16.mxu0 0
        %1155 = vmatmul.mubr.bf16.gmra.mxu0 %v1120
        %v1156 = vpop.f32.mrf.mxu0
        %v1157 = vadd.f32 0.0, %v1156
        %v1158 = vpop.f32.mrf.mxu0
        %v1159 = vpop.f32.mrf.mxu0
        %v1160 = vadd.f32 0.0, %v1159
        %v1161 = vpop.f32.mrf.mxu0
        %1162 = vdwg.mxu0
        %1163 = vmatprep.subr.bf16.mxu0 0
        %1164 = vmatpush1.bf16.xpose.msra.mxu0 0
        %1165 = vmatprep.subr.bf16.mxu0 0
        %1166 = vmatpush1.bf16.xpose.msra.mxu0 0
        %1167 = vmatprep.subr.bf16.mxu0 0
        %1168 = vmatpush1.bf16.xpose.msra.mxu0 0
        %1169 = vmatprep.subr.bf16.mxu0 0
        %1170 = vmatpush1.bf16.xpose.msra.mxu0 0
        %1171 = vmatprep.subr.bf16.mxu0 0
        %1172 = vmatpush1.bf16.xpose.msra.mxu0 0
        %1173 = vmatprep.subr.bf16.mxu0 0
        %1174 = vmatpush1.bf16.xpose.msra.mxu0 0
        %1175 = vmatprep.subr.bf16.mxu0 0
        %1176 = vmatpush1.bf16.xpose.msra.mxu0 0
        %1177 = vmatprep.subr.bf16.mxu0 0
        %1178 = vmatpush1.bf16.xpose.msra.mxu0 %v1038
        %1179 = vmatprep.subr.bf16.mxu0 0
        %1180 = vmatpush2.bf16.xpose.msra.mxu0 0
        %1181 = vmatprep.subr.bf16.mxu0 0
        %1182 = vmatpush2.bf16.xpose.msra.mxu0 0
        %1183 = vmatprep.subr.bf16.mxu0 0
        %1184 = vmatpush2.bf16.xpose.msra.mxu0 0
        %1185 = vmatprep.subr.bf16.mxu0 0
        %1186 = vmatpush2.bf16.xpose.msra.mxu0 0
        %1187 = vmatprep.subr.bf16.mxu0 0
        %1188 = vmatpush2.bf16.xpose.msra.mxu0 0
        %1189 = vmatprep.subr.bf16.mxu0 0
        %1190 = vmatpush2.bf16.xpose.msra.mxu0 0
        %1191 = vmatprep.subr.bf16.mxu0 0
        %1192 = vmatpush2.bf16.xpose.msra.mxu0 0
        %1193 = vmatprep.subr.bf16.mxu0 0
        %1194 = vmatpush2.bf16.xpose.msra.mxu0 0
        %1195 = vmatprep.mubr.bf16.mxu0 0
        %1196 = vmatmul.mubr.bf16.gmra.mxu0 %v1036
        %v1197 = vpop.f32.mrf.mxu0
        %v1198 = vadd.f32 %v1052, %v1197
        %v1199 = vpop.f32.mrf.mxu0
        %v1200 = vpop.f32.mrf.mxu0
        %v1201 = vadd.f32 %v1052, %v1200
        %v1202 = vpop.f32.mrf.mxu0
        %1203 = vdwg.mxu0
        %v1204 = vsel %vm1095, %v1198, -inf
        %1205 = vmax.xlane.f32.xlu0 %v1204
        %v1206 = vpop.xlane.xlu0 %1205
        %v1207 = vsel %vm1095, %v1201, -inf
        %1208 = vmax.xlane.f32.xlu0 %v1207
        %v1209 = vpop.xlane.xlu0 %1208
        %v1210 = vsub.f32 %v1198, %v1206
        %v1211 = vsub.f32 %v1201, %v1209
        %v1212 = vmul.f32 %v1210, 1.442695
        %v1213 = vpow.pop %v1212
        %v1214 = vmul.f32 %v1211, 1.442695
        %v1215 = vpow.pop %v1214
        %v1216 = vsel %vm1095, %v1213, 0.0
        %1217 = vadd.xlane.f32.xlu0 %v1216
        %v1218 = vpop.xlane.xlu0 %1217
        %v1219 = vsel %vm1095, %v1215, 0.0
        %1220 = vadd.xlane.f32.xlu0 %v1219
        %v1221 = vpop.xlane.xlu0 %1220
        %v1222 = vrcp.pop %v1218
        %v1223 = vrcp.pop %v1221
        %v1224 = vmul.f32 %v1213, %v1222
        %v1225 = vmul.f32 %v1215, %v1223
        %v1226 = vpack.c.bf16 %v1225, %v1224
        %v1228 = vsel %vm1095, %v1226, 0
        %1230 = vmatprep.subr.bf16.mxu0 0
        %1231 = vmatpush1.bf16.msra.mxu0 0
        %1232 = vmatprep.subr.bf16.mxu0 0
        %1233 = vmatpush1.bf16.msra.mxu0 0
        %1234 = vmatprep.subr.bf16.mxu0 0
        %1235 = vmatpush1.bf16.msra.mxu0 0
        %1236 = vmatprep.subr.bf16.mxu0 0
        %1237 = vmatpush1.bf16.msra.mxu0 0
        %1238 = vmatprep.subr.bf16.mxu0 0
        %1239 = vmatpush1.bf16.msra.mxu0 0
        %1240 = vmatprep.subr.bf16.mxu0 0
        %1241 = vmatpush1.bf16.msra.mxu0 0
        %1242 = vmatprep.subr.bf16.mxu0 0
        %1243 = vmatpush1.bf16.msra.mxu0 0
        %1244 = vmatprep.subr.bf16.mxu0 0
        %1245 = vmatpush1.bf16.msra.mxu0 %v1040
        %1246 = vmatprep.subr.bf16.mxu0 0
        %1247 = vmatpush2.bf16.msra.mxu0 0
        %1248 = vmatprep.subr.bf16.mxu0 0
        %1249 = vmatpush2.bf16.msra.mxu0 0
        %1250 = vmatprep.subr.bf16.mxu0 0
        %1251 = vmatpush2.bf16.msra.mxu0 0
        %1252 = vmatprep.subr.bf16.mxu0 0
        %1253 = vmatpush2.bf16.msra.mxu0 0
        %1254 = vmatprep.subr.bf16.mxu0 0
        %1255 = vmatpush2.bf16.msra.mxu0 0
        %1256 = vmatprep.subr.bf16.mxu0 0
        %1257 = vmatpush2.bf16.msra.mxu0 0
        %1258 = vmatprep.subr.bf16.mxu0 0
        %1259 = vmatpush2.bf16.msra.mxu0 0
        %1260 = vmatprep.subr.bf16.mxu0 0
        %1261 = vmatpush2.bf16.msra.mxu0 0
        %1262 = vmatprep.mubr.bf16.mxu0 0
        %1263 = vmatmul.mubr.bf16.gmra.mxu0 %v1228
        %v1264 = vpop.f32.mrf.mxu0
        %v1265 = vadd.f32 0.0, %v1264
        %v1266 = vpop.f32.mrf.mxu0
        %v1267 = vpop.f32.mrf.mxu0
        %v1268 = vadd.f32 0.0, %v1267
        %v1269 = vpop.f32.mrf.mxu0
        %1270 = vdwg.mxu0
        %s1271 = scalar_lea.vmem %s2, 1
        %v1272 = vld [vmem:[%s1271] sm:$0x1]
        %v1274 = vlaneseq
        %v1275 = vshrl.u32 %v1274, 7
        %v1276 = vsub.s32 0, %v1275
        %v1277 = vrot.slane %v1272, %v1276
        %1279 = vmatprep.subr.bf16.mxu0 0
        %1280 = vmatpush1.bf16.xpose.msra.mxu0 0
        %1281 = vmatprep.subr.bf16.mxu0 0
        %1282 = vmatpush1.bf16.xpose.msra.mxu0 0
        %1283 = vmatprep.subr.bf16.mxu0 0
        %1284 = vmatpush1.bf16.xpose.msra.mxu0 0
        %1285 = vmatprep.subr.bf16.mxu0 0
        %1286 = vmatpush1.bf16.xpose.msra.mxu0 0
        %1287 = vmatprep.subr.bf16.mxu0 0
        %1288 = vmatpush1.bf16.xpose.msra.mxu0 0
        %1289 = vmatprep.subr.bf16.mxu0 0
        %1290 = vmatpush1.bf16.xpose.msra.mxu0 0
        %1291 = vmatprep.subr.bf16.mxu0 0
        %1292 = vmatpush1.bf16.xpose.msra.mxu0 0
        %1293 = vmatprep.subr.bf16.mxu0 0
        %1294 = vmatpush1.bf16.xpose.msra.mxu0 %v1043
        %1295 = vmatprep.subr.bf16.mxu0 0
        %1296 = vmatpush2.bf16.xpose.msra.mxu0 0
        %1297 = vmatprep.subr.bf16.mxu0 0
        %1298 = vmatpush2.bf16.xpose.msra.mxu0 0
        %1299 = vmatprep.subr.bf16.mxu0 0
        %1300 = vmatpush2.bf16.xpose.msra.mxu0 0
        %1301 = vmatprep.subr.bf16.mxu0 0
        %1302 = vmatpush2.bf16.xpose.msra.mxu0 0
        %1303 = vmatprep.subr.bf16.mxu0 0
        %1304 = vmatpush2.bf16.xpose.msra.mxu0 0
        %1305 = vmatprep.subr.bf16.mxu0 0
        %1306 = vmatpush2.bf16.xpose.msra.mxu0 0
        %1307 = vmatprep.subr.bf16.mxu0 0
        %1308 = vmatpush2.bf16.xpose.msra.mxu0 0
        %1309 = vmatprep.subr.bf16.mxu0 0
        %1310 = vmatpush2.bf16.xpose.msra.mxu0 0
        %1311 = vmatprep.mubr.bf16.mxu0 0
        %1312 = vmatmul.mubr.bf16.gmra.mxu0 %v1041
        %v1313 = vpop.f32.mrf.mxu0
        %v1314 = vadd.f32 %v1277, %v1313
        %v1315 = vpop.f32.mrf.mxu0
        %v1316 = vpop.f32.mrf.mxu0
        %v1317 = vadd.f32 %v1277, %v1316
        %v1318 = vpop.f32.mrf.mxu0
        %1319 = vdwg.mxu0
        %v1320 = vsel %vm1095, %v1314, -inf
        %1321 = vmax.xlane.f32.xlu0 %v1320
        %v1322 = vpop.xlane.xlu0 %1321
        %v1323 = vsel %vm1095, %v1317, -inf
        %1324 = vmax.xlane.f32.xlu0 %v1323
        %v1325 = vpop.xlane.xlu0 %1324
        %v1326 = vsub.f32 %v1314, %v1322
        %v1327 = vsub.f32 %v1317, %v1325
        %v1328 = vmul.f32 %v1326, 1.442695
        %v1329 = vpow.pop %v1328
        %v1330 = vmul.f32 %v1327, 1.442695
        %v1331 = vpow.pop %v1330
        %v1332 = vsel %vm1095, %v1329, 0.0
        %1333 = vadd.xlane.f32.xlu0 %v1332
        %v1334 = vpop.xlane.xlu0 %1333
        %v1335 = vsel %vm1095, %v1331, 0.0
        %1336 = vadd.xlane.f32.xlu0 %v1335
        %v1337 = vpop.xlane.xlu0 %1336
        %v1338 = vrcp.pop %v1334
        %v1339 = vrcp.pop %v1337
        %v1340 = vmul.f32 %v1329, %v1338
        %v1341 = vmul.f32 %v1331, %v1339
        %v1342 = vpack.c.bf16 %v1341, %v1340
        %v1344 = vsel %vm1095, %v1342, 0
        %1346 = vmatprep.subr.bf16.mxu0 0
        %1347 = vmatpush1.bf16.msra.mxu0 0
        %1348 = vmatprep.subr.bf16.mxu0 0
        %1349 = vmatpush1.bf16.msra.mxu0 0
        %1350 = vmatprep.subr.bf16.mxu0 0
        %1351 = vmatpush1.bf16.msra.mxu0 0
        %1352 = vmatprep.subr.bf16.mxu0 0
        %1353 = vmatpush1.bf16.msra.mxu0 0
        %1354 = vmatprep.subr.bf16.mxu0 0
        %1355 = vmatpush1.bf16.msra.mxu0 0
        %1356 = vmatprep.subr.bf16.mxu0 0
        %1357 = vmatpush1.bf16.msra.mxu0 0
        %1358 = vmatprep.subr.bf16.mxu0 0
        %1359 = vmatpush1.bf16.msra.mxu0 0
        %1360 = vmatprep.subr.bf16.mxu0 0
        %1361 = vmatpush1.bf16.msra.mxu0 %v1045
        %1362 = vmatprep.subr.bf16.mxu0 0
        %1363 = vmatpush2.bf16.msra.mxu0 0
        %1364 = vmatprep.subr.bf16.mxu0 0
        %1365 = vmatpush2.bf16.msra.mxu0 0
        %1366 = vmatprep.subr.bf16.mxu0 0
        %1367 = vmatpush2.bf16.msra.mxu0 0
        %1368 = vmatprep.subr.bf16.mxu0 0
        %1369 = vmatpush2.bf16.msra.mxu0 0
        %1370 = vmatprep.subr.bf16.mxu0 0
        %1371 = vmatpush2.bf16.msra.mxu0 0
        %1372 = vmatprep.subr.bf16.mxu0 0
        %1373 = vmatpush2.bf16.msra.mxu0 0
        %1374 = vmatprep.subr.bf16.mxu0 0
        %1375 = vmatpush2.bf16.msra.mxu0 0
        %1376 = vmatprep.subr.bf16.mxu0 0
        %1377 = vmatpush2.bf16.msra.mxu0 0
        %1378 = vmatprep.mubr.bf16.mxu0 0
        %1379 = vmatmul.mubr.bf16.gmra.mxu0 %v1344
        %v1380 = vpop.f32.mrf.mxu0
        %v1381 = vadd.f32 0.0, %v1380
        %v1382 = vpop.f32.mrf.mxu0
        %v1383 = vpop.f32.mrf.mxu0
        %v1384 = vadd.f32 0.0, %v1383
        %v1385 = vpop.f32.mrf.mxu0
        %1386 = vdwg.mxu0
        %1387 = vmatprep.subr.bf16.mxu0 0
        %1388 = vmatpush1.bf16.xpose.msra.mxu0 0
        %1389 = vmatprep.subr.bf16.mxu0 0
        %1390 = vmatpush1.bf16.xpose.msra.mxu0 0
        %1391 = vmatprep.subr.bf16.mxu0 0
        %1392 = vmatpush1.bf16.xpose.msra.mxu0 0
        %1393 = vmatprep.subr.bf16.mxu0 0
        %1394 = vmatpush1.bf16.xpose.msra.mxu0 0
        %1395 = vmatprep.subr.bf16.mxu0 0
        %1396 = vmatpush1.bf16.xpose.msra.mxu0 0
        %1397 = vmatprep.subr.bf16.mxu0 0
        %1398 = vmatpush1.bf16.xpose.msra.mxu0 0
        %1399 = vmatprep.subr.bf16.mxu0 0
        %1400 = vmatpush1.bf16.xpose.msra.mxu0 0
        %1401 = vmatprep.subr.bf16.mxu0 0
        %1402 = vmatpush1.bf16.xpose.msra.mxu0 %v1044
        %1403 = vmatprep.subr.bf16.mxu0 0
        %1404 = vmatpush2.bf16.xpose.msra.mxu0 0
        %1405 = vmatprep.subr.bf16.mxu0 0
        %1406 = vmatpush2.bf16.xpose.msra.mxu0 0
        %1407 = vmatprep.subr.bf16.mxu0 0
        %1408 = vmatpush2.bf16.xpose.msra.mxu0 0
        %1409 = vmatprep.subr.bf16.mxu0 0
        %1410 = vmatpush2.bf16.xpose.msra.mxu0 0
        %1411 = vmatprep.subr.bf16.mxu0 0
        %1412 = vmatpush2.bf16.xpose.msra.mxu0 0
        %1413 = vmatprep.subr.bf16.mxu0 0
        %1414 = vmatpush2.bf16.xpose.msra.mxu0 0
        %1415 = vmatprep.subr.bf16.mxu0 0
        %1416 = vmatpush2.bf16.xpose.msra.mxu0 0
        %1417 = vmatprep.subr.bf16.mxu0 0
        %1418 = vmatpush2.bf16.xpose.msra.mxu0 0
        %1419 = vmatprep.mubr.bf16.mxu0 0
        %1420 = vmatmul.mubr.bf16.gmra.mxu0 %v1042
        %v1421 = vpop.f32.mrf.mxu0
        %v1422 = vadd.f32 %v1277, %v1421
        %v1423 = vpop.f32.mrf.mxu0
        %v1424 = vpop.f32.mrf.mxu0
        %v1425 = vadd.f32 %v1277, %v1424
        %v1426 = vpop.f32.mrf.mxu0
        %1427 = vdwg.mxu0
        %v1428 = vsel %vm1095, %v1422, -inf
        %1429 = vmax.xlane.f32.xlu0 %v1428
        %v1430 = vpop.xlane.xlu0 %1429
        %v1431 = vsel %vm1095, %v1425, -inf
        %1432 = vmax.xlane.f32.xlu0 %v1431
        %v1433 = vpop.xlane.xlu0 %1432
        %v1434 = vsub.f32 %v1422, %v1430
        %v1435 = vsub.f32 %v1425, %v1433
        %v1436 = vmul.f32 %v1434, 1.442695
        %v1437 = vpow.pop %v1436
        %v1438 = vmul.f32 %v1435, 1.442695
        %v1439 = vpow.pop %v1438
        %v1440 = vsel %vm1095, %v1437, 0.0
        %1441 = vadd.xlane.f32.xlu0 %v1440
        %v1442 = vpop.xlane.xlu0 %1441
        %v1443 = vsel %vm1095, %v1439, 0.0
        %1444 = vadd.xlane.f32.xlu0 %v1443
        %v1445 = vpop.xlane.xlu0 %1444
        %v1446 = vrcp.pop %v1442
        %v1447 = vrcp.pop %v1445
        %v1448 = vmul.f32 %v1437, %v1446
        %v1449 = vmul.f32 %v1439, %v1447
        %v1450 = vpack.c.bf16 %v1449, %v1448
        %v1452 = vsel %vm1095, %v1450, 0
        %1454 = vmatprep.subr.bf16.mxu0 0
        %1455 = vmatpush1.bf16.msra.mxu0 0
        %1456 = vmatprep.subr.bf16.mxu0 0
        %1457 = vmatpush1.bf16.msra.mxu0 0
        %1458 = vmatprep.subr.bf16.mxu0 0
        %1459 = vmatpush1.bf16.msra.mxu0 0
        %1460 = vmatprep.subr.bf16.mxu0 0
        %1461 = vmatpush1.bf16.msra.mxu0 0
        %1462 = vmatprep.subr.bf16.mxu0 0
        %1463 = vmatpush1.bf16.msra.mxu0 0
        %1464 = vmatprep.subr.bf16.mxu0 0
        %1465 = vmatpush1.bf16.msra.mxu0 0
        %1466 = vmatprep.subr.bf16.mxu0 0
        %1467 = vmatpush1.bf16.msra.mxu0 0
        %1468 = vmatprep.subr.bf16.mxu0 0
        %1469 = vmatpush1.bf16.msra.mxu0 %v1046
        %1470 = vmatprep.subr.bf16.mxu0 0
        %1471 = vmatpush2.bf16.msra.mxu0 0
        %1472 = vmatprep.subr.bf16.mxu0 0
        %1473 = vmatpush2.bf16.msra.mxu0 0
        %1474 = vmatprep.subr.bf16.mxu0 0
        %1475 = vmatpush2.bf16.msra.mxu0 0
        %1476 = vmatprep.subr.bf16.mxu0 0
        %1477 = vmatpush2.bf16.msra.mxu0 0
        %1478 = vmatprep.subr.bf16.mxu0 0
        %1479 = vmatpush2.bf16.msra.mxu0 0
        %1480 = vmatprep.subr.bf16.mxu0 0
        %1481 = vmatpush2.bf16.msra.mxu0 0
        %1482 = vmatprep.subr.bf16.mxu0 0
        %1483 = vmatpush2.bf16.msra.mxu0 0
        %1484 = vmatprep.subr.bf16.mxu0 0
        %1485 = vmatpush2.bf16.msra.mxu0 0
        %1486 = vmatprep.mubr.bf16.mxu0 0
        %1487 = vmatmul.mubr.bf16.gmra.mxu0 %v1452
        %v1488 = vpop.f32.mrf.mxu0
        %v1489 = vadd.f32 0.0, %v1488
        %v1490 = vpop.f32.mrf.mxu0
        %v1491 = vpop.f32.mrf.mxu0
        %v1492 = vadd.f32 0.0, %v1491
        %v1493 = vpop.f32.mrf.mxu0
        %1494 = vdwg.mxu0
        %v1495 = vpack.c.bf16 %v1160, %v1157
        %v1496 = vpack.c.bf16 %v1268, %v1265
        %v1497 = vpack.c.bf16 %v1384, %v1381
        %v1498 = vpack.c.bf16 %v1492, %v1489
        %v1499 = vld [vmem:[%s705] sm:$0xf]
        %v1500 = vld [vmem:[%s705 + $0x4] sm:$0xf]
        %v1501 = vld [vmem:[%s705 + $0x8] sm:$0xf]
        %v1502 = vld [vmem:[%s705 + $0xc] sm:$0xf]
        %v1503 = vld [vmem:[%s705 + $0x10] sm:$0xf]
        %v1504 = vld [vmem:[%s705 + $0x14] sm:$0xf]
        %v1505 = vld [vmem:[%s705 + $0x18] sm:$0xf]
        %v1506 = vld [vmem:[%s705 + $0x1c] sm:$0xf]
        %v1507 = vld [vmem:[%s705 + $0x20] sm:$0xf]
        %v1508 = vld [vmem:[%s705 + $0x24] sm:$0xf]
        %v1509 = vld [vmem:[%s705 + $0x28] sm:$0xf]
        %v1510 = vld [vmem:[%s705 + $0x2c] sm:$0xf]
        %v1511 = vld [vmem:[%s705 + $0x30] sm:$0xf]
        %v1512 = vld [vmem:[%s705 + $0x34] sm:$0xf]
        %v1513 = vld [vmem:[%s705 + $0x38] sm:$0xf]
        %v1514 = vld [vmem:[%s705 + $0x3c] sm:$0xf]
        %v1515 = vld [vmem:[%s705 + $0x40] sm:$0xf]
        %v1516 = vld [vmem:[%s705 + $0x44] sm:$0xf]
        %v1517 = vld [vmem:[%s705 + $0x48] sm:$0xf]
        %v1518 = vld [vmem:[%s705 + $0x4c] sm:$0xf]
        %v1519 = vld [vmem:[%s705 + $0x50] sm:$0xf]
        %v1520 = vld [vmem:[%s705 + $0x54] sm:$0xf]
        %v1521 = vld [vmem:[%s705 + $0x58] sm:$0xf]
        %v1522 = vld [vmem:[%s705 + $0x5c] sm:$0xf]
        %v1523 = vld [vmem:[%s705 + $0x60] sm:$0xf]
        %v1524 = vld [vmem:[%s705 + $0x64] sm:$0xf]
        %v1525 = vld [vmem:[%s705 + $0x68] sm:$0xf]
        %v1526 = vld [vmem:[%s705 + $0x6c] sm:$0xf]
        %v1527 = vld [vmem:[%s705 + $0x70] sm:$0xf]
        %v1528 = vld [vmem:[%s705 + $0x74] sm:$0xf]
        %v1529 = vld [vmem:[%s705 + $0x78] sm:$0xf]
        %v1530 = vld [vmem:[%s705 + $0x7c] sm:$0xf]
        %v1531 = vld [vmem:[%s708] sm:$0x1]
        %v1533 = vlaneseq
        %v1534 = vshrl.u32 %v1533, 7
        %v1535 = vsub.s32 0, %v1534
        %v1536 = vrot.slane %v1531, %v1535
        %v1570 = vunpack.c.l.b16 %v1499
        %v1571 = vunpack.c.l.b16 %v1500
        %v1572 = vunpack.c.l.b16 %v1501
        %v1573 = vunpack.c.l.b16 %v1502
        %v1574 = vunpack.c.l.b16 %v1503
        %v1575 = vunpack.c.l.b16 %v1504
        %v1576 = vunpack.c.l.b16 %v1505
        %v1577 = vunpack.c.l.b16 %v1506
        %v1578 = vunpack.c.l.b16 %v1507
        %v1579 = vunpack.c.l.b16 %v1508
        %v1580 = vunpack.c.l.b16 %v1509
        %v1581 = vunpack.c.l.b16 %v1510
        %v1582 = vunpack.c.l.b16 %v1511
        %v1583 = vunpack.c.l.b16 %v1512
        %v1584 = vunpack.c.l.b16 %v1513
        %v1585 = vunpack.c.l.b16 %v1514
        %v1586 = vunpack.c.l.b16 %v1515
        %v1587 = vunpack.c.l.b16 %v1516
        %v1588 = vunpack.c.l.b16 %v1517
        %v1589 = vunpack.c.l.b16 %v1518
        %v1590 = vunpack.c.l.b16 %v1519
        %v1591 = vunpack.c.l.b16 %v1520
        %v1592 = vunpack.c.l.b16 %v1521
        %v1593 = vunpack.c.l.b16 %v1522
        %v1594 = vunpack.c.l.b16 %v1523
        %v1595 = vunpack.c.l.b16 %v1524
        %v1596 = vunpack.c.l.b16 %v1525
        %v1597 = vunpack.c.l.b16 %v1526
        %v1598 = vunpack.c.l.b16 %v1527
        %v1599 = vunpack.c.l.b16 %v1528
        %v1600 = vunpack.c.l.b16 %v1529
        %v1601 = vunpack.c.l.b16 %v1530
        %v1602 = vpack.c.b16 %v1571, %v1570
        %v1603 = vpack.c.b16 %v1573, %v1572
        %v1604 = vpack.c.b16 %v1575, %v1574
        %v1605 = vpack.c.b16 %v1577, %v1576
        %v1606 = vpack.c.b16 %v1579, %v1578
        %v1607 = vpack.c.b16 %v1581, %v1580
        %v1608 = vpack.c.b16 %v1583, %v1582
        %v1609 = vpack.c.b16 %v1585, %v1584
        %v1610 = vpack.c.b16 %v1587, %v1586
        %v1611 = vpack.c.b16 %v1589, %v1588
        %v1612 = vpack.c.b16 %v1591, %v1590
        %v1613 = vpack.c.b16 %v1593, %v1592
        %v1614 = vpack.c.b16 %v1595, %v1594
        %v1615 = vpack.c.b16 %v1597, %v1596
        %v1616 = vpack.c.b16 %v1599, %v1598
        %v1617 = vpack.c.b16 %v1601, %v1600
        %1634 = vmatprep.subr.bf16.mxu0 0
        %1635 = vmatpush1.bf16.msra.mxu0 %v1609
        %1636 = vmatprep.subr.bf16.mxu0 0
        %1637 = vmatpush1.bf16.msra.mxu0 %v1608
        %1638 = vmatprep.subr.bf16.mxu0 0
        %1639 = vmatpush1.bf16.msra.mxu0 %v1607
        %1640 = vmatprep.subr.bf16.mxu0 0
        %1641 = vmatpush1.bf16.msra.mxu0 %v1606
        %1642 = vmatprep.subr.bf16.mxu0 0
        %1643 = vmatpush1.bf16.msra.mxu0 %v1605
        %1644 = vmatprep.subr.bf16.mxu0 0
        %1645 = vmatpush1.bf16.msra.mxu0 %v1604
        %1646 = vmatprep.subr.bf16.mxu0 0
        %1647 = vmatpush1.bf16.msra.mxu0 %v1603
        %1648 = vmatprep.subr.bf16.mxu0 0
        %1649 = vmatpush1.bf16.msra.mxu0 %v1602
        %1650 = vmatprep.subr.bf16.mxu0 0
        %1651 = vmatpush2.bf16.msra.mxu0 %v1617
        %1652 = vmatprep.subr.bf16.mxu0 0
        %1653 = vmatpush2.bf16.msra.mxu0 %v1616
        %1654 = vmatprep.subr.bf16.mxu0 0
        %1655 = vmatpush2.bf16.msra.mxu0 %v1615
        %1656 = vmatprep.subr.bf16.mxu0 0
        %1657 = vmatpush2.bf16.msra.mxu0 %v1614
        %1658 = vmatprep.subr.bf16.mxu0 0
        %1659 = vmatpush2.bf16.msra.mxu0 %v1613
        %1660 = vmatprep.subr.bf16.mxu0 0
        %1661 = vmatpush2.bf16.msra.mxu0 %v1612
        %1662 = vmatprep.subr.bf16.mxu0 0
        %1663 = vmatpush2.bf16.msra.mxu0 %v1611
        %1664 = vmatprep.subr.bf16.mxu0 0
        %1665 = vmatpush2.bf16.msra.mxu0 %v1610
        %1666 = vmatprep.mubr.bf16.mxu0 %v1496
        %1667 = vmatmul.mubr.bf16.gmra.mxu0 %v1495
        %v1668 = vpop.f32.mrf.mxu0
        %v1669 = vadd.f32 %v1536, %v1668
        %v1670 = vpop.f32.mrf.mxu0
        %v1671 = vpop.f32.mrf.mxu0
        %v1672 = vadd.f32 %v1536, %v1671
        %v1673 = vpop.f32.mrf.mxu0
        %1674 = vmatprep.mubr.bf16.mxu0 %v1498
        %1675 = vmatmul.mubr.bf16.gmra.mxu0 %v1497
        %v1676 = vpop.f32.mrf.mxu0
        %v1677 = vadd.f32 %v1536, %v1676
        %v1678 = vpop.f32.mrf.mxu0
        %v1679 = vpop.f32.mrf.mxu0
        %v1680 = vadd.f32 %v1536, %v1679
        %v1681 = vpop.f32.mrf.mxu0
        %1682 = vdwg.mxu0
        %v1683 = vadd.f32 %v751, %v1669
        %v1684 = vadd.f32 %v752, %v1672
        %v1685 = vadd.f32 %v753, %v1677
        %v1686 = vadd.f32 %v754, %v1680
        %v1687 = vld [vmem:[%s711] sm:$0x1]
        %v1688 = vld [vmem:[%s714] sm:$0x1]
        %v1689 = vsel %vm869, %v1683, 0.0
        %1690 = vadd.xlane.f32.xlu0 %v1689
        %v1691 = vpop.xlane.xlu0 %1690
        %v1692 = vsel %vm869, %v1684, 0.0
        %1693 = vadd.xlane.f32.xlu0 %v1692
        %v1694 = vpop.xlane.xlu0 %1693
        %v1695 = vsel %vm869, %v1685, 0.0
        %1696 = vadd.xlane.f32.xlu0 %v1695
        %v1697 = vpop.xlane.xlu0 %1696
        %v1698 = vsel %vm869, %v1686, 0.0
        %1699 = vadd.xlane.f32.xlu0 %v1698
        %v1700 = vpop.xlane.xlu0 %1699
        %v1701 = vrcp.pop 32.0
        %v1702 = vmul.f32 %v1691, %v1701
        %v1703 = vmul.f32 %v1694, %v1701
        %v1704 = vmul.f32 %v1697, %v1701
        %v1705 = vmul.f32 %v1700, %v1701
        %v1706 = vsub.f32 %v1683, %v1702
        %v1707 = vsub.f32 %v1684, %v1703
        %v1708 = vsub.f32 %v1685, %v1704
        %v1709 = vsub.f32 %v1686, %v1705
        %v1710 = vmul.f32 %v1706, %v1706
        %v1711 = vmul.f32 %v1707, %v1707
        %v1712 = vmul.f32 %v1708, %v1708
        %v1713 = vmul.f32 %v1709, %v1709
        %v1714 = vsel %vm869, %v1710, 0.0
        %1715 = vadd.xlane.f32.xlu0 %v1714
        %v1716 = vpop.xlane.xlu0 %1715
        %v1717 = vsel %vm869, %v1711, 0.0
        %1718 = vadd.xlane.f32.xlu0 %v1717
        %v1719 = vpop.xlane.xlu0 %1718
        %v1720 = vsel %vm869, %v1712, 0.0
        %1721 = vadd.xlane.f32.xlu0 %v1720
        %v1722 = vpop.xlane.xlu0 %1721
        %v1723 = vsel %vm869, %v1713, 0.0
        %1724 = vadd.xlane.f32.xlu0 %v1723
        %v1725 = vpop.xlane.xlu0 %1724
        %v1726 = vmul.f32 %v1716, %v1701
        %v1727 = vmul.f32 %v1719, %v1701
        %v1728 = vmul.f32 %v1722, %v1701
        %v1729 = vmul.f32 %v1725, %v1701
        %v1730 = vadd.f32 %v1726, 1e-05
        %v1731 = vadd.f32 %v1727, 1e-05
        %v1732 = vadd.f32 %v1728, 1e-05
        %v1733 = vadd.f32 %v1729, 1e-05
        %v1734 = vrsqrt.pop %v1730
        %v1735 = vrsqrt.pop %v1731
        %v1736 = vrsqrt.pop %v1732
        %v1737 = vrsqrt.pop %v1733
        %v1738 = vmul.f32 %v1706, %v1734
        %v1739 = vmul.f32 %v1707, %v1735
        %v1740 = vmul.f32 %v1708, %v1736
        %v1741 = vmul.f32 %v1709, %v1737
        %v1743 = vlaneseq
        %v1744 = vshrl.u32 %v1743, 7
        %v1745 = vsub.s32 0, %v1744
        %v1746 = vrot.slane %v1687, %v1745
        %v1748 = vmul.f32 %v1738, %v1746
        %v1749 = vmul.f32 %v1739, %v1746
        %v1750 = vmul.f32 %v1740, %v1746
        %v1751 = vmul.f32 %v1741, %v1746
        %v1753 = vlaneseq
        %v1754 = vshrl.u32 %v1753, 7
        %v1755 = vsub.s32 0, %v1754
        %v1756 = vrot.slane %v1688, %v1755
        %v1758 = vadd.f32 %v1748, %v1756
        %v1759 = vadd.f32 %v1749, %v1756
        %v1760 = vadd.f32 %v1750, %v1756
        %v1761 = vadd.f32 %v1751, %v1756
        %1763 = vset.pattern.permute.xlu0 0
        %1764 = vperm.xlu0 %1763, %v755
        %v1765 = vpop.permute.xlu0 %1764
        %1768 = vset.pattern.permute.xlu0 0
        %1769 = vperm.xlu0 %1768, %v756
        %v1770 = vpop.permute.xlu0 %1769
        %1773 = vset.pattern.permute.xlu0 0
        %1774 = vperm.xlu0 %1773, %v757
        %v1775 = vpop.permute.xlu0 %1774
        %1778 = vset.pattern.permute.xlu0 0
        %1779 = vperm.xlu0 %1778, %v758
        %v1780 = vpop.permute.xlu0 %1779
        %v1782 = vmul.f32 %v1758, %v1765
        %v1783 = vmul.f32 %v1759, %v1770
        %v1784 = vmul.f32 %v1760, %v1775
        %v1785 = vmul.f32 %v1761, %v1780
        %v1786 = vrot.slane %v1782, 7
        %v1787 = vrot.slane %v1783, 7
        %v1788 = vrot.slane %v1784, 7
        %v1789 = vrot.slane %v1785, 7
        %v1790 = vlaneseq
        %v1791 = vshrl.u32 %v1790, 7
        %vm1792 = vcmp.lt.s32.totalorder %v1791, 1
        %v1793 = vsel %vm1792, %v1788, %v1789
        %v1794 = vsel %vm1792, %v1787, %v1788
        %v1795 = vsel %vm1792, %v1786, %v1787
        %v1796 = vsel %vm1792, %v1789, %v1786
        %v1797 = vadd.s32 %v759, 4294967295
        %v1798 = vadd.s32 %v760, 4294967295
        %v1799 = vadd.s32 %v761, 4294967295
        %v1800 = vadd.s32 %v762, 4294967295
        %vm1801 = vcmp.ge.s32.totalorder %v1797, 0
        %vm1802 = vcmp.ge.s32.totalorder %v1798, 0
        %vm1803 = vcmp.ge.s32.totalorder %v1799, 0
        %vm1804 = vcmp.ge.s32.totalorder %v1800, 0
        %vm1805 = vcmp.lt.s32.totalorder %v1797, 16
        %vm1806 = vcmp.lt.s32.totalorder %v1798, 16
        %vm1807 = vcmp.lt.s32.totalorder %v1799, 16
        %vm1808 = vcmp.lt.s32.totalorder %v1800, 16
        %vm1809 = vmand %vm1801, %vm1805
        %vm1810 = vmand %vm1802, %vm1806
        %vm1811 = vmand %vm1803, %vm1807
        %vm1812 = vmand %vm1804, %vm1808
        %v1813 = vsel %vm1809, 1, 0
        %v1814 = vsel %vm1810, 1, 0
        %v1815 = vsel %vm1811, 1, 0
        %v1816 = vsel %vm1812, 1, 0
        %1817 = vset.pattern.permute.xlu0 0
        %1818 = vperm.xlu0 %1817, %v1813
        %v1819 = vpop.permute.xlu0 %1818
        %1820 = vset.pattern.permute.xlu0 0
        %1821 = vperm.xlu0 %1820, %v1814
        %v1822 = vpop.permute.xlu0 %1821
        %1823 = vset.pattern.permute.xlu0 0
        %1824 = vperm.xlu0 %1823, %v1815
        %v1825 = vpop.permute.xlu0 %1824
        %1826 = vset.pattern.permute.xlu0 0
        %1827 = vperm.xlu0 %1826, %v1816
        %v1828 = vpop.permute.xlu0 %1827
        %vm1829 = vcmp.eq.s32.totalorder %v1819, 1
        %vm1830 = vcmp.eq.s32.totalorder %v1822, 1
        %vm1831 = vcmp.eq.s32.totalorder %v1825, 1
        %vm1832 = vcmp.eq.s32.totalorder %v1828, 1
        %v1833 = vsel %vm1829, %v1796, 0.0
        %v1834 = vsel %vm1830, %v1795, 0.0
        %v1835 = vsel %vm1831, %v1794, 0.0
        %v1836 = vsel %vm1832, %v1793, 0.0
        %vm1837 = vcmp.ge.s32.totalorder %v759, 0
        %vm1838 = vcmp.ge.s32.totalorder %v760, 0
        %vm1839 = vcmp.ge.s32.totalorder %v761, 0
        %vm1840 = vcmp.ge.s32.totalorder %v762, 0
        %vm1841 = vcmp.lt.s32.totalorder %v759, 16
        %vm1842 = vcmp.lt.s32.totalorder %v760, 16
        %vm1843 = vcmp.lt.s32.totalorder %v761, 16
        %vm1844 = vcmp.lt.s32.totalorder %v762, 16
        %vm1845 = vmand %vm1837, %vm1841
        %vm1846 = vmand %vm1838, %vm1842
        %vm1847 = vmand %vm1839, %vm1843
        %vm1848 = vmand %vm1840, %vm1844
        %v1849 = vsel %vm1845, 1, 0
        %v1850 = vsel %vm1846, 1, 0
        %v1851 = vsel %vm1847, 1, 0
        %v1852 = vsel %vm1848, 1, 0
        %1853 = vset.pattern.permute.xlu0 0
        %1854 = vperm.xlu0 %1853, %v1849
        %v1855 = vpop.permute.xlu0 %1854
        %1856 = vset.pattern.permute.xlu0 0
        %1857 = vperm.xlu0 %1856, %v1850
        %v1858 = vpop.permute.xlu0 %1857
        %1859 = vset.pattern.permute.xlu0 0
        %1860 = vperm.xlu0 %1859, %v1851
        %v1861 = vpop.permute.xlu0 %1860
        %1862 = vset.pattern.permute.xlu0 0
        %1863 = vperm.xlu0 %1862, %v1852
        %v1864 = vpop.permute.xlu0 %1863
        %vm1865 = vcmp.eq.s32.totalorder %v1855, 1
        %vm1866 = vcmp.eq.s32.totalorder %v1858, 1
        %vm1867 = vcmp.eq.s32.totalorder %v1861, 1
        %vm1868 = vcmp.eq.s32.totalorder %v1864, 1
        %v1869 = vsel %vm1865, %v1782, 0.0
        %v1870 = vsel %vm1866, %v1783, 0.0
        %v1871 = vsel %vm1867, %v1784, 0.0
        %v1872 = vsel %vm1868, %v1785, 0.0
        %v1873 = vrot.slane %v1782, 1
        %v1874 = vrot.slane %v1783, 1
        %v1875 = vrot.slane %v1784, 1
        %v1876 = vrot.slane %v1785, 1
        %vm1877 = vcmp.lt.s32.totalorder %v1791, 7
        %v1878 = vsel %vm1877, %v1875, %v1876
        %v1879 = vsel %vm1877, %v1874, %v1875
        %v1880 = vsel %vm1877, %v1873, %v1874
        %v1881 = vsel %vm1877, %v1876, %v1873
        %v1882 = vadd.s32 %v759, 1
        %v1883 = vadd.s32 %v760, 1
        %v1884 = vadd.s32 %v761, 1
        %v1885 = vadd.s32 %v762, 1
        %vm1886 = vcmp.ge.s32.totalorder %v1882, 0
        %vm1887 = vcmp.ge.s32.totalorder %v1883, 0
        %vm1888 = vcmp.ge.s32.totalorder %v1884, 0
        %vm1889 = vcmp.ge.s32.totalorder %v1885, 0
        %vm1890 = vcmp.lt.s32.totalorder %v1882, 16
        %vm1891 = vcmp.lt.s32.totalorder %v1883, 16
        %vm1892 = vcmp.lt.s32.totalorder %v1884, 16
        %vm1893 = vcmp.lt.s32.totalorder %v1885, 16
        %vm1894 = vmand %vm1886, %vm1890
        %vm1895 = vmand %vm1887, %vm1891
        %vm1896 = vmand %vm1888, %vm1892
        %vm1897 = vmand %vm1889, %vm1893
        %v1898 = vsel %vm1894, 1, 0
        %v1899 = vsel %vm1895, 1, 0
        %v1900 = vsel %vm1896, 1, 0
        %v1901 = vsel %vm1897, 1, 0
        %1902 = vset.pattern.permute.xlu0 0
        %1903 = vperm.xlu0 %1902, %v1898
        %v1904 = vpop.permute.xlu0 %1903
        %1905 = vset.pattern.permute.xlu0 0
        %1906 = vperm.xlu0 %1905, %v1899
        %v1907 = vpop.permute.xlu0 %1906
        %1908 = vset.pattern.permute.xlu0 0
        %1909 = vperm.xlu0 %1908, %v1900
        %v1910 = vpop.permute.xlu0 %1909
        %1911 = vset.pattern.permute.xlu0 0
        %1912 = vperm.xlu0 %1911, %v1901
        %v1913 = vpop.permute.xlu0 %1912
        %vm1914 = vcmp.eq.s32.totalorder %v1904, 1
        %vm1915 = vcmp.eq.s32.totalorder %v1907, 1
        %vm1916 = vcmp.eq.s32.totalorder %v1910, 1
        %vm1917 = vcmp.eq.s32.totalorder %v1913, 1
        %v1918 = vsel %vm1914, %v1880, 0.0
        %v1919 = vsel %vm1915, %v1879, 0.0
        %v1920 = vsel %vm1916, %v1878, 0.0
        %v1921 = vsel %vm1917, %v1881, 0.0
        %1926 = vrot.lane.b32.xlu0 %v1869, 32
        %v1927 = vpop.permute.xlu0 %1926
        %1928 = vrot.lane.b32.xlu0 %v1870, 32
        %v1929 = vpop.permute.xlu0 %1928
        %1930 = vrot.lane.b32.xlu0 %v1871, 32
        %v1931 = vpop.permute.xlu0 %1930
        %1932 = vrot.lane.b32.xlu0 %v1872, 32
        %v1933 = vpop.permute.xlu0 %1932
        %1942 = vrot.lane.b32.xlu0 %v1918, 64
        %v1943 = vpop.permute.xlu0 %1942
        %1944 = vrot.lane.b32.xlu0 %v1919, 64
        %v1945 = vpop.permute.xlu0 %1944
        %1946 = vrot.lane.b32.xlu0 %v1920, 64
        %v1947 = vpop.permute.xlu0 %1946
        %1948 = vrot.lane.b32.xlu0 %v1921, 64
        %v1949 = vpop.permute.xlu0 %1948
        %v1954 = vsel %vm869, %v1833, %v1927
        %v1955 = vsel %vm869, %v1834, %v1929
        %v1956 = vsel %vm869, %v1835, %v1931
        %v1957 = vsel %vm869, %v1836, %v1933
        %vm1958 = vcmask 523264
        %v1959 = vsel %vm1958, %v1954, %v1943
        %v1960 = vsel %vm1958, %v1955, %v1945
        %v1961 = vsel %vm1958, %v1956, %v1947
        %v1962 = vsel %vm1958, %v1957, %v1949
        %v1963 = vpack.c.bf16 %v1960, %v1959
        %v1964 = vpack.c.bf16 %v1962, %v1961
        %v1965 = vld [vmem:[%s719] sm:$0xf]
        %v1966 = vld [vmem:[%s719 + $0x4] sm:$0xf]
        %v1967 = vld [vmem:[%s719 + $0x8] sm:$0xf]
        %v1968 = vld [vmem:[%s719 + $0xc] sm:$0xf]
        %v1969 = vld [vmem:[%s719 + $0x10] sm:$0xf]
        %v1970 = vld [vmem:[%s719 + $0x14] sm:$0xf]
        %v1971 = vld [vmem:[%s719 + $0x18] sm:$0xf]
        %v1972 = vld [vmem:[%s719 + $0x1c] sm:$0xf]
        %v1973 = vld [vmem:[%s719 + $0x20] sm:$0xf]
        %v1974 = vld [vmem:[%s719 + $0x24] sm:$0xf]
        %v1975 = vld [vmem:[%s719 + $0x28] sm:$0xf]
        %v1976 = vld [vmem:[%s719 + $0x2c] sm:$0xf]
        %v1977 = vld [vmem:[%s722] sm:$0x1]
        %v1979 = vlaneseq
        %v1980 = vshrl.u32 %v1979, 7
        %v1981 = vsub.s32 0, %v1980
        %v1982 = vrot.slane %v1977, %v1981
        %v1996 = vunpack.c.l.b16 %v1965
        %v1997 = vunpack.c.l.b16 %v1966
        %v1998 = vunpack.c.l.b16 %v1967
        %v1999 = vunpack.c.l.b16 %v1968
        %v2000 = vunpack.c.l.b16 %v1969
        %v2001 = vunpack.c.l.b16 %v1970
        %v2002 = vunpack.c.l.b16 %v1971
        %v2003 = vunpack.c.l.b16 %v1972
        %v2004 = vunpack.c.l.b16 %v1973
        %v2005 = vunpack.c.l.b16 %v1974
        %v2006 = vunpack.c.l.b16 %v1975
        %v2007 = vunpack.c.l.b16 %v1976
        %v2008 = vpack.c.b16 %v1997, %v1996
        %v2009 = vpack.c.b16 %v1999, %v1998
        %v2010 = vpack.c.b16 %v2001, %v2000
        %v2011 = vpack.c.b16 %v2003, %v2002
        %v2012 = vpack.c.b16 %v2005, %v2004
        %v2013 = vpack.c.b16 %v2007, %v2006
        %vm2020 = vcmask 785408
        %v2022 = vsel %vm2020, %v1963, 0
        %v2025 = vsel %vm2020, %v1964, 0
        %2027 = vmatprep.subr.bf16.mxu0 0
        %2028 = vmatpush1.bf16.msra.mxu0 0
        %2029 = vmatprep.subr.bf16.mxu0 0
        %2030 = vmatpush1.bf16.msra.mxu0 0
        %2031 = vmatprep.subr.bf16.mxu0 0
        %2032 = vmatpush1.bf16.msra.mxu0 %v2013
        %2033 = vmatprep.subr.bf16.mxu0 0
        %2034 = vmatpush1.bf16.msra.mxu0 %v2012
        %2035 = vmatprep.subr.bf16.mxu0 0
        %2036 = vmatpush1.bf16.msra.mxu0 %v2011
        %2037 = vmatprep.subr.bf16.mxu0 0
        %2038 = vmatpush1.bf16.msra.mxu0 %v2010
        %2039 = vmatprep.subr.bf16.mxu0 0
        %2040 = vmatpush1.bf16.msra.mxu0 %v2009
        %2041 = vmatprep.subr.bf16.mxu0 0
        %2042 = vmatpush1.bf16.msra.mxu0 %v2008
        %2043 = vmatprep.subr.bf16.mxu0 0
        %2044 = vmatpush2.bf16.msra.mxu0 0
        %2045 = vmatprep.subr.bf16.mxu0 0
        %2046 = vmatpush2.bf16.msra.mxu0 0
        %2047 = vmatprep.subr.bf16.mxu0 0
        %2048 = vmatpush2.bf16.msra.mxu0 0
        %2049 = vmatprep.subr.bf16.mxu0 0
        %2050 = vmatpush2.bf16.msra.mxu0 0
        %2051 = vmatprep.subr.bf16.mxu0 0
        %2052 = vmatpush2.bf16.msra.mxu0 0
        %2053 = vmatprep.subr.bf16.mxu0 0
        %2054 = vmatpush2.bf16.msra.mxu0 0
        %2055 = vmatprep.subr.bf16.mxu0 0
        %2056 = vmatpush2.bf16.msra.mxu0 0
        %2057 = vmatprep.subr.bf16.mxu0 0
        %2058 = vmatpush2.bf16.msra.mxu0 0
        %2059 = vmatprep.mubr.bf16.mxu0 0
        %2060 = vmatmul.mubr.bf16.gmra.mxu0 %v2022
        %v2061 = vpop.f32.mrf.mxu0
        %v2062 = vadd.f32 %v1982, %v2061
        %v2063 = vpop.f32.mrf.mxu0
        %v2064 = vpop.f32.mrf.mxu0
        %v2065 = vadd.f32 %v1982, %v2064
        %v2066 = vpop.f32.mrf.mxu0
        %2067 = vmatprep.mubr.bf16.mxu0 0
        %2068 = vmatmul.mubr.bf16.gmra.mxu0 %v2025
        %v2069 = vpop.f32.mrf.mxu0
        %v2070 = vadd.f32 %v1982, %v2069
        %v2071 = vpop.f32.mrf.mxu0
        %v2072 = vpop.f32.mrf.mxu0
        %v2073 = vadd.f32 %v1982, %v2072
        %v2074 = vpop.f32.mrf.mxu0
        %2075 = vdwg.mxu0
        %v2076 = vmax.f32 %v2062, 0.0
        %v2077 = vmax.f32 %v2065, 0.0
        %v2078 = vmax.f32 %v2070, 0.0
        %v2079 = vmax.f32 %v2073, 0.0
        %v2080 = vmul.f32 %v2076, %v1765
        %v2081 = vmul.f32 %v2077, %v1770
        %v2082 = vmul.f32 %v2078, %v1775
        %v2083 = vmul.f32 %v2079, %v1780
        %v2084 = vrot.slane %v2080, 7
        %v2085 = vrot.slane %v2081, 7
        %v2086 = vrot.slane %v2082, 7
        %v2087 = vrot.slane %v2083, 7
        %v2088 = vsel %vm1792, %v2086, %v2087
        %v2089 = vsel %vm1792, %v2085, %v2086
        %v2090 = vsel %vm1792, %v2084, %v2085
        %v2091 = vsel %vm1792, %v2087, %v2084
        %v2092 = vsel %vm1829, %v2091, 0.0
        %v2093 = vsel %vm1830, %v2090, 0.0
        %v2094 = vsel %vm1831, %v2089, 0.0
        %v2095 = vsel %vm1832, %v2088, 0.0
        %v2096 = vsel %vm1865, %v2080, 0.0
        %v2097 = vsel %vm1866, %v2081, 0.0
        %v2098 = vsel %vm1867, %v2082, 0.0
        %v2099 = vsel %vm1868, %v2083, 0.0
        %v2100 = vrot.slane %v2080, 1
        %v2101 = vrot.slane %v2081, 1
        %v2102 = vrot.slane %v2082, 1
        %v2103 = vrot.slane %v2083, 1
        %v2104 = vsel %vm1877, %v2102, %v2103
        %v2105 = vsel %vm1877, %v2101, %v2102
        %v2106 = vsel %vm1877, %v2100, %v2101
        %v2107 = vsel %vm1877, %v2103, %v2100
        %v2108 = vsel %vm1914, %v2106, 0.0
        %v2109 = vsel %vm1915, %v2105, 0.0
        %v2110 = vsel %vm1916, %v2104, 0.0
        %v2111 = vsel %vm1917, %v2107, 0.0
        %2116 = vrot.lane.b32.xlu0 %v2096, 64
        %v2117 = vpop.permute.xlu0 %2116
        %2118 = vrot.lane.b32.xlu0 %v2097, 64
        %v2119 = vpop.permute.xlu0 %2118
        %2120 = vrot.lane.b32.xlu0 %v2098, 64
        %v2121 = vpop.permute.xlu0 %2120
        %2122 = vrot.lane.b32.xlu0 %v2099, 64
        %v2123 = vpop.permute.xlu0 %2122
        %v2128 = vsel %vm1958, %v2092, %v2117
        %v2129 = vsel %vm1958, %v2093, %v2119
        %v2130 = vsel %vm1958, %v2094, %v2121
        %v2131 = vsel %vm1958, %v2095, %v2123
        %v2132 = vpack.c.bf16 %v2129, %v2128
        %v2133 = vpack.c.bf16 %v2109, %v2108
        %v2134 = vpack.c.bf16 %v2131, %v2130
        %v2135 = vpack.c.bf16 %v2111, %v2110
        %v2136 = vld [vmem:[%s727] sm:$0xf]
        %v2137 = vld [vmem:[%s727 + $0x4] sm:$0xf]
        %v2138 = vld [vmem:[%s727 + $0x8] sm:$0xf]
        %v2139 = vld [vmem:[%s727 + $0xc] sm:$0xf]
        %v2140 = vld [vmem:[%s727 + $0x10] sm:$0xf]
        %v2141 = vld [vmem:[%s727 + $0x14] sm:$0xf]
        %v2142 = vld [vmem:[%s727 + $0x18] sm:$0xf]
        %v2143 = vld [vmem:[%s727 + $0x1c] sm:$0xf]
        %v2144 = vld [vmem:[%s727 + $0x20] sm:$0xf]
        %v2145 = vld [vmem:[%s727 + $0x24] sm:$0xf]
        %v2146 = vld [vmem:[%s727 + $0x28] sm:$0xf]
        %v2147 = vld [vmem:[%s727 + $0x2c] sm:$0xf]
        %v2148 = vld [vmem:[%s727 + $0x30] sm:$0xf]
        %v2149 = vld [vmem:[%s727 + $0x34] sm:$0xf]
        %v2150 = vld [vmem:[%s727 + $0x38] sm:$0xf]
        %v2151 = vld [vmem:[%s727 + $0x3c] sm:$0xf]
        %v2152 = vld [vmem:[%s727 + $0x40] sm:$0xf]
        %v2153 = vld [vmem:[%s727 + $0x44] sm:$0xf]
        %v2154 = vld [vmem:[%s727 + $0x48] sm:$0xf]
        %v2155 = vld [vmem:[%s727 + $0x4c] sm:$0xf]
        %v2156 = vld [vmem:[%s727 + $0x50] sm:$0xf]
        %v2157 = vld [vmem:[%s727 + $0x54] sm:$0xf]
        %v2158 = vld [vmem:[%s727 + $0x58] sm:$0xf]
        %v2159 = vld [vmem:[%s727 + $0x5c] sm:$0xf]
        %v2160 = vld [vmem:[%s730] sm:$0x1]
        %v2162 = vlaneseq
        %v2163 = vshrl.u32 %v2162, 7
        %v2164 = vsub.s32 0, %v2163
        %v2165 = vrot.slane %v2160, %v2164
        %v2191 = vunpack.c.l.b16 %v2136
        %v2192 = vunpack.c.l.b16 %v2137
        %v2193 = vunpack.c.l.b16 %v2138
        %v2194 = vunpack.c.l.b16 %v2139
        %v2195 = vunpack.c.l.b16 %v2140
        %v2196 = vunpack.c.l.b16 %v2141
        %v2197 = vunpack.c.l.b16 %v2142
        %v2198 = vunpack.c.l.b16 %v2143
        %v2199 = vunpack.c.l.b16 %v2144
        %v2200 = vunpack.c.l.b16 %v2145
        %v2201 = vunpack.c.l.b16 %v2146
        %v2202 = vunpack.c.l.b16 %v2147
        %v2203 = vunpack.c.l.b16 %v2148
        %v2204 = vunpack.c.l.b16 %v2149
        %v2205 = vunpack.c.l.b16 %v2150
        %v2206 = vunpack.c.l.b16 %v2151
        %v2207 = vunpack.c.l.b16 %v2152
        %v2208 = vunpack.c.l.b16 %v2153
        %v2209 = vunpack.c.l.b16 %v2154
        %v2210 = vunpack.c.l.b16 %v2155
        %v2211 = vunpack.c.l.b16 %v2156
        %v2212 = vunpack.c.l.b16 %v2157
        %v2213 = vunpack.c.l.b16 %v2158
        %v2214 = vunpack.c.l.b16 %v2159
        %v2215 = vpack.c.b16 %v2192, %v2191
        %v2216 = vpack.c.b16 %v2194, %v2193
        %v2217 = vpack.c.b16 %v2196, %v2195
        %v2218 = vpack.c.b16 %v2198, %v2197
        %v2219 = vpack.c.b16 %v2200, %v2199
        %v2220 = vpack.c.b16 %v2202, %v2201
        %v2221 = vpack.c.b16 %v2204, %v2203
        %v2222 = vpack.c.b16 %v2206, %v2205
        %v2223 = vpack.c.b16 %v2208, %v2207
        %v2224 = vpack.c.b16 %v2210, %v2209
        %v2225 = vpack.c.b16 %v2212, %v2211
        %v2226 = vpack.c.b16 %v2214, %v2213
        %v2240 = vsel %vm1958, %v2133, 0
        %v2243 = vsel %vm1958, %v2135, 0
        %2245 = vmatprep.subr.bf16.mxu0 0
        %2246 = vmatpush1.bf16.msra.mxu0 %v2222
        %2247 = vmatprep.subr.bf16.mxu0 0
        %2248 = vmatpush1.bf16.msra.mxu0 %v2221
        %2249 = vmatprep.subr.bf16.mxu0 0
        %2250 = vmatpush1.bf16.msra.mxu0 %v2220
        %2251 = vmatprep.subr.bf16.mxu0 0
        %2252 = vmatpush1.bf16.msra.mxu0 %v2219
        %2253 = vmatprep.subr.bf16.mxu0 0
        %2254 = vmatpush1.bf16.msra.mxu0 %v2218
        %2255 = vmatprep.subr.bf16.mxu0 0
        %2256 = vmatpush1.bf16.msra.mxu0 %v2217
        %2257 = vmatprep.subr.bf16.mxu0 0
        %2258 = vmatpush1.bf16.msra.mxu0 %v2216
        %2259 = vmatprep.subr.bf16.mxu0 0
        %2260 = vmatpush1.bf16.msra.mxu0 %v2215
        %2261 = vmatprep.subr.bf16.mxu0 0
        %2262 = vmatpush2.bf16.msra.mxu0 0
        %2263 = vmatprep.subr.bf16.mxu0 0
        %2264 = vmatpush2.bf16.msra.mxu0 0
        %2265 = vmatprep.subr.bf16.mxu0 0
        %2266 = vmatpush2.bf16.msra.mxu0 0
        %2267 = vmatprep.subr.bf16.mxu0 0
        %2268 = vmatpush2.bf16.msra.mxu0 0
        %2269 = vmatprep.subr.bf16.mxu0 0
        %2270 = vmatpush2.bf16.msra.mxu0 %v2226
        %2271 = vmatprep.subr.bf16.mxu0 0
        %2272 = vmatpush2.bf16.msra.mxu0 %v2225
        %2273 = vmatprep.subr.bf16.mxu0 0
        %2274 = vmatpush2.bf16.msra.mxu0 %v2224
        %2275 = vmatprep.subr.bf16.mxu0 0
        %2276 = vmatpush2.bf16.msra.mxu0 %v2223
        %2277 = vmatprep.mubr.bf16.mxu0 %v2240
        %2278 = vmatmul.mubr.bf16.gmra.mxu0 %v2132
        %v2279 = vpop.f32.mrf.mxu0
        %v2280 = vadd.f32 %v2165, %v2279
        %v2281 = vpop.f32.mrf.mxu0
        %v2282 = vpop.f32.mrf.mxu0
        %v2283 = vadd.f32 %v2165, %v2282
        %v2284 = vpop.f32.mrf.mxu0
        %2285 = vmatprep.mubr.bf16.mxu0 %v2243
        %2286 = vmatmul.mubr.bf16.gmra.mxu0 %v2134
        %v2287 = vpop.f32.mrf.mxu0
        %v2288 = vadd.f32 %v2165, %v2287
        %v2289 = vpop.f32.mrf.mxu0
        %v2290 = vpop.f32.mrf.mxu0
        %v2291 = vadd.f32 %v2165, %v2290
        %v2292 = vpop.f32.mrf.mxu0
        %2293 = vdwg.mxu0
        %v2294 = vmul.f32 %v2280, %v1765
        %v2295 = vmul.f32 %v2283, %v1770
        %v2296 = vmul.f32 %v2288, %v1775
        %v2297 = vmul.f32 %v2291, %v1780
        %v2298 = vadd.f32 %v1758, %v2294
        %v2299 = vadd.f32 %v1759, %v2295
        %v2300 = vadd.f32 %v1760, %v2296
        %v2301 = vadd.f32 %v1761, %v2297
        %v2302 = vld [vmem:[%s733] sm:$0x1]
        %v2303 = vld [vmem:[%s736] sm:$0x1]
        %v2304 = vsel %vm869, %v2298, 0.0
        %2305 = vadd.xlane.f32.xlu0 %v2304
        %v2306 = vpop.xlane.xlu0 %2305
        %v2307 = vsel %vm869, %v2299, 0.0
        %2308 = vadd.xlane.f32.xlu0 %v2307
        %v2309 = vpop.xlane.xlu0 %2308
        %v2310 = vsel %vm869, %v2300, 0.0
        %2311 = vadd.xlane.f32.xlu0 %v2310
        %v2312 = vpop.xlane.xlu0 %2311
        %v2313 = vsel %vm869, %v2301, 0.0
        %2314 = vadd.xlane.f32.xlu0 %v2313
        %v2315 = vpop.xlane.xlu0 %2314
        %v2316 = vmul.f32 %v2306, %v1701
        %v2317 = vmul.f32 %v2309, %v1701
        %v2318 = vmul.f32 %v2312, %v1701
        %v2319 = vmul.f32 %v2315, %v1701
        %v2320 = vsub.f32 %v2298, %v2316
        %v2321 = vsub.f32 %v2299, %v2317
        %v2322 = vsub.f32 %v2300, %v2318
        %v2323 = vsub.f32 %v2301, %v2319
        %v2324 = vmul.f32 %v2320, %v2320
        %v2325 = vmul.f32 %v2321, %v2321
        %v2326 = vmul.f32 %v2322, %v2322
        %v2327 = vmul.f32 %v2323, %v2323
        %v2328 = vsel %vm869, %v2324, 0.0
        %2329 = vadd.xlane.f32.xlu0 %v2328
        %v2330 = vpop.xlane.xlu0 %2329
        %v2331 = vsel %vm869, %v2325, 0.0
        %2332 = vadd.xlane.f32.xlu0 %v2331
        %v2333 = vpop.xlane.xlu0 %2332
        %v2334 = vsel %vm869, %v2326, 0.0
        %2335 = vadd.xlane.f32.xlu0 %v2334
        %v2336 = vpop.xlane.xlu0 %2335
        %v2337 = vsel %vm869, %v2327, 0.0
        %2338 = vadd.xlane.f32.xlu0 %v2337
        %v2339 = vpop.xlane.xlu0 %2338
        %v2340 = vmul.f32 %v2330, %v1701
        %v2341 = vmul.f32 %v2333, %v1701
        %v2342 = vmul.f32 %v2336, %v1701
        %v2343 = vmul.f32 %v2339, %v1701
        %v2344 = vadd.f32 %v2340, 1e-05
        %v2345 = vadd.f32 %v2341, 1e-05
        %v2346 = vadd.f32 %v2342, 1e-05
        %v2347 = vadd.f32 %v2343, 1e-05
        %v2348 = vrsqrt.pop %v2344
        %v2349 = vrsqrt.pop %v2345
        %v2350 = vrsqrt.pop %v2346
        %v2351 = vrsqrt.pop %v2347
        %v2352 = vmul.f32 %v2320, %v2348
        %v2353 = vmul.f32 %v2321, %v2349
        %v2354 = vmul.f32 %v2322, %v2350
        %v2355 = vmul.f32 %v2323, %v2351
        %v2357 = vlaneseq
        %v2358 = vshrl.u32 %v2357, 7
        %v2359 = vsub.s32 0, %v2358
        %v2360 = vrot.slane %v2302, %v2359
        %v2362 = vmul.f32 %v2352, %v2360
        %v2363 = vmul.f32 %v2353, %v2360
        %v2364 = vmul.f32 %v2354, %v2360
        %v2365 = vmul.f32 %v2355, %v2360
        %v2367 = vlaneseq
        %v2368 = vshrl.u32 %v2367, 7
        %v2369 = vsub.s32 0, %v2368
        %v2370 = vrot.slane %v2303, %v2369
        %v2372 = vadd.f32 %v2362, %v2370
        %v2373 = vadd.f32 %v2363, %v2370
        %v2374 = vadd.f32 %v2364, %v2370
        %v2375 = vadd.f32 %v2365, %v2370
        %2376 = vst.msk [vmem:[#allocation2] sm:$0xff] %vm869, %v2372
        %2377 = vst.msk [vmem:[#allocation2 + $0x8] sm:$0xff] %vm869, %v2373
        %2378 = vst.msk [vmem:[#allocation2 + $0x10] sm:$0xff] %vm869, %v2374
        %2379 = vst.msk [vmem:[#allocation2 + $0x18] sm:$0xff] %vm869, %v2375
        %p2380 = scmp.eq.s32.totalorder %s30, 1
        // Predicated region
        $region97: #{tpu_custom_call.1} parent=91 // pred_check
          %p2381 = pneg %p2380
        $region98: #{tpu_custom_call.1} parent=91 // pred_check_branch
          %2383 = sbr.rel (%p2381) target = $region100
        $region99: #{tpu_custom_call.1} parent=91 // pred_region
          %v2384 = vmul.f32 %v2372, %v1765
          %v2385 = vmul.f32 %v2373, %v1770
          %v2386 = vmul.f32 %v2374, %v1775
          %v2387 = vmul.f32 %v2375, %v1780
          %v2388 = vpack.c.bf16 %v2385, %v2384
          %v2389 = vpack.c.bf16 %v2387, %v2386
          %v2390 = vld [vmem:[%s16] sm:$0xf]
          %v2391 = vld [vmem:[%s16 + $0x4] sm:$0xf]
          %v2392 = vld [vmem:[%s16 + $0x8] sm:$0xf]
          %v2393 = vld [vmem:[%s16 + $0xc] sm:$0xf]
          %v2394 = vld [vmem:[%s17] sm:$0x1]
          %v2396 = vlaneseq
          %v2397 = vshrl.u32 %v2396, 7
          %v2398 = vsub.s32 0, %v2397
          %v2399 = vrot.slane %v2394, %v2398
          %v2405 = vunpack.c.l.b16 %v2390
          %v2406 = vunpack.c.l.b16 %v2391
          %v2407 = vunpack.c.l.b16 %v2392
          %v2408 = vunpack.c.l.b16 %v2393
          %v2409 = vpack.c.b16 %v2406, %v2405
          %v2410 = vpack.c.b16 %v2408, %v2407
          %v2414 = vsel %vm869, %v2388, 0
          %v2417 = vsel %vm869, %v2389, 0
          %2419 = vmatprep.subr.bf16.mxu0 0
          %2420 = vmatpush1.bf16.msra.mxu0 0
          %2421 = vmatprep.subr.bf16.mxu0 0
          %2422 = vmatpush1.bf16.msra.mxu0 0
          %2423 = vmatprep.subr.bf16.mxu0 0
          %2424 = vmatpush1.bf16.msra.mxu0 0
          %2425 = vmatprep.subr.bf16.mxu0 0
          %2426 = vmatpush1.bf16.msra.mxu0 0
          %2427 = vmatprep.subr.bf16.mxu0 0
          %2428 = vmatpush1.bf16.msra.mxu0 0
          %2429 = vmatprep.subr.bf16.mxu0 0
          %2430 = vmatpush1.bf16.msra.mxu0 0
          %2431 = vmatprep.subr.bf16.mxu0 0
          %2432 = vmatpush1.bf16.msra.mxu0 %v2410
          %2433 = vmatprep.subr.bf16.mxu0 0
          %2434 = vmatpush1.bf16.msra.mxu0 %v2409
          %2435 = vmatprep.subr.bf16.mxu0 0
          %2436 = vmatpush2.bf16.msra.mxu0 0
          %2437 = vmatprep.subr.bf16.mxu0 0
          %2438 = vmatpush2.bf16.msra.mxu0 0
          %2439 = vmatprep.subr.bf16.mxu0 0
          %2440 = vmatpush2.bf16.msra.mxu0 0
          %2441 = vmatprep.subr.bf16.mxu0 0
          %2442 = vmatpush2.bf16.msra.mxu0 0
          %2443 = vmatprep.subr.bf16.mxu0 0
          %2444 = vmatpush2.bf16.msra.mxu0 0
          %2445 = vmatprep.subr.bf16.mxu0 0
          %2446 = vmatpush2.bf16.msra.mxu0 0
          %2447 = vmatprep.subr.bf16.mxu0 0
          %2448 = vmatpush2.bf16.msra.mxu0 0
          %2449 = vmatprep.subr.bf16.mxu0 0
          %2450 = vmatpush2.bf16.msra.mxu0 0
          %2451 = vmatprep.mubr.bf16.mxu0 0
          %2452 = vmatmul.mubr.bf16.gmra.mxu0 %v2414
          %v2453 = vpop.f32.mrf.mxu0
          %v2454 = vadd.f32 %v2399, %v2453
          %v2455 = vpop.f32.mrf.mxu0
          %v2456 = vpop.f32.mrf.mxu0
          %v2457 = vadd.f32 %v2399, %v2456
          %v2458 = vpop.f32.mrf.mxu0
          %2459 = vmatprep.mubr.bf16.mxu0 0
          %2460 = vmatmul.mubr.bf16.gmra.mxu0 %v2417
          %v2461 = vpop.f32.mrf.mxu0
          %v2462 = vadd.f32 %v2399, %v2461
          %v2463 = vpop.f32.mrf.mxu0
          %v2464 = vpop.f32.mrf.mxu0
          %v2465 = vadd.f32 %v2399, %v2464
          %v2466 = vpop.f32.mrf.mxu0
          %2467 = vdwg.mxu0
          %v2468 = vmul.f32 %v2454, %v1765
          %v2469 = vmul.f32 %v2457, %v1770
          %v2470 = vmul.f32 %v2462, %v1775
          %v2471 = vmul.f32 %v2465, %v1780
          %2472 = vst [vmem:[#allocation3] sm:$0xff] %v2468
          %2473 = vst [vmem:[#allocation3 + $0x8] sm:$0xff] %v2469
          %2474 = vst [vmem:[#allocation3 + $0x10] sm:$0xff] %v2470
          %2475 = vst [vmem:[#allocation3 + $0x18] sm:$0xff] %v2471
        $region100: #{tpu_custom_call.1} parent=91 // pred_fallthru
          _
        // Predicated region
        $region101: #{tpu_custom_call.1} parent=91 // pred_check
          %p2476 = pneg %p481
        $region102: #{tpu_custom_call.1} parent=91 // pred_check_branch
          %2478 = sbr.rel (%p2476) target = $region104
        $region103: #{tpu_custom_call.1} parent=91 // pred_region
          %s2480 = ssub.s32 512, 512
          %2481 = vsyncadd [#allocation4], %s2480
          %s2482 = sshll.u32 [#allocation3], 4
          %s2483 = int_to_ptr.vmem [resolvable:$true] %s2482
          %2488 = dma.vmem_to_hbm [thread:$0]  %s2483, 512, %s18, [#allocation4], 128, 128, 8
        $region104: #{tpu_custom_call.1} parent=91 // pred_fallthru
          _
        // Predicated region
        $region105: #{tpu_custom_call.1} parent=91 // pred_check
          %p2489 = pneg %p481
        $region106: #{tpu_custom_call.1} parent=91 // pred_check_branch
          %2491 = sbr.rel (%p2489) target = $region108
        $region107: #{tpu_custom_call.1} parent=91 // pred_region
          %2492 = dma.done [#allocation4], 512
        $region108: #{tpu_custom_call.1} parent=91 // pred_fallthru
          _
      $region92: #{tpu_custom_call.1} parent=5 // pred_fallthru
        _
      %p2493 = scmp.le.s32.totalorder 2, %s25
      // Predicated region
      $region109: #{tpu_custom_call.1} parent=5 // pred_check
        %p2494 = pneg %p2493
      $region110: #{tpu_custom_call.1} parent=5 // pred_check_branch
        %2496 = sbr.rel (%p2494) target = $region112
      $region111: #{tpu_custom_call.1} parent=5 // pred_region
        %s2497 = ssub.s32 %s25, 2
      $region112: #{tpu_custom_call.1} parent=5 // pred_fallthru
        _
    $region6: #{tpu_custom_call.1} parent=1 // loop_footer
      %s29 = sadd.s32 1, %s25
    $region7: #{tpu_custom_call.1} parent=1 // loop_footer_branch
      %24 = sbr.rel target = $region3
    $region8: #{tpu_custom_call.1} parent=1 // loop_exit
      _
    %2498 = vsyncpa [#allocation4], 1
    %s2499 = scalar_lea.sflag [#allocation4], 1
    %2500 = vsyncpa %s2499, 1

</llo_original>
